<compile_context>
chip_gen: v7x
topology: tpu7x:2x2x1
jax: 0.10.0
libtpu: 0.0.40
codegen_flags: <defaults>
</compile_context>

<pallas_src>
import jax
import jax.numpy as jnp
from jax.experimental import pallas as pl
from jax.experimental.pallas import tpu as pltpu


_VMEM_LIMIT = 64 * 1024 * 1024  # scoped-VMEM budget for slab kernels


# ----------------------------------------------------------------------------
# Helpers
# ----------------------------------------------------------------------------
def _fs(shape):
    """Full-array BlockSpec for grid=(1,) kernels."""
    rank = len(shape)
    return pl.BlockSpec(shape, lambda i, _r=rank: (0,) * _r)


def _leaky(x):
    return jnp.where(x >= 0, x, 0.01 * x)  # LeakyReLU(0.01); Dropout = identity (eval)


def _pick_tile(dim, target, mult):
    """Largest tile <= target that divides `dim` and is a multiple of `mult`;
    falls back to the full dim (block == array dim is always legal)."""
    if dim <= target:
        return dim
    t = (target // mult) * mult
    while t >= mult:
        if dim % t == 0:
            return t
        t -= mult
    return dim


# ----------------------------------------------------------------------------
# Tiled linear: used for the hoisted GRU input-gate projections, the hoisted
# decoder vocab projection and the bow head's second matmul.
# bf16 MXU operands, f32 accumulation; both grid axes "parallel".
# ----------------------------------------------------------------------------
def _linear_kernel(x_ref, w_ref, b_ref, o_ref):
    acc = jnp.dot(x_ref[...], w_ref[...], preferred_element_type=jnp.float32)
    o_ref[...] = (acc + b_ref[...]).astype(o_ref.dtype)


def tiled_linear(x, w, b, *, tm=256, tn=512, out_dtype=jnp.float32):
    M, K = x.shape
    N = w.shape[1]
    x = x.astype(jnp.bfloat16)
    w = w.astype(jnp.bfloat16)
    b = b.astype(jnp.float32)
    tm = _pick_tile(M, tm, 8)
    tn = _pick_tile(N, tn, 128)
    grid = (M // tm, N // tn)
    return pl.pallas_call(
        _linear_kernel,
        grid=grid,
        in_specs=[pl.BlockSpec((tm, K), lambda i, j: (i, 0)),
                  pl.BlockSpec((K, tn), lambda i, j: (0, j)),
                  pl.BlockSpec((1, tn), lambda i, j: (0, j))],
        out_specs=pl.BlockSpec((tm, tn), lambda i, j: (i, j)),
        out_shape=jax.ShapeDtypeStruct((M, N), out_dtype),
        compiler_params=pltpu.CompilerParams(
            dimension_semantics=("parallel", "parallel"),
            vmem_limit_bytes=_VMEM_LIMIT),
    )(x, w, b)


# ----------------------------------------------------------------------------
# Token-wise MLP head (c_energy) — small, kept fused in one grid=(1,) call
# ----------------------------------------------------------------------------
def _mlp_kernel(x_ref, w1_ref, b1_ref, w2_ref, b2_ref, o_ref):
    h = _leaky(
        jnp.dot(x_ref[...], w1_ref[...], preferred_element_type=jnp.float32)
        + b1_ref[...]
    )
    o_ref[...] = (
        jnp.dot(h, w2_ref[...], preferred_element_type=jnp.float32) + b2_ref[...]
    )


def mlp_head(x, w1, b1, w2, b2):
    M = x.shape[0]
    Dout = w2.shape[1]
    return pl.pallas_call(
        _mlp_kernel,
        grid=(1,),
        in_specs=[_fs(x.shape), _fs(w1.shape), _fs(b1.shape),
                  _fs(w2.shape), _fs(b2.shape)],
        out_specs=_fs((M, Dout)),
        out_shape=jax.ShapeDtypeStruct((M, Dout), jnp.float32),
        compiler_params=pltpu.CompilerParams(
            dimension_semantics=("arbitrary",),
            vmem_limit_bytes=_VMEM_LIMIT),
    )(x, w1, b1, w2, b2)


# ----------------------------------------------------------------------------
# encode_c: masked attention over condition tokens + downsample linear (fused)
# ----------------------------------------------------------------------------
def _c_attn_kernel(c_ref, e_ref, m_ref, wd_ref, bd_ref, cstate_ref, attn_ref):
    e = e_ref[...]                                     # (B, Sc) raw energies
    m = m_ref[...]                                     # (B, Sc) {0,1} mask
    e = jnp.where(m > 0.5, e, jnp.float32(-1e10))      # matches masked_fill(-1e10)
    e = e - jnp.max(e, axis=-1, keepdims=True)
    p = jnp.exp(e)
    denom = jnp.sum(p, axis=-1, keepdims=True)
    attn = p / denom                                   # exact softmax (torch parity)
    attn_ref[...] = attn
    cs = jnp.sum(attn[:, :, None] * c_ref[...], axis=1)  # (B, Dc) weighted sum
    cstate_ref[...] = (
        jnp.dot(cs, wd_ref[...], preferred_element_type=jnp.float32) + bd_ref[...]
    )


def encode_c(c, c_len, params):
    B, Sc, Dc = c.shape
    w1, b1, w2, b2 = params["c_energy"]
    wd, bd = params["c_down"]
    Ce = wd.shape[1]

    # c_energy MLP applied token-wise as ONE matmul pair over (B*Sc, Dc)
    energies = mlp_head(c.reshape(B * Sc, Dc), w1, b1, w2, b2).reshape(B, Sc)

    # mask: positions 1 .. c_len-2 (create_mask_by_lengths(c_len-1) with [:,0]=False)
    pos = jnp.arange(Sc, dtype=jnp.int32)[None, :]
    cm = ((pos < (c_len[:, None].astype(jnp.int32) - 1)) & (pos > 0)).astype(jnp.float32)

    c_state, c_attn = pl.pallas_call(
        _c_attn_kernel,
        grid=(1,),
        in_specs=[_fs((B, Sc, Dc)), _fs((B, Sc)), _fs((B, Sc)),
                  _fs((Dc, Ce)), _fs((1, Ce))],
        out_specs=[_fs((B, Ce)), _fs((B, Sc))],
        out_shape=[jax.ShapeDtypeStruct((B, Ce), jnp.float32),
                   jax.ShapeDtypeStruct((B, Sc), jnp.float32)],
        compiler_params=pltpu.CompilerParams(
            dimension_semantics=("arbitrary",),
            vmem_limit_bytes=_VMEM_LIMIT),
    )(c, energies, cm, wd, bd)
    return c_state, c_attn


# ----------------------------------------------------------------------------
# GRU step (hidden path only; input-side pre-gates gx were hoisted).
# PyTorch gate order [r, z, n] along the 3H axis.  W_hh is bf16 resident;
# accumulation in f32.  b_hh must stay separate (n-gate: r*(W_hn h + b_hn)).
# TODO(synk): pad H to a multiple of 128 at realistic sizes so the per-gate
# lane slices below are 128-aligned (free); unaligned slices cost XLU shuffles.
# ----------------------------------------------------------------------------
def _gru_gates(gx, h, whh, bhh, H):
    gh = jnp.dot(h.astype(whh.dtype), whh, preferred_element_type=jnp.float32) + bhh
    r = jax.nn.sigmoid(gx[:, 0:H] + gh[:, 0:H])
    z = jax.nn.sigmoid(gx[:, H:2 * H] + gh[:, H:2 * H])
    n = jnp.tanh(gx[:, 2 * H:3 * H] + r * gh[:, 2 * H:3 * H])
    return (1.0 - z) * n + z * h


# ----------------------------------------------------------------------------
# Encoder GRU: streamed over grid=(T,); hidden state carried in VMEM scratch.
# gx/mask per-step blocks are auto double-buffered behind the h@W_hh matmul.
# ----------------------------------------------------------------------------
def _gru_enc_kernel(gx_ref, m_ref, whh_ref, bhh_ref, o_ref, h_sc):
    t = pl.program_id(0)
    H = h_sc.shape[1]

    @pl.when(t == 0)
    def _():
        h_sc[...] = jnp.zeros_like(h_sc)

    h = h_sc[...]
    gx = gx_ref[0].astype(jnp.float32)                 # (B, 3H) bf16 -> f32
    h_new = _gru_gates(gx, h, whh_ref[...], bhh_ref[...], H)
    m = m_ref[0]                                       # (B, 1) valid mask
    # freeze hidden past x_len -> packed-sequence "last valid hidden" semantics
    h_sc[...] = m * h_new + (1.0 - m) * h

    @pl.when(t == pl.num_programs(0) - 1)
    def _():
        o_ref[...] = h_sc[...]


def gru_encoder(gx_tm, mask_tm, whh, bhh):
    T, B, G3 = gx_tm.shape
    H = G3 // 3
    return pl.pallas_call(
        _gru_enc_kernel,
        grid=(T,),
        in_specs=[pl.BlockSpec((1, B, G3), lambda t: (t, 0, 0)),
                  pl.BlockSpec((1, B, 1), lambda t: (t, 0, 0)),
                  pl.BlockSpec((H, G3), lambda t: (0, 0)),
                  pl.BlockSpec((1, G3), lambda t: (0, 0))],
        out_specs=pl.BlockSpec((B, H), lambda t: (0, 0)),
        out_shape=jax.ShapeDtypeStruct((B, H), jnp.float32),
        scratch_shapes=[pltpu.VMEM((B, H), jnp.float32)],
        compiler_params=pltpu.CompilerParams(
            dimension_semantics=("arbitrary",),
            vmem_limit_bytes=_VMEM_LIMIT),
    )(gx_tm, mask_tm, whh.astype(jnp.bfloat16), bhh.astype(jnp.float32))


# ----------------------------------------------------------------------------
# Decoder GRU (teacher forcing): streamed over grid=(T,); writes the per-step
# hidden state in bf16 (halves the (T,B,H) HBM writeback).  The vocab
# projection is done afterwards as one tiled matmul.
# ----------------------------------------------------------------------------
def _gru_dec_kernel(gx_ref, h0_ref, whh_ref, bhh_ref, hs_ref, h_sc):
    t = pl.program_id(0)
    H = h_sc.shape[1]

    @pl.when(t == 0)
    def _():
        h_sc[...] = h0_ref[...]

    h = h_sc[...]
    gx = gx_ref[0].astype(jnp.float32)
    h_new = _gru_gates(gx, h, whh_ref[...], bhh_ref[...], H)
    h_sc[...] = h_new
    hs_ref[0] = h_new.astype(hs_ref.dtype)

    # TODO(synk): DecoderRNN source not provided; hidden states (and hence
    # logits) are emitted for every padded step — recons_loss ignores pad
    # targets, so this is loss-equivalent.


def gru_decoder_tf(gx_tm, h0, whh, bhh):
    T, B, G3 = gx_tm.shape
    H = G3 // 3
    return pl.pallas_call(
        _gru_dec_kernel,
        grid=(T,),
        in_specs=[pl.BlockSpec((1, B, G3), lambda t: (t, 0, 0)),
                  pl.BlockSpec((B, H), lambda t: (0, 0)),
                  pl.BlockSpec((H, G3), lambda t: (0, 0)),
                  pl.BlockSpec((1, G3), lambda t: (0, 0))],
        out_specs=pl.BlockSpec((1, B, H), lambda t: (t, 0, 0)),
        out_shape=jax.ShapeDtypeStruct((T, B, H), jnp.bfloat16),
        scratch_shapes=[pltpu.VMEM((B, H), jnp.float32)],
        compiler_params=pltpu.CompilerParams(
            dimension_semantics=("arbitrary",),
            vmem_limit_bytes=_VMEM_LIMIT),
    )(gx_tm, h0, whh.astype(jnp.bfloat16), bhh.astype(jnp.float32))


# ----------------------------------------------------------------------------
# Fused dense tail: recog head + prior head + reparametrize + latent upsample
# + bow head FIRST layer in ONE pallas_call (concats avoided via split
# weights).  The bow second matmul (BH, V) is hoisted OUT to the tiled linear
# path so a realistic vocab never has to be VMEM-resident here.
# ----------------------------------------------------------------------------
def _dense_tail_kernel(xs_ref, cs_ref, eps_ref,
                       rw1x_ref, rw1c_ref, rb1_ref, rw2_ref, rb2_ref,
                       pw1_ref, pb1_ref, pw2_ref, pb2_ref,
                       uwz_ref, uwc_ref, ub_ref,
                       bw1z_ref, bw1c_ref, bb1_ref,
                       recog_ref, prior_ref, bh_ref, h0_ref):
    f32 = jnp.float32
    xs = xs_ref[...]
    cs = cs_ref[...]
    L = eps_ref.shape[1]

    # recognition head on concat(x_state, c_state) via split first-layer weight
    rh = _leaky(jnp.dot(xs, rw1x_ref[...], preferred_element_type=f32)
                + jnp.dot(cs, rw1c_ref[...], preferred_element_type=f32)
                + rb1_ref[...])
    recog = jnp.dot(rh, rw2_ref[...], preferred_element_type=f32) + rb2_ref[...]
    recog_ref[...] = recog

    # prior head
    ph = _leaky(jnp.dot(cs, pw1_ref[...], preferred_element_type=f32) + pb1_ref[...])
    prior_ref[...] = jnp.dot(ph, pw2_ref[...], preferred_element_type=f32) + pb2_ref[...]

    # reparametrize with recog (variational=True, use_prior=False)
    mu = recog[:, :L]
    lv = recog[:, L:]
    z = mu + eps_ref[...] * jnp.exp(0.5 * lv)

    # latent upsample on concat(z, c_state) via split weights -> decoder h0
    h0_ref[...] = (jnp.dot(z, uwz_ref[...], preferred_element_type=f32)
                   + jnp.dot(cs, uwc_ref[...], preferred_element_type=f32)
                   + ub_ref[...])

    # bag-of-words head FIRST layer on concat(z, c_state) via split weights
    bh_ref[...] = _leaky(jnp.dot(z, bw1z_ref[...], preferred_element_type=f32)
                         + jnp.dot(cs, bw1c_ref[...], preferred_element_type=f32)
                         + bb1_ref[...])


def dense_tail(x_state, c_state, eps, recog_p, prior_p, up_p, bow_p, latent_dim):
    B, He = x_state.shape
    L = latent_dim
    rw1, rb1, rw2, rb2 = recog_p
    pw1, pb1, pw2, pb2 = prior_p
    uw, ub = up_p
    bw1, bb1, bw2, bb2 = bow_p
    rw1x, rw1c = rw1[:He], rw1[He:]
    uwz, uwc = uw[:L], uw[L:]
    bw1z, bw1c = bw1[:L], bw1[L:]
    Hd = uw.shape[1]
    BH = bw1.shape[1]

    args = (x_state, c_state, eps,
            rw1x, rw1c, rb1, rw2, rb2,
            pw1, pb1, pw2, pb2,
            uwz, uwc, ub,
            bw1z, bw1c, bb1)

    recog, prior, bh, dec_h0 = pl.pallas_call(
        _dense_tail_kernel,
        grid=(1,),
        in_specs=[_fs(a.shape) for a in args],
        out_specs=[_fs((B, 2 * L)), _fs((B, 2 * L)), _fs((B, BH)), _fs((B, Hd))],
        out_shape=[jax.ShapeDtypeStruct((B, 2 * L), jnp.float32),
                   jax.ShapeDtypeStruct((B, 2 * L), jnp.float32),
                   jax.ShapeDtypeStruct((B, BH), jnp.float32),
                   jax.ShapeDtypeStruct((B, Hd), jnp.float32)],
        compiler_params=pltpu.CompilerParams(
            dimension_semantics=("arbitrary",),
            vmem_limit_bytes=_VMEM_LIMIT),
    )(*args)

    # bow second matmul (BH, V) via the tiled linear path (V can be large)
    bow_logits = tiled_linear(bh, bw2, bb2)
    return recog, prior, bow_logits, dec_h0


# ----------------------------------------------------------------------------
# Parameter init (deterministic, PyTorch-like uniform(-1/sqrt(fan_in), ...))
# ----------------------------------------------------------------------------
def _uinit(key, shape, fan_in):
    bound = 1.0 / (fan_in ** 0.5)
    return jax.random.uniform(key, shape, jnp.float32, -bound, bound)


def _init_linear(key, din, dout):
    k1, k2 = jax.random.split(key)
    return _uinit(k1, (din, dout), din), _uinit(k2, (1, dout), din)


def _init_gru(key, e, h):
    # fused layouts: W_ih (E, 3H), W_hh (H, 3H), biases (1, 3H); gate order [r,z,n]
    k1, k2, k3, k4 = jax.random.split(key, 4)
    return (_uinit(k1, (e, 3 * h), h), _uinit(k2, (h, 3 * h), h),
            _uinit(k3, (1, 3 * h), h), _uinit(k4, (1, 3 * h), h))


def init_params(key, cfg):
    V, E, He, Hd = cfg["V"], cfg["E"], cfg["H_enc"], cfg["H_dec"]
    Dc, Ce, CH, HH, L, BH = cfg["Dc"], cfg["Ce"], cfg["CH"], cfg["HH"], cfg["L"], cfg["BH"]
    keys = jax.random.split(key, 16)
    p = {}
    p["enc_emb"] = jax.random.normal(keys[0], (V, E), jnp.float32) * 0.1
    p["enc_gru"] = _init_gru(keys[1], E, He)
    p["c_energy"] = (*_init_linear(keys[2], Dc, CH), *_init_linear(keys[3], CH, 1))
    p["c_down"] = _init_linear(keys[4], Dc, Ce)
    p["recog"] = (*_init_linear(keys[5], He + Ce, HH), *_init_linear(keys[6], HH, 2 * L))
    p["prior"] = (*_init_linear(keys[7], Ce, HH), *_init_linear(keys[8], HH, 2 * L))
    p["up"] = _init_linear(keys[9], L + Ce, Hd)
    p["bow"] = (*_init_linear(keys[10], L + Ce, BH), *_init_linear(keys[11], BH, V))
    p["dec_emb"] = jax.random.normal(keys[12], (V, E), jnp.float32) * 0.1
    p["dec_gru"] = _init_gru(keys[13], E, Hd)
    p["dec_out"] = _init_linear(keys[14], Hd, V)
    return p


# ----------------------------------------------------------------------------
# Full forward (tf=True, variational=True, use_prior=False, c given)
# ----------------------------------------------------------------------------
def cvae_forward(params, x, x_len, c, c_len, eps, *, latent_dim):
    B, Sx = x.shape
    wih_e, whh_e, bih_e, bhh_e = params["enc_gru"]
    He = whh_e.shape[0]

    # ---- encode_x: time-major embedding gather (id transpose only) + hoisted
    #      input-gate projection as ONE tiled (Sx*B, E) @ (E, 3H) matmul in
    #      bf16, then the streamed recurrent kernel.
    x_ids_tm = x.T.reshape(-1)                                      # (Sx*B,) time-major ids
    x_emb_tm = jnp.take(params["enc_emb"], x_ids_tm, axis=0)        # (Sx*B, E)
    gx_enc = tiled_linear(x_emb_tm, wih_e, bih_e,
                          out_dtype=jnp.bfloat16).reshape(Sx, B, 3 * He)
    t_idx = jnp.arange(Sx, dtype=jnp.int32)[:, None]
    enc_mask = (t_idx < x_len[None, :].astype(jnp.int32)).astype(jnp.float32)[:, :, None]
    x_state = gru_encoder(gx_enc, enc_mask, whh_e, bhh_e)           # (B, He)

    # ---- encode_c
    c_state, c_attn = encode_c(c, c_len, params)                    # (B, Ce), (B, Sc)

    # ---- fused dense tail (recog + prior + reparam + upsample + bow)
    recog, prior, bow_logits, dec_h0 = dense_tail(
        x_state, c_state, eps, params["recog"], params["prior"],
        params["up"], params["bow"], latent_dim)
    recog_mu, recog_log_var = recog[:, :latent_dim], recog[:, latent_dim:]
    prior_mu, prior_log_var = prior[:, :latent_dim], prior[:, latent_dim:]

    # ---- decode_tf: hoisted input-gate projection, streamed recurrent kernel
    #      writing a bf16 hidden slab, then one tiled vocab projection.
    wih_d, whh_d, bih_d, bhh_d = params["dec_gru"]
    Hd = whh_d.shape[0]
    wout, bout = params["dec_out"]
    V = wout.shape[1]
    Td = Sx - 1
    y_in = x[:, :-1]                                                # teacher forcing inputs
    y_ids_tm = y_in.T.reshape(-1)                                   # (Td*B,)
    y_emb_tm = jnp.take(params["dec_emb"], y_ids_tm, axis=0)        # (Td*B, E)
    gx_dec = tiled_linear(y_emb_tm, wih_d, bih_d,
                          out_dtype=jnp.bfloat16).reshape(Td, B, 3 * Hd)
    h_all = gru_decoder_tf(gx_dec, dec_h0, whh_d, bhh_d)            # (Td, B, Hd) bf16

    # Transpose only the SMALL bf16 hidden slab (not the logits) to batch-major,
    # so the tiled vocab matmul writes recon directly in (B, Td, V) layout.
    h_bt = jnp.transpose(h_all, (1, 0, 2)).reshape(B * Td, Hd)      # bf16
    logits = tiled_linear(h_bt, wout, bout)                         # (B*Td, V) f32
    recon = logits.reshape(B, Td, V)

    return recon, bow_logits, c_attn, recog_mu, recog_log_var, prior_mu, prior_log_var


# TODO(synk): the non-teacher-forcing autoregressive decode() path (argmax loop
# with early stopping on EOS) and sample() are host-control-flow heavy and are
# not implemented as Pallas kernels.

if __name__ == "__main__":
    cfg = dict(V=32, E=16, H_enc=32, H_dec=32, Dc=24, Ce=16, CH=32, HH=32, L=8, BH=32)
    B, Sx, Sc = 2, 8, 6

    root = jax.random.PRNGKey(0)
    kp, kx, kc, keps = jax.random.split(root, 4)
    params = init_params(kp, cfg)

    x = jax.random.randint(kx, (B, Sx), 0, cfg["V"], dtype=jnp.int32)
    x_len = jnp.array([Sx, 5], dtype=jnp.int32)
    c = jax.random.normal(kc, (B, Sc, cfg["Dc"]), jnp.float32)
    c_len = jnp.array([Sc, 4], dtype=jnp.int32)
    eps = jax.random.normal(keps, (B, cfg["L"]), jnp.float32)

    fwd = jax.jit(cvae_forward, static_argnames=("latent_dim",))
    outs = fwd(params, x, x_len, c, c_len, eps, latent_dim=cfg["L"])
    outs = jax.block_until_ready(outs)

    recon, bow_logits, c_attn, r_mu, r_lv, p_mu, p_lv = outs
    assert recon.shape == (B, Sx - 1, cfg["V"])
    assert bow_logits.shape == (B, cfg["V"])
    assert c_attn.shape == (B, Sc)
    assert r_mu.shape == r_lv.shape == p_mu.shape == p_lv.shape == (B, cfg["L"])
    assert all(jnp.isfinite(o).all() for o in outs)
    print("KERNEL_OK")
</pallas_src>

<mosaic_0001>
module attributes {stable_mosaic.version = 11 : i64} {
  func.func @_mlp_kernel(%arg0: i32, %arg1: memref<12x24xf32, #tpu.memory_space<vmem>>, %arg2: memref<24x32xf32, #tpu.memory_space<vmem>>, %arg3: memref<1x32xf32, #tpu.memory_space<vmem>>, %arg4: memref<32x1xf32, #tpu.memory_space<vmem>>, %arg5: memref<1x1xf32, #tpu.memory_space<vmem>>, %arg6: memref<12x1xf32, #tpu.memory_space<vmem>>) attributes {dimension_semantics = [#tpu.dimension_semantics<arbitrary>], iteration_bounds = array<i64: 1>, scalar_prefetch = 0 : i64, scratch_operands = 0 : i64, tpu.core_type = #tpu.core_type<tc>, window_params = [{pipeline_mode = #tpu.pipeline_mode<synchronous>, transform_indices = @transform_0, window_bounds = array<i64: 12, 24>}, {pipeline_mode = #tpu.pipeline_mode<synchronous>, transform_indices = @transform_1, window_bounds = array<i64: 24, 32>}, {pipeline_mode = #tpu.pipeline_mode<synchronous>, transform_indices = @transform_2, window_bounds = array<i64: 1, 32>}, {pipeline_mode = #tpu.pipeline_mode<synchronous>, transform_indices = @transform_3, window_bounds = array<i64: 32, 1>}, {pipeline_mode = #tpu.pipeline_mode<synchronous>, transform_indices = @transform_4, window_bounds = array<i64: 1, 1>}, {pipeline_mode = #tpu.pipeline_mode<synchronous>, transform_indices = @transform_5, window_bounds = array<i64: 12, 1>}]} {
    %c0 = arith.constant 0 : index
    %c0_0 = arith.constant 0 : index
    %0 = vector.load %arg1[%c0, %c0_0] : memref<12x24xf32, #tpu.memory_space<vmem>>, vector<12x24xf32>
    %c0_1 = arith.constant 0 : index
    %c0_2 = arith.constant 0 : index
    %1 = vector.load %arg2[%c0_1, %c0_2] : memref<24x32xf32, #tpu.memory_space<vmem>>, vector<24x32xf32>
    %cst = arith.constant dense<0.000000e+00> : vector<12x32xf32>
    %2 = tpu.matmul %0, %1, %cst {dimension_numbers = #tpu.dot_dimension_numbers<[1], [0], [0], [1], [0, 0, 1, 1], [], []>} : vector<12x24xf32>, vector<24x32xf32>, vector<12x32xf32> -> vector<12x32xf32>
    %c0_3 = arith.constant 0 : index
    %c0_4 = arith.constant 0 : index
    %3 = vector.load %arg3[%c0_3, %c0_4] : memref<1x32xf32, #tpu.memory_space<vmem>>, vector<1x32xf32>
    %4 = vector.broadcast %3 : vector<1x32xf32> to vector<12x32xf32>
    %5 = arith.addf %2, %4 : vector<12x32xf32>
    %cst_5 = arith.constant 0.000000e+00 : f32
    %6 = vector.broadcast %cst_5 : f32 to vector<12x32xf32>
    %7 = arith.cmpf oge, %5, %6 : vector<12x32xf32>
    %cst_6 = arith.constant 0.00999999977 : f32
    %8 = vector.broadcast %cst_6 : f32 to vector<12x32xf32>
    %9 = arith.mulf %8, %5 : vector<12x32xf32>
    %10 = arith.select %7, %5, %9 : vector<12x32xi1>, vector<12x32xf32>
    %c0_7 = arith.constant 0 : index
    %c0_8 = arith.constant 0 : index
    %11 = vector.load %arg4[%c0_7, %c0_8] : memref<32x1xf32, #tpu.memory_space<vmem>>, vector<32x1xf32>
    %cst_9 = arith.constant dense<0.000000e+00> : vector<12x1xf32>
    %12 = tpu.matmul %10, %11, %cst_9 {dimension_numbers = #tpu.dot_dimension_numbers<[1], [0], [0], [1], [0, 0, 1, 1], [], []>} : vector<12x32xf32>, vector<32x1xf32>, vector<12x1xf32> -> vector<12x1xf32>
    %c0_10 = arith.constant 0 : index
    %c0_11 = arith.constant 0 : index
    %13 = vector.load %arg5[%c0_10, %c0_11] : memref<1x1xf32, #tpu.memory_space<vmem>>, vector<1x1xf32>
    %14 = vector.broadcast %13 : vector<1x1xf32> to vector<12x1xf32>
    %15 = arith.addf %12, %14 : vector<12x1xf32>
    %c0_12 = arith.constant 0 : index
    %c0_13 = arith.constant 0 : index
    %16 = vector.load %arg6[%c0_12, %c0_13] : memref<12x1xf32, #tpu.memory_space<vmem>>, vector<12x1xf32>
    tpu.vector_store %arg6[%c0_12, %c0_13], %15 {strides = array<i32>} : memref<12x1xf32, #tpu.memory_space<vmem>>, vector<12x1xf32>,
    return
  }
  func.func @transform_0(%arg0: i32) -> (i32, i32) {
    %c0_i32 = arith.constant 0 : i32
    %c0_i32_0 = arith.constant 0 : i32
    %c0_i32_1 = arith.constant 0 : i32
    return %c0_i32, %c0_i32_0 : i32, i32
  }
  func.func @transform_1(%arg0: i32) -> (i32, i32) {
    %c0_i32 = arith.constant 0 : i32
    %c0_i32_0 = arith.constant 0 : i32
    %c0_i32_1 = arith.constant 0 : i32
    return %c0_i32, %c0_i32_0 : i32, i32
  }
  func.func @transform_2(%arg0: i32) -> (i32, i32) {
    %c0_i32 = arith.constant 0 : i32
    %c0_i32_0 = arith.constant 0 : i32
    %c0_i32_1 = arith.constant 0 : i32
    return %c0_i32, %c0_i32_0 : i32, i32
  }
  func.func @transform_3(%arg0: i32) -> (i32, i32) {
    %c0_i32 = arith.constant 0 : i32
    %c0_i32_0 = arith.constant 0 : i32
    %c0_i32_1 = arith.constant 0 : i32
    return %c0_i32, %c0_i32_0 : i32, i32
  }
  func.func @transform_4(%arg0: i32) -> (i32, i32) {
    %c0_i32 = arith.constant 0 : i32
    %c0_i32_0 = arith.constant 0 : i32
    %c0_i32_1 = arith.constant 0 : i32
    return %c0_i32, %c0_i32_0 : i32, i32
  }
  func.func @transform_5(%arg0: i32) -> (i32, i32) {
    %c0_i32 = arith.constant 0 : i32
    %c0_i32_0 = arith.constant 0 : i32
    %c0_i32_1 = arith.constant 0 : i32
    return %c0_i32, %c0_i32_0 : i32, i32
  }
}

module attributes {stable_mosaic.version = 11 : i64} {
  func.func @_c_attn_kernel(%arg0: i32, %arg1: memref<2x6x24xf32, #tpu.memory_space<vmem>>, %arg2: memref<2x6xf32, #tpu.memory_space<vmem>>, %arg3: memref<2x6xf32, #tpu.memory_space<vmem>>, %arg4: memref<24x16xf32, #tpu.memory_space<vmem>>, %arg5: memref<1x16xf32, #tpu.memory_space<vmem>>, %arg6: memref<2x16xf32, #tpu.memory_space<vmem>>, %arg7: memref<2x6xf32, #tpu.memory_space<vmem>>) attributes {dimension_semantics = [#tpu.dimension_semantics<arbitrary>], iteration_bounds = array<i64: 1>, scalar_prefetch = 0 : i64, scratch_operands = 0 : i64, tpu.core_type = #tpu.core_type<tc>, window_params = [{pipeline_mode = #tpu.pipeline_mode<synchronous>, transform_indices = @transform_0, window_bounds = array<i64: 2, 6, 24>}, {pipeline_mode = #tpu.pipeline_mode<synchronous>, transform_indices = @transform_1, window_bounds = array<i64: 2, 6>}, {pipeline_mode = #tpu.pipeline_mode<synchronous>, transform_indices = @transform_2, window_bounds = array<i64: 2, 6>}, {pipeline_mode = #tpu.pipeline_mode<synchronous>, transform_indices = @transform_3, window_bounds = array<i64: 24, 16>}, {pipeline_mode = #tpu.pipeline_mode<synchronous>, transform_indices = @transform_4, window_bounds = array<i64: 1, 16>}, {pipeline_mode = #tpu.pipeline_mode<synchronous>, transform_indices = @transform_5, window_bounds = array<i64: 2, 16>}, {pipeline_mode = #tpu.pipeline_mode<synchronous>, transform_indices = @transform_6, window_bounds = array<i64: 2, 6>}]} {
    %c0 = arith.constant 0 : index
    %c0_0 = arith.constant 0 : index
    %0 = vector.load %arg2[%c0, %c0_0] : memref<2x6xf32, #tpu.memory_space<vmem>>, vector<2x6xf32>
    %c0_1 = arith.constant 0 : index
    %c0_2 = arith.constant 0 : index
    %1 = vector.load %arg3[%c0_1, %c0_2] : memref<2x6xf32, #tpu.memory_space<vmem>>, vector<2x6xf32>
    %cst = arith.constant 5.000000e-01 : f32
    %2 = vector.broadcast %cst : f32 to vector<2x6xf32>
    %3 = arith.cmpf ogt, %1, %2 : vector<2x6xf32>
    %cst_3 = arith.constant -1.000000e+10 : f32
    %4 = vector.broadcast %cst_3 : f32 to vector<2x6xf32>
    %5 = arith.select %3, %0, %4 : vector<2x6xi1>, vector<2x6xf32>
    %cst_4 = arith.constant dense<0xFF800000> : vector<2xf32>
    %6 = vector.multi_reduction <maximumf>, %5, %cst_4 [1] : vector<2x6xf32> to vector<2xf32>
    %7 = vector.shape_cast %6 : vector<2xf32> to vector<2x1xf32>
    %8 = vector.broadcast %7 : vector<2x1xf32> to vector<2x6xf32>
    %9 = arith.subf %5, %8 : vector<2x6xf32>
    %10 = math.exp %9 : vector<2x6xf32>
    %cst_5 = arith.constant dense<0.000000e+00> : vector<2xf32>
    %11 = vector.multi_reduction <add>, %10, %cst_5 [1] : vector<2x6xf32> to vector<2xf32>
    %12 = vector.shape_cast %11 : vector<2xf32> to vector<2x1xf32>
    %13 = vector.broadcast %12 : vector<2x1xf32> to vector<2x6xf32>
    %14 = arith.divf %10, %13 : vector<2x6xf32>
    %c0_6 = arith.constant 0 : index
    %c0_7 = arith.constant 0 : index
    %15 = vector.load %arg7[%c0_6, %c0_7] : memref<2x6xf32, #tpu.memory_space<vmem>>, vector<2x6xf32>
    tpu.vector_store %arg7[%c0_6, %c0_7], %14 {strides = array<i32>} : memref<2x6xf32, #tpu.memory_space<vmem>>, vector<2x6xf32>,
    %16 = vector.shape_cast %14 : vector<2x6xf32> to vector<2x6x1xf32>
    %c0_8 = arith.constant 0 : index
    %c0_9 = arith.constant 0 : index
    %c0_10 = arith.constant 0 : index
    %17 = vector.load %arg1[%c0_8, %c0_9, %c0_10] : memref<2x6x24xf32, #tpu.memory_space<vmem>>, vector<2x6x24xf32>
    %18 = vector.broadcast %16 : vector<2x6x1xf32> to vector<2x6x24xf32>
    %19 = arith.mulf %18, %17 : vector<2x6x24xf32>
    %cst_11 = arith.constant dense<0.000000e+00> : vector<2x24xf32>
    %20 = vector.multi_reduction <add>, %19, %cst_11 [1] : vector<2x6x24xf32> to vector<2x24xf32>
    %c0_12 = arith.constant 0 : index
    %c0_13 = arith.constant 0 : index
    %21 = vector.load %arg4[%c0_12, %c0_13] : memref<24x16xf32, #tpu.memory_space<vmem>>, vector<24x16xf32>
    %cst_14 = arith.constant dense<0.000000e+00> : vector<2x16xf32>
    %22 = tpu.matmul %20, %21, %cst_14 {dimension_numbers = #tpu.dot_dimension_numbers<[1], [0], [0], [1], [0, 0, 1, 1], [], []>} : vector<2x24xf32>, vector<24x16xf32>, vector<2x16xf32> -> vector<2x16xf32>
    %c0_15 = arith.constant 0 : index
    %c0_16 = arith.constant 0 : index
    %23 = vector.load %arg5[%c0_15, %c0_16] : memref<1x16xf32, #tpu.memory_space<vmem>>, vector<1x16xf32>
    %24 = vector.broadcast %23 : vector<1x16xf32> to vector<2x16xf32>
    %25 = arith.addf %22, %24 : vector<2x16xf32>
    %c0_17 = arith.constant 0 : index
    %c0_18 = arith.constant 0 : index
    %26 = vector.load %arg6[%c0_17, %c0_18] : memref<2x16xf32, #tpu.memory_space<vmem>>, vector<2x16xf32>
    tpu.vector_store %arg6[%c0_17, %c0_18], %25 {strides = array<i32>} : memref<2x16xf32, #tpu.memory_space<vmem>>, vector<2x16xf32>,
    return
  }
  func.func @transform_0(%arg0: i32) -> (i32, i32, i32) {
    %c0_i32 = arith.constant 0 : i32
    %c0_i32_0 = arith.constant 0 : i32
    %c0_i32_1 = arith.constant 0 : i32
    %c0_i32_2 = arith.constant 0 : i32
    return %c0_i32, %c0_i32_0, %c0_i32_1 : i32, i32, i32
  }
  func.func @transform_1(%arg0: i32) -> (i32, i32) {
    %c0_i32 = arith.constant 0 : i32
    %c0_i32_0 = arith.constant 0 : i32
    %c0_i32_1 = arith.constant 0 : i32
    return %c0_i32, %c0_i32_0 : i32, i32
  }
  func.func @transform_2(%arg0: i32) -> (i32, i32) {
    %c0_i32 = arith.constant 0 : i32
    %c0_i32_0 = arith.constant 0 : i32
    %c0_i32_1 = arith.constant 0 : i32
    return %c0_i32, %c0_i32_0 : i32, i32
  }
  func.func @transform_3(%arg0: i32) -> (i32, i32) {
    %c0_i32 = arith.constant 0 : i32
    %c0_i32_0 = arith.constant 0 : i32
    %c0_i32_1 = arith.constant 0 : i32
    return %c0_i32, %c0_i32_0 : i32, i32
  }
  func.func @transform_4(%arg0: i32) -> (i32, i32) {
    %c0_i32 = arith.constant 0 : i32
    %c0_i32_0 = arith.constant 0 : i32
    %c0_i32_1 = arith.constant 0 : i32
    return %c0_i32, %c0_i32_0 : i32, i32
  }
  func.func @transform_5(%arg0: i32) -> (i32, i32) {
    %c0_i32 = arith.constant 0 : i32
    %c0_i32_0 = arith.constant 0 : i32
    %c0_i32_1 = arith.constant 0 : i32
    return %c0_i32, %c0_i32_0 : i32, i32
  }
  func.func @transform_6(%arg0: i32) -> (i32, i32) {
    %c0_i32 = arith.constant 0 : i32
    %c0_i32_0 = arith.constant 0 : i32
    %c0_i32_1 = arith.constant 0 : i32
    return %c0_i32, %c0_i32_0 : i32, i32
  }
}

module attributes {stable_mosaic.version = 11 : i64} {
  func.func @_linear_kernel(%arg0: i32, %arg1: i32, %arg2: memref<16x16xbf16, #tpu.memory_space<vmem>>, %arg3: memref<16x96xbf16, #tpu.memory_space<vmem>>, %arg4: memref<1x96xf32, #tpu.memory_space<vmem>>, %arg5: memref<16x96xbf16, #tpu.memory_space<vmem>>) attributes {dimension_semantics = [#tpu.dimension_semantics<parallel>, #tpu.dimension_semantics<parallel>], iteration_bounds = array<i64: 1, 1>, scalar_prefetch = 0 : i64, scratch_operands = 0 : i64, tpu.core_type = #tpu.core_type<tc>, window_params = [{transform_indices = @transform_0, window_bounds = array<i64: 16, 16>}, {transform_indices = @transform_1, window_bounds = array<i64: 16, 96>}, {transform_indices = @transform_2, window_bounds = array<i64: 1, 96>}, {transform_indices = @transform_3, window_bounds = array<i64: 16, 96>}]} {
    %c0 = arith.constant 0 : index
    %c0_0 = arith.constant 0 : index
    %0 = vector.load %arg2[%c0, %c0_0] : memref<16x16xbf16, #tpu.memory_space<vmem>>, vector<16x16xbf16>
    %c0_1 = arith.constant 0 : index
    %c0_2 = arith.constant 0 : index
    %1 = vector.load %arg3[%c0_1, %c0_2] : memref<16x96xbf16, #tpu.memory_space<vmem>>, vector<16x96xbf16>
    %cst = arith.constant dense<0.000000e+00> : vector<16x96xf32>
    %2 = tpu.matmul %0, %1, %cst {dimension_numbers = #tpu.dot_dimension_numbers<[1], [0], [0], [1], [0, 0, 1, 1], [], []>} : vector<16x16xbf16>, vector<16x96xbf16>, vector<16x96xf32> -> vector<16x96xf32>
    %c0_3 = arith.constant 0 : index
    %c0_4 = arith.constant 0 : index
    %3 = vector.load %arg4[%c0_3, %c0_4] : memref<1x96xf32, #tpu.memory_space<vmem>>, vector<1x96xf32>
    %4 = vector.broadcast %3 : vector<1x96xf32> to vector<16x96xf32>
    %5 = arith.addf %2, %4 : vector<16x96xf32>
    %6 = arith.truncf %5 : vector<16x96xf32> to vector<16x96xbf16>
    %c0_5 = arith.constant 0 : index
    %c0_6 = arith.constant 0 : index
    %7 = vector.load %arg5[%c0_5, %c0_6] : memref<16x96xbf16, #tpu.memory_space<vmem>>, vector<16x96xbf16>
    tpu.vector_store %arg5[%c0_5, %c0_6], %6 {strides = array<i32>} : memref<16x96xbf16, #tpu.memory_space<vmem>>, vector<16x96xbf16>,
    return
  }
  func.func @transform_0(%arg0: i32, %arg1: i32) -> (i32, i32) {
    %c0_i32 = arith.constant 0 : i32
    %c0_i32_0 = arith.constant 0 : i32
    return %arg0, %c0_i32 : i32, i32
  }
  func.func @transform_1(%arg0: i32, %arg1: i32) -> (i32, i32) {
    %c0_i32 = arith.constant 0 : i32
    %c0_i32_0 = arith.constant 0 : i32
    return %c0_i32, %arg1 : i32, i32
  }
  func.func @transform_2(%arg0: i32, %arg1: i32) -> (i32, i32) {
    %c0_i32 = arith.constant 0 : i32
    %c0_i32_0 = arith.constant 0 : i32
    return %c0_i32, %arg1 : i32, i32
  }
  func.func @transform_3(%arg0: i32, %arg1: i32) -> (i32, i32) {
    %c0_i32 = arith.constant 0 : i32
    return %arg0, %arg1 : i32, i32
  }
}

module attributes {stable_mosaic.version = 11 : i64} {
  func.func @_gru_enc_kernel(%arg0: i32, %arg1: memref<1x2x96xbf16, #tpu.memory_space<vmem>>, %arg2: memref<1x2x1xf32, #tpu.memory_space<vmem>>, %arg3: memref<32x96xbf16, #tpu.memory_space<vmem>>, %arg4: memref<1x96xf32, #tpu.memory_space<vmem>>, %arg5: memref<2x32xf32, #tpu.memory_space<vmem>>, %arg6: memref<2x32xf32, #tpu.memory_space<vmem>>) attributes {dimension_semantics = [#tpu.dimension_semantics<arbitrary>], iteration_bounds = array<i64: 8>, scalar_prefetch = 0 : i64, scratch_operands = 1 : i64, tpu.core_type = #tpu.core_type<tc>, window_params = [{transform_indices = @transform_0, window_bounds = array<i64: 1, 2, 96>}, {transform_indices = @transform_1, window_bounds = array<i64: 1, 2, 1>}, {pipeline_mode = #tpu.pipeline_mode<synchronous>, transform_indices = @transform_2, window_bounds = array<i64: 32, 96>}, {pipeline_mode = #tpu.pipeline_mode<synchronous>, transform_indices = @transform_3, window_bounds = array<i64: 1, 96>}, {pipeline_mode = #tpu.pipeline_mode<synchronous>, transform_indices = @transform_4, window_bounds = array<i64: 2, 32>}]} {
    %c0_i32 = arith.constant 0 : i32
    %0 = arith.cmpi eq, %arg0, %c0_i32 : i32
    %1 = arith.extui %0 : i1 to i32
    %c0_i32_0 = arith.constant 0 : i32
    %2 = arith.cmpi ne, %1, %c0_i32_0 : i32
    scf.if %2 {
      %cst_19 = arith.constant 0.000000e+00 : f32
      %52 = vector.broadcast %cst_19 : f32 to vector<2x32xf32>
      %c0_20 = arith.constant 0 : index
      %c0_21 = arith.constant 0 : index
      %53 = vector.load %arg6[%c0_20, %c0_21] : memref<2x32xf32, #tpu.memory_space<vmem>>, vector<2x32xf32>
      tpu.vector_store %arg6[%c0_20, %c0_21], %52 {strides = array<i32>} : memref<2x32xf32, #tpu.memory_space<vmem>>, vector<2x32xf32>,
    } else {
    }
    %c0 = arith.constant 0 : index
    %c0_1 = arith.constant 0 : index
    %3 = vector.load %arg6[%c0, %c0_1] : memref<2x32xf32, #tpu.memory_space<vmem>>, vector<2x32xf32>
    %c0_2 = arith.constant 0 : index
    %c0_3 = arith.constant 0 : index
    %c0_4 = arith.constant 0 : index
    %4 = vector.load %arg1[%c0_2, %c0_3, %c0_4] : memref<1x2x96xbf16, #tpu.memory_space<vmem>>, vector<1x2x96xbf16>
    %5 = vector.shape_cast %4 : vector<1x2x96xbf16> to vector<2x96xbf16>
    %6 = arith.extf %5 : vector<2x96xbf16> to vector<2x96xf32>
    %c0_5 = arith.constant 0 : index
    %c0_6 = arith.constant 0 : index
    %7 = vector.load %arg3[%c0_5, %c0_6] : memref<32x96xbf16, #tpu.memory_space<vmem>>, vector<32x96xbf16>
    %c0_7 = arith.constant 0 : index
    %c0_8 = arith.constant 0 : index
    %8 = vector.load %arg4[%c0_7, %c0_8] : memref<1x96xf32, #tpu.memory_space<vmem>>, vector<1x96xf32>
    %9 = arith.truncf %3 : vector<2x32xf32> to vector<2x32xbf16>
    %cst = arith.constant dense<0.000000e+00> : vector<2x96xf32>
    %10 = tpu.matmul %9, %7, %cst {dimension_numbers = #tpu.dot_dimension_numbers<[1], [0], [0], [1], [0, 0, 1, 1], [], []>} : vector<2x32xbf16>, vector<32x96xbf16>, vector<2x96xf32> -> vector<2x96xf32>
    %11 = vector.broadcast %8 : vector<1x96xf32> to vector<2x96xf32>
    %12 = arith.addf %10, %11 : vector<2x96xf32>
    %13 = vector.extract_strided_slice %6 {offsets = [0, 0], sizes = [2, 32], strides = [1, 1]} : vector<2x96xf32> to vector<2x32xf32>
    %14 = vector.extract_strided_slice %12 {offsets = [0, 0], sizes = [2, 32], strides = [1, 1]} : vector<2x96xf32> to vector<2x32xf32>
    %15 = arith.addf %13, %14 : vector<2x32xf32>
    %16 = arith.negf %15 : vector<2x32xf32>
    %17 = math.exp %16 : vector<2x32xf32>
    %cst_9 = arith.constant 1.000000e+00 : f32
    %18 = vector.broadcast %cst_9 : f32 to vector<2x32xf32>
    %19 = arith.addf %18, %17 : vector<2x32xf32>
    %20 = arith.divf %18, %19 : vector<2x32xf32>
    %21 = vector.extract_strided_slice %6 {offsets = [0, 32], sizes = [2, 32], strides = [1, 1]} : vector<2x96xf32> to vector<2x32xf32>
    %22 = vector.extract_strided_slice %12 {offsets = [0, 32], sizes = [2, 32], strides = [1, 1]} : vector<2x96xf32> to vector<2x32xf32>
    %23 = arith.addf %21, %22 : vector<2x32xf32>
    %24 = arith.negf %23 : vector<2x32xf32>
    %25 = math.exp %24 : vector<2x32xf32>
    %cst_10 = arith.constant 1.000000e+00 : f32
    %26 = vector.broadcast %cst_10 : f32 to vector<2x32xf32>
    %27 = arith.addf %26, %25 : vector<2x32xf32>
    %28 = arith.divf %26, %27 : vector<2x32xf32>
    %29 = vector.extract_strided_slice %6 {offsets = [0, 64], sizes = [2, 32], strides = [1, 1]} : vector<2x96xf32> to vector<2x32xf32>
    %30 = vector.extract_strided_slice %12 {offsets = [0, 64], sizes = [2, 32], strides = [1, 1]} : vector<2x96xf32> to vector<2x32xf32>
    %31 = arith.mulf %20, %30 : vector<2x32xf32>
    %32 = arith.addf %29, %31 : vector<2x32xf32>
    %33 = math.tanh %32 : vector<2x32xf32>
    %cst_11 = arith.constant 1.000000e+00 : f32
    %34 = vector.broadcast %cst_11 : f32 to vector<2x32xf32>
    %35 = arith.subf %34, %28 : vector<2x32xf32>
    %36 = arith.mulf %35, %33 : vector<2x32xf32>
    %37 = arith.mulf %28, %3 : vector<2x32xf32>
    %38 = arith.addf %36, %37 : vector<2x32xf32>
    %c0_12 = arith.constant 0 : index
    %c0_13 = arith.constant 0 : index
    %c0_14 = arith.constant 0 : index
    %39 = vector.load %arg2[%c0_12, %c0_13, %c0_14] : memref<1x2x1xf32, #tpu.memory_space<vmem>>, vector<1x2x1xf32>
    %40 = vector.shape_cast %39 : vector<1x2x1xf32> to vector<2x1xf32>
    %41 = vector.broadcast %40 : vector<2x1xf32> to vector<2x32xf32>
    %42 = arith.mulf %41, %38 : vector<2x32xf32>
    %cst_15 = arith.constant 1.000000e+00 : f32
    %43 = vector.broadcast %cst_15 : f32 to vector<2x1xf32>
    %44 = arith.subf %43, %40 : vector<2x1xf32>
    %45 = vector.broadcast %44 : vector<2x1xf32> to vector<2x32xf32>
    %46 = arith.mulf %45, %3 : vector<2x32xf32>
    %47 = arith.addf %42, %46 : vector<2x32xf32>
    %c0_16 = arith.constant 0 : index
    %c0_17 = arith.constant 0 : index
    %48 = vector.load %arg6[%c0_16, %c0_17] : memref<2x32xf32, #tpu.memory_space<vmem>>, vector<2x32xf32>
    tpu.vector_store %arg6[%c0_16, %c0_17], %47 {strides = array<i32>} : memref<2x32xf32, #tpu.memory_space<vmem>>, vector<2x32xf32>,
    %c7_i32 = arith.constant 7 : i32
    %49 = arith.cmpi eq, %arg0, %c7_i32 : i32
    %50 = arith.extui %49 : i1 to i32
    %c0_i32_18 = arith.constant 0 : i32
    %51 = arith.cmpi ne, %50, %c0_i32_18 : i32
    scf.if %51 {
      %c0_19 = arith.constant 0 : index
      %c0_20 = arith.constant 0 : index
      %52 = vector.load %arg6[%c0_19, %c0_20] : memref<2x32xf32, #tpu.memory_space<vmem>>, vector<2x32xf32>
      %c0_21 = arith.constant 0 : index
      %c0_22 = arith.constant 0 : index
      %53 = vector.load %arg5[%c0_21, %c0_22] : memref<2x32xf32, #tpu.memory_space<vmem>>, vector<2x32xf32>
      tpu.vector_store %arg5[%c0_21, %c0_22], %52 {strides = array<i32>} : memref<2x32xf32, #tpu.memory_space<vmem>>, vector<2x32xf32>,
    } else {
    }
    return
  }
  func.func @transform_0(%arg0: i32) -> (i32, i32, i32) {
    %c0_i32 = arith.constant 0 : i32
    %c0_i32_0 = arith.constant 0 : i32
    %c0_i32_1 = arith.constant 0 : i32
    return %arg0, %c0_i32, %c0_i32_0 : i32, i32, i32
  }
  func.func @transform_1(%arg0: i32) -> (i32, i32, i32) {
    %c0_i32 = arith.constant 0 : i32
    %c0_i32_0 = arith.constant 0 : i32
    %c0_i32_1 = arith.constant 0 : i32
    return %arg0, %c0_i32, %c0_i32_0 : i32, i32, i32
  }
  func.func @transform_2(%arg0: i32) -> (i32, i32) {
    %c0_i32 = arith.constant 0 : i32
    %c0_i32_0 = arith.constant 0 : i32
    %c0_i32_1 = arith.constant 0 : i32
    return %c0_i32, %c0_i32_0 : i32, i32
  }
  func.func @transform_3(%arg0: i32) -> (i32, i32) {
    %c0_i32 = arith.constant 0 : i32
    %c0_i32_0 = arith.constant 0 : i32
    %c0_i32_1 = arith.constant 0 : i32
    return %c0_i32, %c0_i32_0 : i32, i32
  }
  func.func @transform_4(%arg0: i32) -> (i32, i32) {
    %c0_i32 = arith.constant 0 : i32
    %c0_i32_0 = arith.constant 0 : i32
    %c0_i32_1 = arith.constant 0 : i32
    return %c0_i32, %c0_i32_0 : i32, i32
  }
}

module attributes {stable_mosaic.version = 11 : i64} {
  func.func @_dense_tail_kernel(%arg0: i32, %arg1: memref<2x32xf32, #tpu.memory_space<vmem>>, %arg2: memref<2x16xf32, #tpu.memory_space<vmem>>, %arg3: memref<2x8xf32, #tpu.memory_space<vmem>>, %arg4: memref<32x32xf32, #tpu.memory_space<vmem>>, %arg5: memref<16x32xf32, #tpu.memory_space<vmem>>, %arg6: memref<1x32xf32, #tpu.memory_space<vmem>>, %arg7: memref<32x16xf32, #tpu.memory_space<vmem>>, %arg8: memref<1x16xf32, #tpu.memory_space<vmem>>, %arg9: memref<16x32xf32, #tpu.memory_space<vmem>>, %arg10: memref<1x32xf32, #tpu.memory_space<vmem>>, %arg11: memref<32x16xf32, #tpu.memory_space<vmem>>, %arg12: memref<1x16xf32, #tpu.memory_space<vmem>>, %arg13: memref<8x32xf32, #tpu.memory_space<vmem>>, %arg14: memref<16x32xf32, #tpu.memory_space<vmem>>, %arg15: memref<1x32xf32, #tpu.memory_space<vmem>>, %arg16: memref<8x32xf32, #tpu.memory_space<vmem>>, %arg17: memref<16x32xf32, #tpu.memory_space<vmem>>, %arg18: memref<1x32xf32, #tpu.memory_space<vmem>>, %arg19: memref<2x16xf32, #tpu.memory_space<vmem>>, %arg20: memref<2x16xf32, #tpu.memory_space<vmem>>, %arg21: memref<2x32xf32, #tpu.memory_space<vmem>>, %arg22: memref<2x32xf32, #tpu.memory_space<vmem>>) attributes {dimension_semantics = [#tpu.dimension_semantics<arbitrary>], iteration_bounds = array<i64: 1>, scalar_prefetch = 0 : i64, scratch_operands = 0 : i64, tpu.core_type = #tpu.core_type<tc>, window_params = [{pipeline_mode = #tpu.pipeline_mode<synchronous>, transform_indices = @transform_0, window_bounds = array<i64: 2, 32>}, {pipeline_mode = #tpu.pipeline_mode<synchronous>, transform_indices = @transform_1, window_bounds = array<i64: 2, 16>}, {pipeline_mode = #tpu.pipeline_mode<synchronous>, transform_indices = @transform_2, window_bounds = array<i64: 2, 8>}, {pipeline_mode = #tpu.pipeline_mode<synchronous>, transform_indices = @transform_3, window_bounds = array<i64: 32, 32>}, {pipeline_mode = #tpu.pipeline_mode<synchronous>, transform_indices = @transform_4, window_bounds = array<i64: 16, 32>}, {pipeline_mode = #tpu.pipeline_mode<synchronous>, transform_indices = @transform_5, window_bounds = array<i64: 1, 32>}, {pipeline_mode = #tpu.pipeline_mode<synchronous>, transform_indices = @transform_6, window_bounds = array<i64: 32, 16>}, {pipeline_mode = #tpu.pipeline_mode<synchronous>, transform_indices = @transform_7, window_bounds = array<i64: 1, 16>}, {pipeline_mode = #tpu.pipeline_mode<synchronous>, transform_indices = @transform_8, window_bounds = array<i64: 16, 32>}, {pipeline_mode = #tpu.pipeline_mode<synchronous>, transform_indices = @transform_9, window_bounds = array<i64: 1, 32>}, {pipeline_mode = #tpu.pipeline_mode<synchronous>, transform_indices = @transform_10, window_bounds = array<i64: 32, 16>}, {pipeline_mode = #tpu.pipeline_mode<synchronous>, transform_indices = @transform_11, window_bounds = array<i64: 1, 16>}, {pipeline_mode = #tpu.pipeline_mode<synchronous>, transform_indices = @transform_12, window_bounds = array<i64: 8, 32>}, {pipeline_mode = #tpu.pipeline_mode<synchronous>, transform_indices = @transform_13, window_bounds = array<i64: 16, 32>}, {pipeline_mode = #tpu.pipeline_mode<synchronous>, transform_indices = @transform_14, window_bounds = array<i64: 1, 32>}, {pipeline_mode = #tpu.pipeline_mode<synchronous>, transform_indices = @transform_15, window_bounds = array<i64: 8, 32>}, {pipeline_mode = #tpu.pipeline_mode<synchronous>, transform_indices = @transform_16, window_bounds = array<i64: 16, 32>}, {pipeline_mode = #tpu.pipeline_mode<synchronous>, transform_indices = @transform_17, window_bounds = array<i64: 1, 32>}, {pipeline_mode = #tpu.pipeline_mode<synchronous>, transform_indices = @transform_18, window_bounds = array<i64: 2, 16>}, {pipeline_mode = #tpu.pipeline_mode<synchronous>, transform_indices = @transform_19, window_bounds = array<i64: 2, 16>}, {pipeline_mode = #tpu.pipeline_mode<synchronous>, transform_indices = @transform_20, window_bounds = array<i64: 2, 32>}, {pipeline_mode = #tpu.pipeline_mode<synchronous>, transform_indices = @transform_21, window_bounds = array<i64: 2, 32>}]} {
    %c0 = arith.constant 0 : index
    %c0_0 = arith.constant 0 : index
    %0 = vector.load %arg1[%c0, %c0_0] : memref<2x32xf32, #tpu.memory_space<vmem>>, vector<2x32xf32>
    %c0_1 = arith.constant 0 : index
    %c0_2 = arith.constant 0 : index
    %1 = vector.load %arg2[%c0_1, %c0_2] : memref<2x16xf32, #tpu.memory_space<vmem>>, vector<2x16xf32>
    %c0_3 = arith.constant 0 : index
    %c0_4 = arith.constant 0 : index
    %2 = vector.load %arg4[%c0_3, %c0_4] : memref<32x32xf32, #tpu.memory_space<vmem>>, vector<32x32xf32>
    %cst = arith.constant dense<0.000000e+00> : vector<2x32xf32>
    %3 = tpu.matmul %0, %2, %cst {dimension_numbers = #tpu.dot_dimension_numbers<[1], [0], [0], [1], [0, 0, 1, 1], [], []>} : vector<2x32xf32>, vector<32x32xf32>, vector<2x32xf32> -> vector<2x32xf32>
    %c0_5 = arith.constant 0 : index
    %c0_6 = arith.constant 0 : index
    %4 = vector.load %arg5[%c0_5, %c0_6] : memref<16x32xf32, #tpu.memory_space<vmem>>, vector<16x32xf32>
    %cst_7 = arith.constant dense<0.000000e+00> : vector<2x32xf32>
    %5 = tpu.matmul %1, %4, %cst_7 {dimension_numbers = #tpu.dot_dimension_numbers<[1], [0], [0], [1], [0, 0, 1, 1], [], []>} : vector<2x16xf32>, vector<16x32xf32>, vector<2x32xf32> -> vector<2x32xf32>
    %6 = arith.addf %3, %5 : vector<2x32xf32>
    %c0_8 = arith.constant 0 : index
    %c0_9 = arith.constant 0 : index
    %7 = vector.load %arg6[%c0_8, %c0_9] : memref<1x32xf32, #tpu.memory_space<vmem>>, vector<1x32xf32>
    %8 = vector.broadcast %7 : vector<1x32xf32> to vector<2x32xf32>
    %9 = arith.addf %6, %8 : vector<2x32xf32>
    %cst_10 = arith.constant 0.000000e+00 : f32
    %10 = vector.broadcast %cst_10 : f32 to vector<2x32xf32>
    %11 = arith.cmpf oge, %9, %10 : vector<2x32xf32>
    %cst_11 = arith.constant 0.00999999977 : f32
    %12 = vector.broadcast %cst_11 : f32 to vector<2x32xf32>
    %13 = arith.mulf %12, %9 : vector<2x32xf32>
    %14 = arith.select %11, %9, %13 : vector<2x32xi1>, vector<2x32xf32>
    %c0_12 = arith.constant 0 : index
    %c0_13 = arith.constant 0 : index
    %15 = vector.load %arg7[%c0_12, %c0_13] : memref<32x16xf32, #tpu.memory_space<vmem>>, vector<32x16xf32>
    %cst_14 = arith.constant dense<0.000000e+00> : vector<2x16xf32>
    %16 = tpu.matmul %14, %15, %cst_14 {dimension_numbers = #tpu.dot_dimension_numbers<[1], [0], [0], [1], [0, 0, 1, 1], [], []>} : vector<2x32xf32>, vector<32x16xf32>, vector<2x16xf32> -> vector<2x16xf32>
    %c0_15 = arith.constant 0 : index
    %c0_16 = arith.constant 0 : index
    %17 = vector.load %arg8[%c0_15, %c0_16] : memref<1x16xf32, #tpu.memory_space<vmem>>, vector<1x16xf32>
    %18 = vector.broadcast %17 : vector<1x16xf32> to vector<2x16xf32>
    %19 = arith.addf %16, %18 : vector<2x16xf32>
    %c0_17 = arith.constant 0 : index
    %c0_18 = arith.constant 0 : index
    %20 = vector.load %arg19[%c0_17, %c0_18] : memref<2x16xf32, #tpu.memory_space<vmem>>, vector<2x16xf32>
    tpu.vector_store %arg19[%c0_17, %c0_18], %19 {strides = array<i32>} : memref<2x16xf32, #tpu.memory_space<vmem>>, vector<2x16xf32>,
    %c0_19 = arith.constant 0 : index
    %c0_20 = arith.constant 0 : index
    %21 = vector.load %arg9[%c0_19, %c0_20] : memref<16x32xf32, #tpu.memory_space<vmem>>, vector<16x32xf32>
    %cst_21 = arith.constant dense<0.000000e+00> : vector<2x32xf32>
    %22 = tpu.matmul %1, %21, %cst_21 {dimension_numbers = #tpu.dot_dimension_numbers<[1], [0], [0], [1], [0, 0, 1, 1], [], []>} : vector<2x16xf32>, vector<16x32xf32>, vector<2x32xf32> -> vector<2x32xf32>
    %c0_22 = arith.constant 0 : index
    %c0_23 = arith.constant 0 : index
    %23 = vector.load %arg10[%c0_22, %c0_23] : memref<1x32xf32, #tpu.memory_space<vmem>>, vector<1x32xf32>
    %24 = vector.broadcast %23 : vector<1x32xf32> to vector<2x32xf32>
    %25 = arith.addf %22, %24 : vector<2x32xf32>
    %cst_24 = arith.constant 0.000000e+00 : f32
    %26 = vector.broadcast %cst_24 : f32 to vector<2x32xf32>
    %27 = arith.cmpf oge, %25, %26 : vector<2x32xf32>
    %cst_25 = arith.constant 0.00999999977 : f32
    %28 = vector.broadcast %cst_25 : f32 to vector<2x32xf32>
    %29 = arith.mulf %28, %25 : vector<2x32xf32>
    %30 = arith.select %27, %25, %29 : vector<2x32xi1>, vector<2x32xf32>
    %c0_26 = arith.constant 0 : index
    %c0_27 = arith.constant 0 : index
    %31 = vector.load %arg11[%c0_26, %c0_27] : memref<32x16xf32, #tpu.memory_space<vmem>>, vector<32x16xf32>
    %cst_28 = arith.constant dense<0.000000e+00> : vector<2x16xf32>
    %32 = tpu.matmul %30, %31, %cst_28 {dimension_numbers = #tpu.dot_dimension_numbers<[1], [0], [0], [1], [0, 0, 1, 1], [], []>} : vector<2x32xf32>, vector<32x16xf32>, vector<2x16xf32> -> vector<2x16xf32>
    %c0_29 = arith.constant 0 : index
    %c0_30 = arith.constant 0 : index
    %33 = vector.load %arg12[%c0_29, %c0_30] : memref<1x16xf32, #tpu.memory_space<vmem>>, vector<1x16xf32>
    %34 = vector.broadcast %33 : vector<1x16xf32> to vector<2x16xf32>
    %35 = arith.addf %32, %34 : vector<2x16xf32>
    %c0_31 = arith.constant 0 : index
    %c0_32 = arith.constant 0 : index
    %36 = vector.load %arg20[%c0_31, %c0_32] : memref<2x16xf32, #tpu.memory_space<vmem>>, vector<2x16xf32>
    tpu.vector_store %arg20[%c0_31, %c0_32], %35 {strides = array<i32>} : memref<2x16xf32, #tpu.memory_space<vmem>>, vector<2x16xf32>,
    %37 = vector.extract_strided_slice %19 {offsets = [0, 0], sizes = [2, 8], strides = [1, 1]} : vector<2x16xf32> to vector<2x8xf32>
    %38 = vector.extract_strided_slice %19 {offsets = [0, 8], sizes = [2, 8], strides = [1, 1]} : vector<2x16xf32> to vector<2x8xf32>
    %c0_33 = arith.constant 0 : index
    %c0_34 = arith.constant 0 : index
    %39 = vector.load %arg3[%c0_33, %c0_34] : memref<2x8xf32, #tpu.memory_space<vmem>>, vector<2x8xf32>
    %cst_35 = arith.constant 5.000000e-01 : f32
    %40 = vector.broadcast %cst_35 : f32 to vector<2x8xf32>
    %41 = arith.mulf %40, %38 : vector<2x8xf32>
    %42 = math.exp %41 : vector<2x8xf32>
    %43 = arith.mulf %39, %42 : vector<2x8xf32>
    %44 = arith.addf %37, %43 : vector<2x8xf32>
    %c0_36 = arith.constant 0 : index
    %c0_37 = arith.constant 0 : index
    %45 = vector.load %arg13[%c0_36, %c0_37] : memref<8x32xf32, #tpu.memory_space<vmem>>, vector<8x32xf32>
    %cst_38 = arith.constant dense<0.000000e+00> : vector<2x32xf32>
    %46 = tpu.matmul %44, %45, %cst_38 {dimension_numbers = #tpu.dot_dimension_numbers<[1], [0], [0], [1], [0, 0, 1, 1], [], []>} : vector<2x8xf32>, vector<8x32xf32>, vector<2x32xf32> -> vector<2x32xf32>
    %c0_39 = arith.constant 0 : index
    %c0_40 = arith.constant 0 : index
    %47 = vector.load %arg14[%c0_39, %c0_40] : memref<16x32xf32, #tpu.memory_space<vmem>>, vector<16x32xf32>
    %cst_41 = arith.constant dense<0.000000e+00> : vector<2x32xf32>
    %48 = tpu.matmul %1, %47, %cst_41 {dimension_numbers = #tpu.dot_dimension_numbers<[1], [0], [0], [1], [0, 0, 1, 1], [], []>} : vector<2x16xf32>, vector<16x32xf32>, vector<2x32xf32> -> vector<2x32xf32>
    %49 = arith.addf %46, %48 : vector<2x32xf32>
    %c0_42 = arith.constant 0 : index
    %c0_43 = arith.constant 0 : index
    %50 = vector.load %arg15[%c0_42, %c0_43] : memref<1x32xf32, #tpu.memory_space<vmem>>, vector<1x32xf32>
    %51 = vector.broadcast %50 : vector<1x32xf32> to vector<2x32xf32>
    %52 = arith.addf %49, %51 : vector<2x32xf32>
    %c0_44 = arith.constant 0 : index
    %c0_45 = arith.constant 0 : index
    %53 = vector.load %arg22[%c0_44, %c0_45] : memref<2x32xf32, #tpu.memory_space<vmem>>, vector<2x32xf32>
    tpu.vector_store %arg22[%c0_44, %c0_45], %52 {strides = array<i32>} : memref<2x32xf32, #tpu.memory_space<vmem>>, vector<2x32xf32>,
    %c0_46 = arith.constant 0 : index
    %c0_47 = arith.constant 0 : index
    %54 = vector.load %arg16[%c0_46, %c0_47] : memref<8x32xf32, #tpu.memory_space<vmem>>, vector<8x32xf32>
    %cst_48 = arith.constant dense<0.000000e+00> : vector<2x32xf32>
    %55 = tpu.matmul %44, %54, %cst_48 {dimension_numbers = #tpu.dot_dimension_numbers<[1], [0], [0], [1], [0, 0, 1, 1], [], []>} : vector<2x8xf32>, vector<8x32xf32>, vector<2x32xf32> -> vector<2x32xf32>
    %c0_49 = arith.constant 0 : index
    %c0_50 = arith.constant 0 : index
    %56 = vector.load %arg17[%c0_49, %c0_50] : memref<16x32xf32, #tpu.memory_space<vmem>>, vector<16x32xf32>
    %cst_51 = arith.constant dense<0.000000e+00> : vector<2x32xf32>
    %57 = tpu.matmul %1, %56, %cst_51 {dimension_numbers = #tpu.dot_dimension_numbers<[1], [0], [0], [1], [0, 0, 1, 1], [], []>} : vector<2x16xf32>, vector<16x32xf32>, vector<2x32xf32> -> vector<2x32xf32>
    %58 = arith.addf %55, %57 : vector<2x32xf32>
    %c0_52 = arith.constant 0 : index
    %c0_53 = arith.constant 0 : index
    %59 = vector.load %arg18[%c0_52, %c0_53] : memref<1x32xf32, #tpu.memory_space<vmem>>, vector<1x32xf32>
    %60 = vector.broadcast %59 : vector<1x32xf32> to vector<2x32xf32>
    %61 = arith.addf %58, %60 : vector<2x32xf32>
    %cst_54 = arith.constant 0.000000e+00 : f32
    %62 = vector.broadcast %cst_54 : f32 to vector<2x32xf32>
    %63 = arith.cmpf oge, %61, %62 : vector<2x32xf32>
    %cst_55 = arith.constant 0.00999999977 : f32
    %64 = vector.broadcast %cst_55 : f32 to vector<2x32xf32>
    %65 = arith.mulf %64, %61 : vector<2x32xf32>
    %66 = arith.select %63, %61, %65 : vector<2x32xi1>, vector<2x32xf32>
    %c0_56 = arith.constant 0 : index
    %c0_57 = arith.constant 0 : index
    %67 = vector.load %arg21[%c0_56, %c0_57] : memref<2x32xf32, #tpu.memory_space<vmem>>, vector<2x32xf32>
    tpu.vector_store %arg21[%c0_56, %c0_57], %66 {strides = array<i32>} : memref<2x32xf32, #tpu.memory_space<vmem>>, vector<2x32xf32>,
    return
  }
  func.func @transform_0(%arg0: i32) -> (i32, i32) {
    %c0_i32 = arith.constant 0 : i32
    %c0_i32_0 = arith.constant 0 : i32
    %c0_i32_1 = arith.constant 0 : i32
    return %c0_i32, %c0_i32_0 : i32, i32
  }
  func.func @transform_1(%arg0: i32) -> (i32, i32) {
    %c0_i32 = arith.constant 0 : i32
    %c0_i32_0 = arith.constant 0 : i32
    %c0_i32_1 = arith.constant 0 : i32
    return %c0_i32, %c0_i32_0 : i32, i32
  }
  func.func @transform_2(%arg0: i32) -> (i32, i32) {
    %c0_i32 = arith.constant 0 : i32
    %c0_i32_0 = arith.constant 0 : i32
    %c0_i32_1 = arith.constant 0 : i32
    return %c0_i32, %c0_i32_0 : i32, i32
  }
  func.func @transform_3(%arg0: i32) -> (i32, i32) {
    %c0_i32 = arith.constant 0 : i32
    %c0_i32_0 = arith.constant 0 : i32
    %c0_i32_1 = arith.constant 0 : i32
    return %c0_i32, %c0_i32_0 : i32, i32
  }
  func.func @transform_4(%arg0: i32) -> (i32, i32) {
    %c0_i32 = arith.constant 0 : i32
    %c0_i32_0 = arith.constant 0 : i32
    %c0_i32_1 = arith.constant 0 : i32
    return %c0_i32, %c0_i32_0 : i32, i32
  }
  func.func @transform_5(%arg0: i32) -> (i32, i32) {
    %c0_i32 = arith.constant 0 : i32
    %c0_i32_0 = arith.constant 0 : i32
    %c0_i32_1 = arith.constant 0 : i32
    return %c0_i32, %c0_i32_0 : i32, i32
  }
  func.func @transform_6(%arg0: i32) -> (i32, i32) {
    %c0_i32 = arith.constant 0 : i32
    %c0_i32_0 = arith.constant 0 : i32
    %c0_i32_1 = arith.constant 0 : i32
    return %c0_i32, %c0_i32_0 : i32, i32
  }
  func.func @transform_7(%arg0: i32) -> (i32, i32) {
    %c0_i32 = arith.constant 0 : i32
    %c0_i32_0 = arith.constant 0 : i32
    %c0_i32_1 = arith.constant 0 : i32
    return %c0_i32, %c0_i32_0 : i32, i32
  }
  func.func @transform_8(%arg0: i32) -> (i32, i32) {
    %c0_i32 = arith.constant 0 : i32
    %c0_i32_0 = arith.constant 0 : i32
    %c0_i32_1 = arith.constant 0 : i32
    return %c0_i32, %c0_i32_0 : i32, i32
  }
  func.func @transform_9(%arg0: i32) -> (i32, i32) {
    %c0_i32 = arith.constant 0 : i32
    %c0_i32_0 = arith.constant 0 : i32
    %c0_i32_1 = arith.constant 0 : i32
    return %c0_i32, %c0_i32_0 : i32, i32
  }
  func.func @transform_10(%arg0: i32) -> (i32, i32) {
    %c0_i32 = arith.constant 0 : i32
    %c0_i32_0 = arith.constant 0 : i32
    %c0_i32_1 = arith.constant 0 : i32
    return %c0_i32, %c0_i32_0 : i32, i32
  }
  func.func @transform_11(%arg0: i32) -> (i32, i32) {
    %c0_i32 = arith.constant 0 : i32
    %c0_i32_0 = arith.constant 0 : i32
    %c0_i32_1 = arith.constant 0 : i32
    return %c0_i32, %c0_i32_0 : i32, i32
  }
  func.func @transform_12(%arg0: i32) -> (i32, i32) {
    %c0_i32 = arith.constant 0 : i32
    %c0_i32_0 = arith.constant 0 : i32
    %c0_i32_1 = arith.constant 0 : i32
    return %c0_i32, %c0_i32_0 : i32, i32
  }
  func.func @transform_13(%arg0: i32) -> (i32, i32) {
    %c0_i32 = arith.constant 0 : i32
    %c0_i32_0 = arith.constant 0 : i32
    %c0_i32_1 = arith.constant 0 : i32
    return %c0_i32, %c0_i32_0 : i32, i32
  }
  func.func @transform_14(%arg0: i32) -> (i32, i32) {
    %c0_i32 = arith.constant 0 : i32
    %c0_i32_0 = arith.constant 0 : i32
    %c0_i32_1 = arith.constant 0 : i32
    return %c0_i32, %c0_i32_0 : i32, i32
  }
  func.func @transform_15(%arg0: i32) -> (i32, i32) {
    %c0_i32 = arith.constant 0 : i32
    %c0_i32_0 = arith.constant 0 : i32
    %c0_i32_1 = arith.constant 0 : i32
    return %c0_i32, %c0_i32_0 : i32, i32
  }
  func.func @transform_16(%arg0: i32) -> (i32, i32) {
    %c0_i32 = arith.constant 0 : i32
    %c0_i32_0 = arith.constant 0 : i32
    %c0_i32_1 = arith.constant 0 : i32
    return %c0_i32, %c0_i32_0 : i32, i32
  }
  func.func @transform_17(%arg0: i32) -> (i32, i32) {
    %c0_i32 = arith.constant 0 : i32
    %c0_i32_0 = arith.constant 0 : i32
    %c0_i32_1 = arith.constant 0 : i32
    return %c0_i32, %c0_i32_0 : i32, i32
  }
  func.func @transform_18(%arg0: i32) -> (i32, i32) {
    %c0_i32 = arith.constant 0 : i32
    %c0_i32_0 = arith.constant 0 : i32
    %c0_i32_1 = arith.constant 0 : i32
    return %c0_i32, %c0_i32_0 : i32, i32
  }
  func.func @transform_19(%arg0: i32) -> (i32, i32) {
    %c0_i32 = arith.constant 0 : i32
    %c0_i32_0 = arith.constant 0 : i32
    %c0_i32_1 = arith.constant 0 : i32
    return %c0_i32, %c0_i32_0 : i32, i32
  }
  func.func @transform_20(%arg0: i32) -> (i32, i32) {
    %c0_i32 = arith.constant 0 : i32
    %c0_i32_0 = arith.constant 0 : i32
    %c0_i32_1 = arith.constant 0 : i32
    return %c0_i32, %c0_i32_0 : i32, i32
  }
  func.func @transform_21(%arg0: i32) -> (i32, i32) {
    %c0_i32 = arith.constant 0 : i32
    %c0_i32_0 = arith.constant 0 : i32
    %c0_i32_1 = arith.constant 0 : i32
    return %c0_i32, %c0_i32_0 : i32, i32
  }
}

module attributes {stable_mosaic.version = 11 : i64} {
  func.func @_gru_dec_kernel(%arg0: i32, %arg1: memref<1x2x96xbf16, #tpu.memory_space<vmem>>, %arg2: memref<2x32xf32, #tpu.memory_space<vmem>>, %arg3: memref<32x96xbf16, #tpu.memory_space<vmem>>, %arg4: memref<1x96xf32, #tpu.memory_space<vmem>>, %arg5: memref<1x2x32xbf16, #tpu.memory_space<vmem>>, %arg6: memref<2x32xf32, #tpu.memory_space<vmem>>) attributes {dimension_semantics = [#tpu.dimension_semantics<arbitrary>], iteration_bounds = array<i64: 7>, scalar_prefetch = 0 : i64, scratch_operands = 1 : i64, tpu.core_type = #tpu.core_type<tc>, window_params = [{transform_indices = @transform_0, window_bounds = array<i64: 1, 2, 96>}, {pipeline_mode = #tpu.pipeline_mode<synchronous>, transform_indices = @transform_1, window_bounds = array<i64: 2, 32>}, {pipeline_mode = #tpu.pipeline_mode<synchronous>, transform_indices = @transform_2, window_bounds = array<i64: 32, 96>}, {pipeline_mode = #tpu.pipeline_mode<synchronous>, transform_indices = @transform_3, window_bounds = array<i64: 1, 96>}, {transform_indices = @transform_4, window_bounds = array<i64: 1, 2, 32>}]} {
    %c0_i32 = arith.constant 0 : i32
    %0 = arith.cmpi eq, %arg0, %c0_i32 : i32
    %1 = arith.extui %0 : i1 to i32
    %c0_i32_0 = arith.constant 0 : i32
    %2 = arith.cmpi ne, %1, %c0_i32_0 : i32
    scf.if %2 {
      %c0_17 = arith.constant 0 : index
      %c0_18 = arith.constant 0 : index
      %44 = vector.load %arg2[%c0_17, %c0_18] : memref<2x32xf32, #tpu.memory_space<vmem>>, vector<2x32xf32>
      %c0_19 = arith.constant 0 : index
      %c0_20 = arith.constant 0 : index
      %45 = vector.load %arg6[%c0_19, %c0_20] : memref<2x32xf32, #tpu.memory_space<vmem>>, vector<2x32xf32>
      tpu.vector_store %arg6[%c0_19, %c0_20], %44 {strides = array<i32>} : memref<2x32xf32, #tpu.memory_space<vmem>>, vector<2x32xf32>,
    } else {
    }
    %c0 = arith.constant 0 : index
    %c0_1 = arith.constant 0 : index
    %3 = vector.load %arg6[%c0, %c0_1] : memref<2x32xf32, #tpu.memory_space<vmem>>, vector<2x32xf32>
    %c0_2 = arith.constant 0 : index
    %c0_3 = arith.constant 0 : index
    %c0_4 = arith.constant 0 : index
    %4 = vector.load %arg1[%c0_2, %c0_3, %c0_4] : memref<1x2x96xbf16, #tpu.memory_space<vmem>>, vector<1x2x96xbf16>
    %5 = vector.shape_cast %4 : vector<1x2x96xbf16> to vector<2x96xbf16>
    %6 = arith.extf %5 : vector<2x96xbf16> to vector<2x96xf32>
    %c0_5 = arith.constant 0 : index
    %c0_6 = arith.constant 0 : index
    %7 = vector.load %arg3[%c0_5, %c0_6] : memref<32x96xbf16, #tpu.memory_space<vmem>>, vector<32x96xbf16>
    %c0_7 = arith.constant 0 : index
    %c0_8 = arith.constant 0 : index
    %8 = vector.load %arg4[%c0_7, %c0_8] : memref<1x96xf32, #tpu.memory_space<vmem>>, vector<1x96xf32>
    %9 = arith.truncf %3 : vector<2x32xf32> to vector<2x32xbf16>
    %cst = arith.constant dense<0.000000e+00> : vector<2x96xf32>
    %10 = tpu.matmul %9, %7, %cst {dimension_numbers = #tpu.dot_dimension_numbers<[1], [0], [0], [1], [0, 0, 1, 1], [], []>} : vector<2x32xbf16>, vector<32x96xbf16>, vector<2x96xf32> -> vector<2x96xf32>
    %11 = vector.broadcast %8 : vector<1x96xf32> to vector<2x96xf32>
    %12 = arith.addf %10, %11 : vector<2x96xf32>
    %13 = vector.extract_strided_slice %6 {offsets = [0, 0], sizes = [2, 32], strides = [1, 1]} : vector<2x96xf32> to vector<2x32xf32>
    %14 = vector.extract_strided_slice %12 {offsets = [0, 0], sizes = [2, 32], strides = [1, 1]} : vector<2x96xf32> to vector<2x32xf32>
    %15 = arith.addf %13, %14 : vector<2x32xf32>
    %16 = arith.negf %15 : vector<2x32xf32>
    %17 = math.exp %16 : vector<2x32xf32>
    %cst_9 = arith.constant 1.000000e+00 : f32
    %18 = vector.broadcast %cst_9 : f32 to vector<2x32xf32>
    %19 = arith.addf %18, %17 : vector<2x32xf32>
    %20 = arith.divf %18, %19 : vector<2x32xf32>
    %21 = vector.extract_strided_slice %6 {offsets = [0, 32], sizes = [2, 32], strides = [1, 1]} : vector<2x96xf32> to vector<2x32xf32>
    %22 = vector.extract_strided_slice %12 {offsets = [0, 32], sizes = [2, 32], strides = [1, 1]} : vector<2x96xf32> to vector<2x32xf32>
    %23 = arith.addf %21, %22 : vector<2x32xf32>
    %24 = arith.negf %23 : vector<2x32xf32>
    %25 = math.exp %24 : vector<2x32xf32>
    %cst_10 = arith.constant 1.000000e+00 : f32
    %26 = vector.broadcast %cst_10 : f32 to vector<2x32xf32>
    %27 = arith.addf %26, %25 : vector<2x32xf32>
    %28 = arith.divf %26, %27 : vector<2x32xf32>
    %29 = vector.extract_strided_slice %6 {offsets = [0, 64], sizes = [2, 32], strides = [1, 1]} : vector<2x96xf32> to vector<2x32xf32>
    %30 = vector.extract_strided_slice %12 {offsets = [0, 64], sizes = [2, 32], strides = [1, 1]} : vector<2x96xf32> to vector<2x32xf32>
    %31 = arith.mulf %20, %30 : vector<2x32xf32>
    %32 = arith.addf %29, %31 : vector<2x32xf32>
    %33 = math.tanh %32 : vector<2x32xf32>
    %cst_11 = arith.constant 1.000000e+00 : f32
    %34 = vector.broadcast %cst_11 : f32 to vector<2x32xf32>
    %35 = arith.subf %34, %28 : vector<2x32xf32>
    %36 = arith.mulf %35, %33 : vector<2x32xf32>
    %37 = arith.mulf %28, %3 : vector<2x32xf32>
    %38 = arith.addf %36, %37 : vector<2x32xf32>
    %c0_12 = arith.constant 0 : index
    %c0_13 = arith.constant 0 : index
    %39 = vector.load %arg6[%c0_12, %c0_13] : memref<2x32xf32, #tpu.memory_space<vmem>>, vector<2x32xf32>
    tpu.vector_store %arg6[%c0_12, %c0_13], %38 {strides = array<i32>} : memref<2x32xf32, #tpu.memory_space<vmem>>, vector<2x32xf32>,
    %40 = arith.truncf %38 : vector<2x32xf32> to vector<2x32xbf16>
    %c0_14 = arith.constant 0 : index
    %c0_15 = arith.constant 0 : index
    %c0_16 = arith.constant 0 : index
    %41 = vector.load %arg5[%c0_14, %c0_15, %c0_16] : memref<1x2x32xbf16, #tpu.memory_space<vmem>>, vector<1x2x32xbf16>
    %42 = vector.shape_cast %41 : vector<1x2x32xbf16> to vector<2x32xbf16>
    %43 = vector.shape_cast %40 : vector<2x32xbf16> to vector<1x2x32xbf16>
    tpu.vector_store %arg5[%c0_14, %c0_15, %c0_16], %43 {strides = array<i32>} : memref<1x2x32xbf16, #tpu.memory_space<vmem>>, vector<1x2x32xbf16>,
    return
  }
  func.func @transform_0(%arg0: i32) -> (i32, i32, i32) {
    %c0_i32 = arith.constant 0 : i32
    %c0_i32_0 = arith.constant 0 : i32
    %c0_i32_1 = arith.constant 0 : i32
    return %arg0, %c0_i32, %c0_i32_0 : i32, i32, i32
  }
  func.func @transform_1(%arg0: i32) -> (i32, i32) {
    %c0_i32 = arith.constant 0 : i32
    %c0_i32_0 = arith.constant 0 : i32
    %c0_i32_1 = arith.constant 0 : i32
    return %c0_i32, %c0_i32_0 : i32, i32
  }
  func.func @transform_2(%arg0: i32) -> (i32, i32) {
    %c0_i32 = arith.constant 0 : i32
    %c0_i32_0 = arith.constant 0 : i32
    %c0_i32_1 = arith.constant 0 : i32
    return %c0_i32, %c0_i32_0 : i32, i32
  }
  func.func @transform_3(%arg0: i32) -> (i32, i32) {
    %c0_i32 = arith.constant 0 : i32
    %c0_i32_0 = arith.constant 0 : i32
    %c0_i32_1 = arith.constant 0 : i32
    return %c0_i32, %c0_i32_0 : i32, i32
  }
  func.func @transform_4(%arg0: i32) -> (i32, i32, i32) {
    %c0_i32 = arith.constant 0 : i32
    %c0_i32_0 = arith.constant 0 : i32
    %c0_i32_1 = arith.constant 0 : i32
    return %arg0, %c0_i32, %c0_i32_0 : i32, i32, i32
  }
}

module attributes {stable_mosaic.version = 11 : i64} {
  func.func @_linear_kernel(%arg0: i32, %arg1: i32, %arg2: memref<14x16xbf16, #tpu.memory_space<vmem>>, %arg3: memref<16x96xbf16, #tpu.memory_space<vmem>>, %arg4: memref<1x96xf32, #tpu.memory_space<vmem>>, %arg5: memref<14x96xbf16, #tpu.memory_space<vmem>>) attributes {dimension_semantics = [#tpu.dimension_semantics<parallel>, #tpu.dimension_semantics<parallel>], iteration_bounds = array<i64: 1, 1>, scalar_prefetch = 0 : i64, scratch_operands = 0 : i64, tpu.core_type = #tpu.core_type<tc>, window_params = [{transform_indices = @transform_0, window_bounds = array<i64: 14, 16>}, {transform_indices = @transform_1, window_bounds = array<i64: 16, 96>}, {transform_indices = @transform_2, window_bounds = array<i64: 1, 96>}, {transform_indices = @transform_3, window_bounds = array<i64: 14, 96>}]} {
    %c0 = arith.constant 0 : index
    %c0_0 = arith.constant 0 : index
    %0 = vector.load %arg2[%c0, %c0_0] : memref<14x16xbf16, #tpu.memory_space<vmem>>, vector<14x16xbf16>
    %c0_1 = arith.constant 0 : index
    %c0_2 = arith.constant 0 : index
    %1 = vector.load %arg3[%c0_1, %c0_2] : memref<16x96xbf16, #tpu.memory_space<vmem>>, vector<16x96xbf16>
    %cst = arith.constant dense<0.000000e+00> : vector<14x96xf32>
    %2 = tpu.matmul %0, %1, %cst {dimension_numbers = #tpu.dot_dimension_numbers<[1], [0], [0], [1], [0, 0, 1, 1], [], []>} : vector<14x16xbf16>, vector<16x96xbf16>, vector<14x96xf32> -> vector<14x96xf32>
    %c0_3 = arith.constant 0 : index
    %c0_4 = arith.constant 0 : index
    %3 = vector.load %arg4[%c0_3, %c0_4] : memref<1x96xf32, #tpu.memory_space<vmem>>, vector<1x96xf32>
    %4 = vector.broadcast %3 : vector<1x96xf32> to vector<14x96xf32>
    %5 = arith.addf %2, %4 : vector<14x96xf32>
    %6 = arith.truncf %5 : vector<14x96xf32> to vector<14x96xbf16>
    %c0_5 = arith.constant 0 : index
    %c0_6 = arith.constant 0 : index
    %7 = vector.load %arg5[%c0_5, %c0_6] : memref<14x96xbf16, #tpu.memory_space<vmem>>, vector<14x96xbf16>
    tpu.vector_store %arg5[%c0_5, %c0_6], %6 {strides = array<i32>} : memref<14x96xbf16, #tpu.memory_space<vmem>>, vector<14x96xbf16>,
    return
  }
  func.func @transform_0(%arg0: i32, %arg1: i32) -> (i32, i32) {
    %c0_i32 = arith.constant 0 : i32
    %c0_i32_0 = arith.constant 0 : i32
    return %arg0, %c0_i32 : i32, i32
  }
  func.func @transform_1(%arg0: i32, %arg1: i32) -> (i32, i32) {
    %c0_i32 = arith.constant 0 : i32
    %c0_i32_0 = arith.constant 0 : i32
    return %c0_i32, %arg1 : i32, i32
  }
  func.func @transform_2(%arg0: i32, %arg1: i32) -> (i32, i32) {
    %c0_i32 = arith.constant 0 : i32
    %c0_i32_0 = arith.constant 0 : i32
    return %c0_i32, %arg1 : i32, i32
  }
  func.func @transform_3(%arg0: i32, %arg1: i32) -> (i32, i32) {
    %c0_i32 = arith.constant 0 : i32
    return %arg0, %arg1 : i32, i32
  }
}

module attributes {stable_mosaic.version = 11 : i64} {
  func.func @_linear_kernel(%arg0: i32, %arg1: i32, %arg2: memref<14x32xbf16, #tpu.memory_space<vmem>>, %arg3: memref<32x32xbf16, #tpu.memory_space<vmem>>, %arg4: memref<1x32xf32, #tpu.memory_space<vmem>>, %arg5: memref<14x32xf32, #tpu.memory_space<vmem>>) attributes {dimension_semantics = [#tpu.dimension_semantics<parallel>, #tpu.dimension_semantics<parallel>], iteration_bounds = array<i64: 1, 1>, scalar_prefetch = 0 : i64, scratch_operands = 0 : i64, tpu.core_type = #tpu.core_type<tc>, window_params = [{transform_indices = @transform_0, window_bounds = array<i64: 14, 32>}, {transform_indices = @transform_1, window_bounds = array<i64: 32, 32>}, {transform_indices = @transform_2, window_bounds = array<i64: 1, 32>}, {transform_indices = @transform_3, window_bounds = array<i64: 14, 32>}]} {
    %c0 = arith.constant 0 : index
    %c0_0 = arith.constant 0 : index
    %0 = vector.load %arg2[%c0, %c0_0] : memref<14x32xbf16, #tpu.memory_space<vmem>>, vector<14x32xbf16>
    %c0_1 = arith.constant 0 : index
    %c0_2 = arith.constant 0 : index
    %1 = vector.load %arg3[%c0_1, %c0_2] : memref<32x32xbf16, #tpu.memory_space<vmem>>, vector<32x32xbf16>
    %cst = arith.constant dense<0.000000e+00> : vector<14x32xf32>
    %2 = tpu.matmul %0, %1, %cst {dimension_numbers = #tpu.dot_dimension_numbers<[1], [0], [0], [1], [0, 0, 1, 1], [], []>} : vector<14x32xbf16>, vector<32x32xbf16>, vector<14x32xf32> -> vector<14x32xf32>
    %c0_3 = arith.constant 0 : index
    %c0_4 = arith.constant 0 : index
    %3 = vector.load %arg4[%c0_3, %c0_4] : memref<1x32xf32, #tpu.memory_space<vmem>>, vector<1x32xf32>
    %4 = vector.broadcast %3 : vector<1x32xf32> to vector<14x32xf32>
    %5 = arith.addf %2, %4 : vector<14x32xf32>
    %c0_5 = arith.constant 0 : index
    %c0_6 = arith.constant 0 : index
    %6 = vector.load %arg5[%c0_5, %c0_6] : memref<14x32xf32, #tpu.memory_space<vmem>>, vector<14x32xf32>
    tpu.vector_store %arg5[%c0_5, %c0_6], %5 {strides = array<i32>} : memref<14x32xf32, #tpu.memory_space<vmem>>, vector<14x32xf32>,
    return
  }
  func.func @transform_0(%arg0: i32, %arg1: i32) -> (i32, i32) {
    %c0_i32 = arith.constant 0 : i32
    %c0_i32_0 = arith.constant 0 : i32
    return %arg0, %c0_i32 : i32, i32
  }
  func.func @transform_1(%arg0: i32, %arg1: i32) -> (i32, i32) {
    %c0_i32 = arith.constant 0 : i32
    %c0_i32_0 = arith.constant 0 : i32
    return %c0_i32, %arg1 : i32, i32
  }
  func.func @transform_2(%arg0: i32, %arg1: i32) -> (i32, i32) {
    %c0_i32 = arith.constant 0 : i32
    %c0_i32_0 = arith.constant 0 : i32
    return %c0_i32, %arg1 : i32, i32
  }
  func.func @transform_3(%arg0: i32, %arg1: i32) -> (i32, i32) {
    %c0_i32 = arith.constant 0 : i32
    return %arg0, %arg1 : i32, i32
  }
}

module attributes {stable_mosaic.version = 11 : i64} {
  func.func @_linear_kernel(%arg0: i32, %arg1: i32, %arg2: memref<2x32xbf16, #tpu.memory_space<vmem>>, %arg3: memref<32x32xbf16, #tpu.memory_space<vmem>>, %arg4: memref<1x32xf32, #tpu.memory_space<vmem>>, %arg5: memref<2x32xf32, #tpu.memory_space<vmem>>) attributes {dimension_semantics = [#tpu.dimension_semantics<parallel>, #tpu.dimension_semantics<parallel>], iteration_bounds = array<i64: 1, 1>, scalar_prefetch = 0 : i64, scratch_operands = 0 : i64, tpu.core_type = #tpu.core_type<tc>, window_params = [{transform_indices = @transform_0, window_bounds = array<i64: 2, 32>}, {transform_indices = @transform_1, window_bounds = array<i64: 32, 32>}, {transform_indices = @transform_2, window_bounds = array<i64: 1, 32>}, {transform_indices = @transform_3, window_bounds = array<i64: 2, 32>}]} {
    %c0 = arith.constant 0 : index
    %c0_0 = arith.constant 0 : index
    %0 = vector.load %arg2[%c0, %c0_0] : memref<2x32xbf16, #tpu.memory_space<vmem>>, vector<2x32xbf16>
    %c0_1 = arith.constant 0 : index
    %c0_2 = arith.constant 0 : index
    %1 = vector.load %arg3[%c0_1, %c0_2] : memref<32x32xbf16, #tpu.memory_space<vmem>>, vector<32x32xbf16>
    %cst = arith.constant dense<0.000000e+00> : vector<2x32xf32>
    %2 = tpu.matmul %0, %1, %cst {dimension_numbers = #tpu.dot_dimension_numbers<[1], [0], [0], [1], [0, 0, 1, 1], [], []>} : vector<2x32xbf16>, vector<32x32xbf16>, vector<2x32xf32> -> vector<2x32xf32>
    %c0_3 = arith.constant 0 : index
    %c0_4 = arith.constant 0 : index
    %3 = vector.load %arg4[%c0_3, %c0_4] : memref<1x32xf32, #tpu.memory_space<vmem>>, vector<1x32xf32>
    %4 = vector.broadcast %3 : vector<1x32xf32> to vector<2x32xf32>
    %5 = arith.addf %2, %4 : vector<2x32xf32>
    %c0_5 = arith.constant 0 : index
    %c0_6 = arith.constant 0 : index
    %6 = vector.load %arg5[%c0_5, %c0_6] : memref<2x32xf32, #tpu.memory_space<vmem>>, vector<2x32xf32>
    tpu.vector_store %arg5[%c0_5, %c0_6], %5 {strides = array<i32>} : memref<2x32xf32, #tpu.memory_space<vmem>>, vector<2x32xf32>,
    return
  }
  func.func @transform_0(%arg0: i32, %arg1: i32) -> (i32, i32) {
    %c0_i32 = arith.constant 0 : i32
    %c0_i32_0 = arith.constant 0 : i32
    return %arg0, %c0_i32 : i32, i32
  }
  func.func @transform_1(%arg0: i32, %arg1: i32) -> (i32, i32) {
    %c0_i32 = arith.constant 0 : i32
    %c0_i32_0 = arith.constant 0 : i32
    return %c0_i32, %arg1 : i32, i32
  }
  func.func @transform_2(%arg0: i32, %arg1: i32) -> (i32, i32) {
    %c0_i32 = arith.constant 0 : i32
    %c0_i32_0 = arith.constant 0 : i32
    return %c0_i32, %arg1 : i32, i32
  }
  func.func @transform_3(%arg0: i32, %arg1: i32) -> (i32, i32) {
    %c0_i32 = arith.constant 0 : i32
    return %arg0, %arg1 : i32, i32
  }
}

</mosaic_0001>

<llo_original>
// kernel: cvae_forward.11
$region0: #{cvae_forward.11}
  #allocation0 [shape = 'u32[]', space=smem, size = 0x4, offset = 0x4, fixed_abs, tag = 'smem constant byte address 0x4 - core index']
  #allocation1 [shape = 'u32[144,128]{1,0:T(1,128)}', space=vmem, size = 0x12000, scoped, tag = 'internal scratch']
  #allocation2 [shape = 'f32[1,1]{1,0:T(1,128)S(1)}', space=vmem, size = 0x200, scoped, tag = 'scoped memory for cvae_forward.11']
  %s0 = inlined_call_operand.hbm [shape: f32[12,24], index: 0, kind: input, shape index: {}]
  %s1 = inlined_call_operand.hbm [shape: f32[24,32], index: 1, kind: input, shape index: {}]
  %s2 = inlined_call_operand.hbm [shape: f32[1,32], index: 2, kind: input, shape index: {}]
  %s3 = inlined_call_operand.hbm [shape: f32[32,1], index: 3, kind: input, shape index: {}]
  %s4 = inlined_call_operand.<no memory space> [shape: f32[1,1], index: 4, kind: input, shape index: {}]
  %s5 = inlined_call_operand.hbm [shape: f32[12,1], index: 5, kind: output, shape index: {}]
  %s6 = sld [smem:[#allocation0]]
  $region46: #{cvae_forward.11} parent=0
    _
  %s8 = ssub.s32 1, %s6
  %s9 = scalar_select 0, %s8, %s6
  %v10 = vstv %s4
  %11 = vst [vmem:[#allocation2] sm:$0x1] %v10
  $region1: #{cvae_forward.11} parent=0
    #allocation3 [shape = 'u8[8192]{0}', space=vmem, size = 0x2000, scoped, tag = 'input window, operand 0, single buffered']
    #allocation4 [shape = 's32[1]{0}', space=sflag, size = 0x4, scoped, tag = 'scoped memory for cvae_forward.11']
    #allocation5 [shape = 's32[1]{0}', space=sflag, size = 0x4, scoped, tag = 'scoped memory for cvae_forward.11']
    #allocation6 [shape = 'u8[12288]{0}', space=vmem, size = 0x3000, scoped, tag = 'input window, operand 1, single buffered']
    #allocation7 [shape = 's32[1]{0}', space=sflag, size = 0x4, scoped, tag = 'scoped memory for cvae_forward.11']
    #allocation8 [shape = 'u8[512]{0}', space=vmem, size = 0x400, scoped, tag = 'input window, operand 2, single buffered']
    #allocation9 [shape = 'u8[16384]{0}', space=vmem, size = 0x4000, scoped, tag = 'input window, operand 3, single buffered']
    #allocation10 [shape = 's32[1]{0}', space=sflag, size = 0x4, scoped, tag = 'scoped memory for cvae_forward.11']
    #allocation11 [shape = 'u8[8192]{0}', space=vmem, size = 0x2000, scoped, tag = 'output window, operand 0, single buffered']
    %12 = vsyncpa [#allocation4], 0
    %13 = vsyncpa [#allocation7], 0
    %14 = vsyncpa [#allocation10], 0
    %15 = vsyncpa [#allocation5], 0
    // Predicated region
    $region2: #{cvae_forward.11} parent=1 // pred_check
      _
    $region3: #{cvae_forward.11} parent=1 // pred_check_branch
      %17 = sbr.rel (0) target = $region5
    $region4: #{cvae_forward.11} parent=1 // pred_region
      %s19 = ssub.s32 256, 256
      %20 = vsyncadd [#allocation4], %s19
      %s21 = sshll.u32 [#allocation3], 4
      %s22 = int_to_ptr.vmem [resolvable:$true] %s21
      %27 = dma.hbm_to_vmem [thread:$0]  %s0, 256, %s22, [#allocation4], 128, 128, 8
    $region5: #{cvae_forward.11} parent=1 // pred_fallthru
      _
    // Predicated region
    $region6: #{cvae_forward.11} parent=1 // pred_check
      _
    $region7: #{cvae_forward.11} parent=1 // pred_check_branch
      %29 = sbr.rel (0) target = $region9
    $region8: #{cvae_forward.11} parent=1 // pred_region
      %s31 = ssub.s32 384, 384
      %32 = vsyncadd [#allocation7], %s31
      %s33 = sshll.u32 [#allocation6], 4
      %s34 = int_to_ptr.vmem [resolvable:$true] %s33
      %39 = dma.hbm_to_vmem [thread:$0]  %s1, 384, %s34, [#allocation7], 128, 128, 8
    $region9: #{cvae_forward.11} parent=1 // pred_fallthru
      _
    // Predicated region
    $region10: #{cvae_forward.11} parent=1 // pred_check
      _
    $region11: #{cvae_forward.11} parent=1 // pred_check_branch
      %41 = sbr.rel (0) target = $region13
    $region12: #{cvae_forward.11} parent=1 // pred_region
      %s43 = ssub.s32 16, 16
      %44 = vsyncadd [#allocation7], %s43
      %s46 = sshll.u32 [#allocation8], 4
      %s47 = int_to_ptr.vmem [resolvable:$true] %s46
      %49 = dma.hbm_to_vmem [thread:$0]  %s2, 16, %s47, [#allocation7]
    $region13: #{cvae_forward.11} parent=1 // pred_fallthru
      _
    // Predicated region
    $region14: #{cvae_forward.11} parent=1 // pred_check
      _
    $region15: #{cvae_forward.11} parent=1 // pred_check_branch
      %51 = sbr.rel (0) target = $region17
    $region16: #{cvae_forward.11} parent=1 // pred_region
      %s53 = ssub.s32 512, 512
      %54 = vsyncadd [#allocation10], %s53
      %s55 = sshll.u32 [#allocation9], 4
      %s56 = int_to_ptr.vmem [resolvable:$true] %s55
      %61 = dma.hbm_to_vmem [thread:$0]  %s3, 512, %s56, [#allocation10], 128, 128, 8
    $region17: #{cvae_forward.11} parent=1 // pred_fallthru
      _
    // Predicated region
    $region18: #{cvae_forward.11} parent=1 // pred_check
      _
    $region19: #{cvae_forward.11} parent=1 // pred_check_branch
      %63 = sbr.rel (0) target = $region21
    $region20: #{cvae_forward.11} parent=1 // pred_region
      _
    $region21: #{cvae_forward.11} parent=1 // pred_fallthru
      _
    // Predicated region
    $region22: #{cvae_forward.11} parent=1 // pred_check
      _
    $region23: #{cvae_forward.11} parent=1 // pred_check_branch
      %65 = sbr.rel (0) target = $region25
    $region24: #{cvae_forward.11} parent=1 // pred_region
      %66 = dma.done [#allocation4], 256
    $region25: #{cvae_forward.11} parent=1 // pred_fallthru
      _
    // Predicated region
    $region26: #{cvae_forward.11} parent=1 // pred_check
      _
    $region27: #{cvae_forward.11} parent=1 // pred_check_branch
      %68 = sbr.rel (0) target = $region29
    $region28: #{cvae_forward.11} parent=1 // pred_region
      %69 = dma.done [#allocation7], 384
    $region29: #{cvae_forward.11} parent=1 // pred_fallthru
      _
    // Predicated region
    $region30: #{cvae_forward.11} parent=1 // pred_check
      _
    $region31: #{cvae_forward.11} parent=1 // pred_check_branch
      %71 = sbr.rel (0) target = $region33
    $region32: #{cvae_forward.11} parent=1 // pred_region
      %72 = dma.done [#allocation7], 16
    $region33: #{cvae_forward.11} parent=1 // pred_fallthru
      _
    // Predicated region
    $region34: #{cvae_forward.11} parent=1 // pred_check
      _
    $region35: #{cvae_forward.11} parent=1 // pred_check_branch
      %74 = sbr.rel (0) target = $region37
    $region36: #{cvae_forward.11} parent=1 // pred_region
      %75 = dma.done [#allocation10], 512
    $region37: #{cvae_forward.11} parent=1 // pred_fallthru
      _
    %v76 = vld [vmem:[#allocation3] sm:$0xff]
    %v77 = vld [vmem:[#allocation3 + $0x8] sm:$0xf]
    %v78 = vld [vmem:[#allocation6] sm:$0xff]
    %v79 = vld [vmem:[#allocation6 + $0x8] sm:$0xff]
    %v80 = vld [vmem:[#allocation6 + $0x10] sm:$0xff]
    %v81 = vld [vmem:[#allocation8] sm:$0x1]
    %v83 = vlaneseq
    %v84 = vshrl.u32 %v83, 7
    %v85 = vsub.s32 0, %v84
    %v86 = vrot.slane %v81, %v85
    %vm88 = vcmask 195584
    %v90 = vsel %vm88, %v76, 0
    %v93 = vsel %vm88, %v77, 0
    %95 = vmatprep.subr.mxu0 0.0
    %96 = vmatpush1.msra.mxu0 %v78
    %97 = vmatprep.subr.mxu0 0.0
    %98 = vmatpush1.msra.mxu0 %v79
    %99 = vmatprep.subr.mxu0 0.0
    %100 = vmatpush1.msra.mxu0 %v80
    %101 = vmatprep.subr.mxu0 0.0
    %102 = vmatpush1.msra.mxu0 0.0
    %103 = vmatprep.subr.mxu0 0.0
    %104 = vmatpush1.msra.mxu0 0.0
    %105 = vmatprep.subr.mxu0 0.0
    %106 = vmatpush1.msra.mxu0 0.0
    %107 = vmatprep.subr.mxu0 0.0
    %108 = vmatpush1.msra.mxu0 0.0
    %109 = vmatprep.subr.mxu0 0.0
    %110 = vmatpush1.msra.mxu0 0.0
    %111 = vmatprep.subr.mxu0 0.0
    %112 = vmatpush1.msra.mxu0 0.0
    %113 = vmatprep.subr.mxu0 0.0
    %114 = vmatpush1.msra.mxu0 0.0
    %115 = vmatprep.subr.mxu0 0.0
    %116 = vmatpush1.msra.mxu0 0.0
    %117 = vmatprep.subr.mxu0 0.0
    %118 = vmatpush1.msra.mxu0 0.0
    %119 = vmatprep.subr.mxu0 0.0
    %120 = vmatpush1.msra.mxu0 0.0
    %121 = vmatprep.subr.mxu0 0.0
    %122 = vmatpush1.msra.mxu0 0.0
    %123 = vmatprep.subr.mxu0 0.0
    %124 = vmatpush1.msra.mxu0 0.0
    %125 = vmatprep.subr.mxu0 0.0
    %126 = vmatpush1.msra.mxu0 0.0
    %127 = vmatprep.subr.mxu0 0.0
    %128 = vmatpush1.msra.mxu0 0.0
    %129 = vmatprep.subr.mxu0 0.0
    %130 = vmatpush1.msra.mxu0 0.0
    %131 = vmatprep.subr.mxu0 0.0
    %132 = vmatpush1.msra.mxu0 0.0
    %133 = vmatprep.subr.mxu0 0.0
    %134 = vmatpush1.msra.mxu0 0.0
    %135 = vmatprep.subr.mxu0 0.0
    %136 = vmatpush1.msra.mxu0 0.0
    %137 = vmatprep.subr.mxu0 0.0
    %138 = vmatpush1.msra.mxu0 0.0
    %139 = vmatprep.subr.mxu0 0.0
    %140 = vmatpush1.msra.mxu0 0.0
    %141 = vmatprep.subr.mxu0 0.0
    %142 = vmatpush1.msra.mxu0 0.0
    %143 = vmatprep.subr.mxu0 0.0
    %144 = vmatpush1.msra.mxu0 0.0
    %145 = vmatprep.subr.mxu0 0.0
    %146 = vmatpush1.msra.mxu0 0.0
    %147 = vmatprep.subr.mxu0 0.0
    %148 = vmatpush1.msra.mxu0 0.0
    %149 = vmatprep.subr.mxu0 0.0
    %150 = vmatpush1.msra.mxu0 0.0
    %151 = vmatprep.subr.mxu0 0.0
    %152 = vmatpush1.msra.mxu0 0.0
    %153 = vmatprep.subr.mxu0 0.0
    %154 = vmatpush1.msra.mxu0 0.0
    %155 = vmatprep.subr.mxu0 0.0
    %156 = vmatpush1.msra.mxu0 0.0
    %157 = vmatprep.subr.mxu0 0.0
    %158 = vmatpush1.msra.mxu0 0.0
    %159 = vmatprep.mubr.f32.mxu0 0.0
    %160 = vmatmul.mubr.f32.gmra.mrb[0].mxu0 %v90
    %v161 = vpop.f32.mrb[0].mxu0
    %v162 = vadd.f32 %v86, %v161
    %v163 = vpop.f32.mrb[0].mxu0
    %164 = vmatprep.mubr.f32.mxu0 0.0
    %165 = vmatmul.mubr.f32.gmra.mrb[0].mxu0 %v93
    %v166 = vpop.f32.mrb[0].mxu0
    %v167 = vadd.f32 %v86, %v166
    %v168 = vpop.f32.mrb[0].mxu0
    %169 = vdwg.mxu0
    %vm170 = vcmp.ge.f32.partialorder %v162, 0.0
    %vm171 = vcmp.ge.f32.partialorder %v167, 0.0
    %v172 = vmul.f32 %v162, 0.01
    %v173 = vmul.f32 %v167, 0.01
    %v174 = vsel %vm170, %v162, %v172
    %v175 = vsel %vm171, %v167, %v173
    %v176 = vld [vmem:[#allocation9] sm:$0xff]
    %v177 = vld [vmem:[#allocation9 + $0x8] sm:$0xff]
    %v178 = vld [vmem:[#allocation9 + $0x10] sm:$0xff]
    %v179 = vld [vmem:[#allocation9 + $0x18] sm:$0xff]
    %v180 = vld [vmem:[#allocation2] sm:$0x1]
    %v182 = vlaneseq
    %v183 = vshrl.u32 %v182, 7
    %v184 = vsub.s32 0, %v183
    %v185 = vrot.slane %v180, %v184
    %vm187 = vcmask 261120
    %v189 = vsel %vm187, %v174, 0
    %v192 = vsel %vm187, %v175, 0
    %194 = vmatprep.subr.mxu0 0.0
    %195 = vmatpush1.msra.mxu0 %v176
    %196 = vmatprep.subr.mxu0 0.0
    %197 = vmatpush1.msra.mxu0 %v177
    %198 = vmatprep.subr.mxu0 0.0
    %199 = vmatpush1.msra.mxu0 %v178
    %200 = vmatprep.subr.mxu0 0.0
    %201 = vmatpush1.msra.mxu0 %v179
    %202 = vmatprep.subr.mxu0 0.0
    %203 = vmatpush1.msra.mxu0 0.0
    %204 = vmatprep.subr.mxu0 0.0
    %205 = vmatpush1.msra.mxu0 0.0
    %206 = vmatprep.subr.mxu0 0.0
    %207 = vmatpush1.msra.mxu0 0.0
    %208 = vmatprep.subr.mxu0 0.0
    %209 = vmatpush1.msra.mxu0 0.0
    %210 = vmatprep.subr.mxu0 0.0
    %211 = vmatpush1.msra.mxu0 0.0
    %212 = vmatprep.subr.mxu0 0.0
    %213 = vmatpush1.msra.mxu0 0.0
    %214 = vmatprep.subr.mxu0 0.0
    %215 = vmatpush1.msra.mxu0 0.0
    %216 = vmatprep.subr.mxu0 0.0
    %217 = vmatpush1.msra.mxu0 0.0
    %218 = vmatprep.subr.mxu0 0.0
    %219 = vmatpush1.msra.mxu0 0.0
    %220 = vmatprep.subr.mxu0 0.0
    %221 = vmatpush1.msra.mxu0 0.0
    %222 = vmatprep.subr.mxu0 0.0
    %223 = vmatpush1.msra.mxu0 0.0
    %224 = vmatprep.subr.mxu0 0.0
    %225 = vmatpush1.msra.mxu0 0.0
    %226 = vmatprep.subr.mxu0 0.0
    %227 = vmatpush1.msra.mxu0 0.0
    %228 = vmatprep.subr.mxu0 0.0
    %229 = vmatpush1.msra.mxu0 0.0
    %230 = vmatprep.subr.mxu0 0.0
    %231 = vmatpush1.msra.mxu0 0.0
    %232 = vmatprep.subr.mxu0 0.0
    %233 = vmatpush1.msra.mxu0 0.0
    %234 = vmatprep.subr.mxu0 0.0
    %235 = vmatpush1.msra.mxu0 0.0
    %236 = vmatprep.subr.mxu0 0.0
    %237 = vmatpush1.msra.mxu0 0.0
    %238 = vmatprep.subr.mxu0 0.0
    %239 = vmatpush1.msra.mxu0 0.0
    %240 = vmatprep.subr.mxu0 0.0
    %241 = vmatpush1.msra.mxu0 0.0
    %242 = vmatprep.subr.mxu0 0.0
    %243 = vmatpush1.msra.mxu0 0.0
    %244 = vmatprep.subr.mxu0 0.0
    %245 = vmatpush1.msra.mxu0 0.0
    %246 = vmatprep.subr.mxu0 0.0
    %247 = vmatpush1.msra.mxu0 0.0
    %248 = vmatprep.subr.mxu0 0.0
    %249 = vmatpush1.msra.mxu0 0.0
    %250 = vmatprep.subr.mxu0 0.0
    %251 = vmatpush1.msra.mxu0 0.0
    %252 = vmatprep.subr.mxu0 0.0
    %253 = vmatpush1.msra.mxu0 0.0
    %254 = vmatprep.subr.mxu0 0.0
    %255 = vmatpush1.msra.mxu0 0.0
    %256 = vmatprep.subr.mxu0 0.0
    %257 = vmatpush1.msra.mxu0 0.0
    %258 = vmatprep.mubr.f32.mxu0 0.0
    %259 = vmatmul.mubr.f32.gmra.mrb[0].mxu0 %v189
    %v260 = vpop.f32.mrb[0].mxu0
    %v261 = vadd.f32 %v185, %v260
    %v262 = vpop.f32.mrb[0].mxu0
    %263 = vmatprep.mubr.f32.mxu0 0.0
    %264 = vmatmul.mubr.f32.gmra.mrb[0].mxu0 %v192
    %v265 = vpop.f32.mrb[0].mxu0
    %v266 = vadd.f32 %v185, %v265
    %v267 = vpop.f32.mrb[0].mxu0
    %268 = vdwg.mxu0
    %vm269 = vcmask 7168
    %270 = vst.msk [vmem:[#allocation11] sm:$0xff] %vm269, %v261
    %vm271 = vcmask 3072
    %272 = vst.msk [vmem:[#allocation11 + $0x8] sm:$0xf] %vm271, %v266
    // Predicated region
    $region38: #{cvae_forward.11} parent=1 // pred_check
      _
    $region39: #{cvae_forward.11} parent=1 // pred_check_branch
      %274 = sbr.rel (0) target = $region41
    $region40: #{cvae_forward.11} parent=1 // pred_region
      %s276 = ssub.s32 256, 256
      %277 = vsyncadd [#allocation5], %s276
      %s278 = sshll.u32 [#allocation11], 4
      %s279 = int_to_ptr.vmem [resolvable:$true] %s278
      %284 = dma.vmem_to_hbm [thread:$0]  %s279, 256, %s5, [#allocation5], 128, 128, 8
    $region41: #{cvae_forward.11} parent=1 // pred_fallthru
      _
    // Predicated region
    $region42: #{cvae_forward.11} parent=1 // pred_check
      _
    $region43: #{cvae_forward.11} parent=1 // pred_check_branch
      %286 = sbr.rel (0) target = $region45
    $region44: #{cvae_forward.11} parent=1 // pred_region
      %287 = dma.done [#allocation5], 256
    $region45: #{cvae_forward.11} parent=1 // pred_fallthru
      _
    %288 = vsyncpa [#allocation4], 1
    %289 = vsyncpa [#allocation7], 1
    %290 = vsyncpa [#allocation10], 1
    %291 = vsyncpa [#allocation5], 1

// kernel: cvae_forward.12
$region0: #{cvae_forward.12}
  #allocation0 [shape = 'u32[]', space=smem, size = 0x4, offset = 0x4, fixed_abs, tag = 'smem constant byte address 0x4 - core index']
  #allocation1 [shape = 'u32[144,128]{1,0:T(1,128)}', space=vmem, size = 0x12000, scoped, tag = 'internal scratch']
  %s0 = inlined_call_operand.hbm [shape: f32[2,6,24], index: 0, kind: input, shape index: {}]
  %s1 = inlined_call_operand.hbm [shape: f32[2,6], index: 1, kind: input, shape index: {}]
  %s2 = inlined_call_operand.hbm [shape: f32[2,6], index: 2, kind: input, shape index: {}]
  %s3 = inlined_call_operand.hbm [shape: f32[24,16], index: 3, kind: input, shape index: {}]
  %s4 = inlined_call_operand.hbm [shape: f32[1,16], index: 4, kind: input, shape index: {}]
  %s5 = inlined_call_operand.hbm [shape: f32[2,16], index: 5, kind: output, shape index: {0}]
  %s6 = inlined_call_operand.hbm [shape: f32[2,6], index: 6, kind: output, shape index: {1}]
  %7 = xla_tuple %s5, %s6
  %s8 = sld [smem:[#allocation0]]
  $region58: #{cvae_forward.12} parent=0
    _
  %s10 = ssub.s32 1, %s8
  %s11 = scalar_select 0, %s10, %s8
  $region1: #{cvae_forward.12} parent=0
    #allocation2 [shape = 'u8[8192]{0}', space=vmem, size = 0x2000, scoped, tag = 'input window, operand 0, single buffered']
    #allocation3 [shape = 's32[1]{0}', space=sflag, size = 0x4, scoped, tag = 'scoped memory for cvae_forward.12']
    #allocation4 [shape = 's32[1]{0}', space=sflag, size = 0x4, scoped, tag = 'scoped memory for cvae_forward.12']
    #allocation5 [shape = 'u8[1024]{0}', space=vmem, size = 0x400, scoped, tag = 'input window, operand 1, single buffered']
    #allocation6 [shape = 's32[1]{0}', space=sflag, size = 0x4, scoped, tag = 'scoped memory for cvae_forward.12']
    #allocation7 [shape = 'u8[1024]{0}', space=vmem, size = 0x400, scoped, tag = 'input window, operand 2, single buffered']
    #allocation8 [shape = 'u8[12288]{0}', space=vmem, size = 0x3000, scoped, tag = 'input window, operand 3, single buffered']
    #allocation9 [shape = 's32[1]{0}', space=sflag, size = 0x4, scoped, tag = 'scoped memory for cvae_forward.12']
    #allocation10 [shape = 'u8[512]{0}', space=vmem, size = 0x400, scoped, tag = 'input window, operand 4, single buffered']
    #allocation11 [shape = 'u8[1024]{0}', space=vmem, size = 0x400, scoped, tag = 'output window, operand 0, single buffered']
    #allocation12 [shape = 'u8[1024]{0}', space=vmem, size = 0x400, scoped, tag = 'output window, operand 1, single buffered']
    #allocation13 [shape = 's32[1]{0}', space=sflag, size = 0x4, scoped, tag = 'scoped memory for cvae_forward.12']
    %12 = vsyncpa [#allocation3], 0
    %13 = vsyncpa [#allocation6], 0
    %14 = vsyncpa [#allocation9], 0
    %15 = vsyncpa [#allocation4], 0
    %16 = vsyncpa [#allocation13], 0
    // Predicated region
    $region2: #{cvae_forward.12} parent=1 // pred_check
      _
    $region3: #{cvae_forward.12} parent=1 // pred_check_branch
      %18 = sbr.rel (0) target = $region5
    $region4: #{cvae_forward.12} parent=1 // pred_region
      %s20 = ssub.s32 256, 256
      %21 = vsyncadd [#allocation3], %s20
      %s22 = sshll.u32 [#allocation2], 4
      %s23 = int_to_ptr.vmem [resolvable:$true] %s22
      %28 = dma.hbm_to_vmem [thread:$0]  %s0, 256, %s23, [#allocation3], 128, 128, 8
    $region5: #{cvae_forward.12} parent=1 // pred_fallthru
      _
    // Predicated region
    $region6: #{cvae_forward.12} parent=1 // pred_check
      _
    $region7: #{cvae_forward.12} parent=1 // pred_check_branch
      %30 = sbr.rel (0) target = $region9
    $region8: #{cvae_forward.12} parent=1 // pred_region
      %s32 = ssub.s32 32, 32
      %33 = vsyncadd [#allocation6], %s32
      %s35 = sshll.u32 [#allocation5], 4
      %s36 = int_to_ptr.vmem [resolvable:$true] %s35
      %38 = dma.hbm_to_vmem [thread:$0]  %s1, 32, %s36, [#allocation6]
    $region9: #{cvae_forward.12} parent=1 // pred_fallthru
      _
    // Predicated region
    $region10: #{cvae_forward.12} parent=1 // pred_check
      _
    $region11: #{cvae_forward.12} parent=1 // pred_check_branch
      %40 = sbr.rel (0) target = $region13
    $region12: #{cvae_forward.12} parent=1 // pred_region
      %s42 = ssub.s32 32, 32
      %43 = vsyncadd [#allocation6], %s42
      %s45 = sshll.u32 [#allocation7], 4
      %s46 = int_to_ptr.vmem [resolvable:$true] %s45
      %48 = dma.hbm_to_vmem [thread:$0]  %s2, 32, %s46, [#allocation6]
    $region13: #{cvae_forward.12} parent=1 // pred_fallthru
      _
    // Predicated region
    $region14: #{cvae_forward.12} parent=1 // pred_check
      _
    $region15: #{cvae_forward.12} parent=1 // pred_check_branch
      %50 = sbr.rel (0) target = $region17
    $region16: #{cvae_forward.12} parent=1 // pred_region
      %s52 = ssub.s32 384, 384
      %53 = vsyncadd [#allocation9], %s52
      %s54 = sshll.u32 [#allocation8], 4
      %s55 = int_to_ptr.vmem [resolvable:$true] %s54
      %60 = dma.hbm_to_vmem [thread:$0]  %s3, 384, %s55, [#allocation9], 128, 128, 8
    $region17: #{cvae_forward.12} parent=1 // pred_fallthru
      _
    // Predicated region
    $region18: #{cvae_forward.12} parent=1 // pred_check
      _
    $region19: #{cvae_forward.12} parent=1 // pred_check_branch
      %62 = sbr.rel (0) target = $region21
    $region20: #{cvae_forward.12} parent=1 // pred_region
      %s64 = ssub.s32 16, 16
      %65 = vsyncadd [#allocation9], %s64
      %s67 = sshll.u32 [#allocation10], 4
      %s68 = int_to_ptr.vmem [resolvable:$true] %s67
      %70 = dma.hbm_to_vmem [thread:$0]  %s4, 16, %s68, [#allocation9]
    $region21: #{cvae_forward.12} parent=1 // pred_fallthru
      _
    // Predicated region
    $region22: #{cvae_forward.12} parent=1 // pred_check
      _
    $region23: #{cvae_forward.12} parent=1 // pred_check_branch
      %72 = sbr.rel (0) target = $region25
    $region24: #{cvae_forward.12} parent=1 // pred_region
      %73 = dma.done [#allocation3], 256
    $region25: #{cvae_forward.12} parent=1 // pred_fallthru
      _
    // Predicated region
    $region26: #{cvae_forward.12} parent=1 // pred_check
      _
    $region27: #{cvae_forward.12} parent=1 // pred_check_branch
      %75 = sbr.rel (0) target = $region29
    $region28: #{cvae_forward.12} parent=1 // pred_region
      %76 = dma.done [#allocation6], 32
    $region29: #{cvae_forward.12} parent=1 // pred_fallthru
      _
    // Predicated region
    $region30: #{cvae_forward.12} parent=1 // pred_check
      _
    $region31: #{cvae_forward.12} parent=1 // pred_check_branch
      %78 = sbr.rel (0) target = $region33
    $region32: #{cvae_forward.12} parent=1 // pred_region
      %79 = dma.done [#allocation6], 32
    $region33: #{cvae_forward.12} parent=1 // pred_fallthru
      _
    // Predicated region
    $region34: #{cvae_forward.12} parent=1 // pred_check
      _
    $region35: #{cvae_forward.12} parent=1 // pred_check_branch
      %81 = sbr.rel (0) target = $region37
    $region36: #{cvae_forward.12} parent=1 // pred_region
      %82 = dma.done [#allocation9], 384
    $region37: #{cvae_forward.12} parent=1 // pred_fallthru
      _
    // Predicated region
    $region38: #{cvae_forward.12} parent=1 // pred_check
      _
    $region39: #{cvae_forward.12} parent=1 // pred_check_branch
      %84 = sbr.rel (0) target = $region41
    $region40: #{cvae_forward.12} parent=1 // pred_region
      %85 = dma.done [#allocation9], 16
    $region41: #{cvae_forward.12} parent=1 // pred_fallthru
      _
    %v86 = vld [vmem:[#allocation5] sm:$0x3]
    %v87 = vld [vmem:[#allocation7] sm:$0x3]
    %vm88 = vcmp.gt.f32.partialorder %v87, 0.5
    %v89 = vsel %vm88, %v86, -1e+10
    %vm90 = vcmask 41984
    %v91 = vsel %vm90, %v89, -inf
    %92 = vmax.xlane.f32.xlu0 %v91
    %v93 = vpop.xlane.xlu0 %92
    %v94 = vsub.f32 %v89, %v93
    %v95 = vmul.f32 %v94, 1.442695
    %v96 = vpow.pop %v95
    %v97 = vsel %vm90, %v96, 0.0
    %98 = vadd.xlane.f32.xlu0 %v97
    %v99 = vpop.xlane.xlu0 %98
    %v100 = vrcp.pop %v99
    %v101 = vmul.f32 %v96, %v100
    %102 = vst.msk [vmem:[#allocation12] sm:$0x3] %vm90, %v101
    %v103 = vlaneseq
    %v104 = vshrl.u32 %v103, 7
    %v105 = vsub.s32 0, %v104
    %v106 = vrot.slane %v101, %v105
    %108 = vbcast.lane.b32.xlu0 %v106, 256
    %v109 = vpop.permute.xlu0 %108
    %v110 = vlaneseq
    %v111 = vshrl.u32 %v110, 7
    %v112 = vsub.s32 1, %v111
    %v113 = vrot.slane %v101, %v112
    %115 = vbcast.lane.b32.xlu0 %v113, 256
    %v116 = vpop.permute.xlu0 %115
    %v117 = vld [vmem:[#allocation2] sm:$0x3f]
    %v118 = vld [vmem:[#allocation2 + $0x8] sm:$0x3f]
    %v119 = vmul.f32 %v109, %v117
    %v120 = vmul.f32 %v116, %v118
    %vm121 = vcmask 193536
    %v122 = vsel %vm121, %v119, 0.0
    %v123 = vrot.slane %v122, 4
    %v124 = vadd.f32 %v122, %v123
    %v125 = vrot.slane %v124, 2
    %v126 = vadd.f32 %v124, %v125
    %v127 = vrot.slane %v126, 1
    %v128 = vadd.f32 %v126, %v127
    %v129 = vsel %vm121, %v120, 0.0
    %v130 = vrot.slane %v129, 4
    %v131 = vadd.f32 %v129, %v130
    %v132 = vrot.slane %v131, 2
    %v133 = vadd.f32 %v131, %v132
    %v134 = vrot.slane %v133, 1
    %v135 = vadd.f32 %v133, %v134
    %v136 = vld [vmem:[#allocation8] sm:$0xff]
    %v137 = vld [vmem:[#allocation8 + $0x8] sm:$0xff]
    %v138 = vld [vmem:[#allocation8 + $0x10] sm:$0xff]
    %v139 = vld [vmem:[#allocation10] sm:$0x1]
    %v141 = vlaneseq
    %v142 = vshrl.u32 %v141, 7
    %v143 = vsub.s32 0, %v142
    %v144 = vrot.slane %v139, %v143
    %vm148 = vcmask 1041409
    %v149 = vsel %vm148, %v135, %v128
    %vm150 = vcmask 195584
    %v151 = vsel %vm150, %v149, 0
    %153 = vmatprep.subr.mxu0 0.0
    %154 = vmatpush1.msra.mxu0 %v136
    %155 = vmatprep.subr.mxu0 0.0
    %156 = vmatpush1.msra.mxu0 %v137
    %157 = vmatprep.subr.mxu0 0.0
    %158 = vmatpush1.msra.mxu0 %v138
    %159 = vmatprep.subr.mxu0 0.0
    %160 = vmatpush1.msra.mxu0 0.0
    %161 = vmatprep.subr.mxu0 0.0
    %162 = vmatpush1.msra.mxu0 0.0
    %163 = vmatprep.subr.mxu0 0.0
    %164 = vmatpush1.msra.mxu0 0.0
    %165 = vmatprep.subr.mxu0 0.0
    %166 = vmatpush1.msra.mxu0 0.0
    %167 = vmatprep.subr.mxu0 0.0
    %168 = vmatpush1.msra.mxu0 0.0
    %169 = vmatprep.subr.mxu0 0.0
    %170 = vmatpush1.msra.mxu0 0.0
    %171 = vmatprep.subr.mxu0 0.0
    %172 = vmatpush1.msra.mxu0 0.0
    %173 = vmatprep.subr.mxu0 0.0
    %174 = vmatpush1.msra.mxu0 0.0
    %175 = vmatprep.subr.mxu0 0.0
    %176 = vmatpush1.msra.mxu0 0.0
    %177 = vmatprep.subr.mxu0 0.0
    %178 = vmatpush1.msra.mxu0 0.0
    %179 = vmatprep.subr.mxu0 0.0
    %180 = vmatpush1.msra.mxu0 0.0
    %181 = vmatprep.subr.mxu0 0.0
    %182 = vmatpush1.msra.mxu0 0.0
    %183 = vmatprep.subr.mxu0 0.0
    %184 = vmatpush1.msra.mxu0 0.0
    %185 = vmatprep.subr.mxu0 0.0
    %186 = vmatpush1.msra.mxu0 0.0
    %187 = vmatprep.subr.mxu0 0.0
    %188 = vmatpush1.msra.mxu0 0.0
    %189 = vmatprep.subr.mxu0 0.0
    %190 = vmatpush1.msra.mxu0 0.0
    %191 = vmatprep.subr.mxu0 0.0
    %192 = vmatpush1.msra.mxu0 0.0
    %193 = vmatprep.subr.mxu0 0.0
    %194 = vmatpush1.msra.mxu0 0.0
    %195 = vmatprep.subr.mxu0 0.0
    %196 = vmatpush1.msra.mxu0 0.0
    %197 = vmatprep.subr.mxu0 0.0
    %198 = vmatpush1.msra.mxu0 0.0
    %199 = vmatprep.subr.mxu0 0.0
    %200 = vmatpush1.msra.mxu0 0.0
    %201 = vmatprep.subr.mxu0 0.0
    %202 = vmatpush1.msra.mxu0 0.0
    %203 = vmatprep.subr.mxu0 0.0
    %204 = vmatpush1.msra.mxu0 0.0
    %205 = vmatprep.subr.mxu0 0.0
    %206 = vmatpush1.msra.mxu0 0.0
    %207 = vmatprep.subr.mxu0 0.0
    %208 = vmatpush1.msra.mxu0 0.0
    %209 = vmatprep.subr.mxu0 0.0
    %210 = vmatpush1.msra.mxu0 0.0
    %211 = vmatprep.subr.mxu0 0.0
    %212 = vmatpush1.msra.mxu0 0.0
    %213 = vmatprep.subr.mxu0 0.0
    %214 = vmatpush1.msra.mxu0 0.0
    %215 = vmatprep.subr.mxu0 0.0
    %216 = vmatpush1.msra.mxu0 0.0
    %217 = vmatprep.mubr.f32.mxu0 0.0
    %218 = vmatmul.mubr.f32.gmra.mrb[0].mxu0 %v151
    %v219 = vpop.f32.mrb[0].mxu0
    %v220 = vadd.f32 %v144, %v219
    %v221 = vpop.f32.mrb[0].mxu0
    %222 = vdwg.mxu0
    %vm223 = vcmask 123904
    %224 = vst.msk [vmem:[#allocation11] sm:$0x3] %vm223, %v220
    // Predicated region
    $region42: #{cvae_forward.12} parent=1 // pred_check
      _
    $region43: #{cvae_forward.12} parent=1 // pred_check_branch
      %226 = sbr.rel (0) target = $region45
    $region44: #{cvae_forward.12} parent=1 // pred_region
      %s228 = ssub.s32 32, 32
      %229 = vsyncadd [#allocation4], %s228
      %s231 = sshll.u32 [#allocation11], 4
      %s232 = int_to_ptr.vmem [resolvable:$true] %s231
      %234 = dma.vmem_to_hbm [thread:$0]  %s232, 32, %s5, [#allocation4]
    $region45: #{cvae_forward.12} parent=1 // pred_fallthru
      _
    // Predicated region
    $region46: #{cvae_forward.12} parent=1 // pred_check
      _
    $region47: #{cvae_forward.12} parent=1 // pred_check_branch
      %236 = sbr.rel (0) target = $region49
    $region48: #{cvae_forward.12} parent=1 // pred_region
      %s238 = ssub.s32 32, 32
      %239 = vsyncadd [#allocation13], %s238
      %s241 = sshll.u32 [#allocation12], 4
      %s242 = int_to_ptr.vmem [resolvable:$true] %s241
      %244 = dma.vmem_to_hbm [thread:$0]  %s242, 32, %s6, [#allocation13]
    $region49: #{cvae_forward.12} parent=1 // pred_fallthru
      _
    // Predicated region
    $region50: #{cvae_forward.12} parent=1 // pred_check
      _
    $region51: #{cvae_forward.12} parent=1 // pred_check_branch
      %246 = sbr.rel (0) target = $region53
    $region52: #{cvae_forward.12} parent=1 // pred_region
      %247 = dma.done [#allocation4], 32
    $region53: #{cvae_forward.12} parent=1 // pred_fallthru
      _
    // Predicated region
    $region54: #{cvae_forward.12} parent=1 // pred_check
      _
    $region55: #{cvae_forward.12} parent=1 // pred_check_branch
      %249 = sbr.rel (0) target = $region57
    $region56: #{cvae_forward.12} parent=1 // pred_region
      %250 = dma.done [#allocation13], 32
    $region57: #{cvae_forward.12} parent=1 // pred_fallthru
      _
    %251 = vsyncpa [#allocation3], 1
    %252 = vsyncpa [#allocation6], 1
    %253 = vsyncpa [#allocation9], 1
    %254 = vsyncpa [#allocation4], 1
    %255 = vsyncpa [#allocation13], 1

// kernel: cvae_forward.9
$region0: #{cvae_forward.9}
  #allocation0 [shape = 'u32[]', space=smem, size = 0x4, offset = 0x4, fixed_abs, tag = 'smem constant byte address 0x4 - core index']
  #allocation1 [shape = 'u32[144,128]{1,0:T(1,128)}', space=vmem, size = 0x12000, scoped, tag = 'internal scratch']
  %s0 = inlined_call_operand.hbm [shape: bf16[16,16], index: 0, kind: input, shape index: {}]
  %s1 = inlined_call_operand.hbm [shape: bf16[16,96], index: 1, kind: input, shape index: {}]
  %s2 = inlined_call_operand.hbm [shape: f32[1,96], index: 2, kind: input, shape index: {}]
  %s3 = inlined_call_operand.hbm [shape: bf16[16,96], index: 3, kind: output, shape index: {}]
  %s4 = sld [smem:[#allocation0]]
  $region34: #{cvae_forward.9} parent=0
    _
  %s6 = ssub.s32 1, %s4
  %s7 = scalar_select 0, %s6, %s4
  $region1: #{cvae_forward.9} parent=0
    #allocation2 [shape = 'u8[4096]{0}', space=vmem, size = 0x1000, scoped, tag = 'input window, operand 0, single buffered']
    #allocation3 [shape = 's32[1]{0}', space=sflag, size = 0x4, scoped, tag = 'scoped memory for cvae_forward.9']
    #allocation4 [shape = 's32[1]{0}', space=sflag, size = 0x4, scoped, tag = 'scoped memory for cvae_forward.9']
    #allocation5 [shape = 'u8[4096]{0}', space=vmem, size = 0x1000, scoped, tag = 'input window, operand 1, single buffered']
    #allocation6 [shape = 's32[1]{0}', space=sflag, size = 0x4, scoped, tag = 'scoped memory for cvae_forward.9']
    #allocation7 [shape = 'u8[512]{0}', space=vmem, size = 0x400, scoped, tag = 'input window, operand 2, single buffered']
    #allocation8 [shape = 'u8[4096]{0}', space=vmem, size = 0x1000, scoped, tag = 'output window, operand 0, single buffered']
    %8 = vsyncpa [#allocation3], 0
    %9 = vsyncpa [#allocation6], 0
    %10 = vsyncpa [#allocation4], 0
    // Predicated region
    $region2: #{cvae_forward.9} parent=1 // pred_check
      _
    $region3: #{cvae_forward.9} parent=1 // pred_check_branch
      %12 = sbr.rel (0) target = $region5
    $region4: #{cvae_forward.9} parent=1 // pred_region
      %s14 = ssub.s32 128, 128
      %15 = vsyncadd [#allocation3], %s14
      %s16 = sshll.u32 [#allocation2], 4
      %s17 = int_to_ptr.vmem [resolvable:$true] %s16
      %22 = dma.hbm_to_vmem [thread:$0]  %s0, 128, %s17, [#allocation3], 64, 64, 4
    $region5: #{cvae_forward.9} parent=1 // pred_fallthru
      _
    // Predicated region
    $region6: #{cvae_forward.9} parent=1 // pred_check
      _
    $region7: #{cvae_forward.9} parent=1 // pred_check_branch
      %24 = sbr.rel (0) target = $region9
    $region8: #{cvae_forward.9} parent=1 // pred_region
      %s26 = ssub.s32 128, 128
      %27 = vsyncadd [#allocation6], %s26
      %s28 = sshll.u32 [#allocation5], 4
      %s29 = int_to_ptr.vmem [resolvable:$true] %s28
      %34 = dma.hbm_to_vmem [thread:$0]  %s1, 128, %s29, [#allocation6], 64, 64, 4
    $region9: #{cvae_forward.9} parent=1 // pred_fallthru
      _
    // Predicated region
    $region10: #{cvae_forward.9} parent=1 // pred_check
      _
    $region11: #{cvae_forward.9} parent=1 // pred_check_branch
      %36 = sbr.rel (0) target = $region13
    $region12: #{cvae_forward.9} parent=1 // pred_region
      %s38 = ssub.s32 16, 16
      %39 = vsyncadd [#allocation6], %s38
      %s41 = sshll.u32 [#allocation7], 4
      %s42 = int_to_ptr.vmem [resolvable:$true] %s41
      %44 = dma.hbm_to_vmem [thread:$0]  %s2, 16, %s42, [#allocation6]
    $region13: #{cvae_forward.9} parent=1 // pred_fallthru
      _
    // Predicated region
    $region14: #{cvae_forward.9} parent=1 // pred_check
      _
    $region15: #{cvae_forward.9} parent=1 // pred_check_branch
      %46 = sbr.rel (0) target = $region17
    $region16: #{cvae_forward.9} parent=1 // pred_region
      %47 = dma.done [#allocation3], 128
    $region17: #{cvae_forward.9} parent=1 // pred_fallthru
      _
    // Predicated region
    $region18: #{cvae_forward.9} parent=1 // pred_check
      _
    $region19: #{cvae_forward.9} parent=1 // pred_check_branch
      %49 = sbr.rel (0) target = $region21
    $region20: #{cvae_forward.9} parent=1 // pred_region
      %50 = dma.done [#allocation6], 128
    $region21: #{cvae_forward.9} parent=1 // pred_fallthru
      _
    // Predicated region
    $region22: #{cvae_forward.9} parent=1 // pred_check
      _
    $region23: #{cvae_forward.9} parent=1 // pred_check_branch
      %52 = sbr.rel (0) target = $region25
    $region24: #{cvae_forward.9} parent=1 // pred_region
      %53 = dma.done [#allocation6], 16
    $region25: #{cvae_forward.9} parent=1 // pred_fallthru
      _
    %v55 = vld [vmem:[#allocation2] sm:$0xf]
    %v56 = vld [vmem:[#allocation2 + $0x4] sm:$0xf]
    %v57 = vld [vmem:[#allocation5] sm:$0xf]
    %v58 = vld [vmem:[#allocation5 + $0x4] sm:$0xf]
    %v59 = vld [vmem:[#allocation7] sm:$0x1]
    %v61 = vlaneseq
    %v62 = vshrl.u32 %v61, 7
    %v63 = vsub.s32 0, %v62
    %v64 = vrot.slane %v59, %v63
    %v68 = vunpack.c.l.b16 %v55
    %v69 = vunpack.c.l.b16 %v56
    %v70 = vpack.c.b16 %v69, %v68
    %v73 = vunpack.c.l.b16 %v57
    %v74 = vunpack.c.l.b16 %v58
    %v75 = vpack.c.b16 %v74, %v73
    %vm77 = vcmask 130048
    %v79 = vsel %vm77, %v70, 0
    %81 = vmatprep.subr.bf16.mxu0 0
    %82 = vmatpush1.bf16.msra.mxu0 %v75
    %83 = vmatprep.subr.bf16.mxu0 0
    %84 = vmatpush1.bf16.msra.mxu0 0
    %85 = vmatprep.subr.bf16.mxu0 0
    %86 = vmatpush1.bf16.msra.mxu0 0
    %87 = vmatprep.subr.bf16.mxu0 0
    %88 = vmatpush1.bf16.msra.mxu0 0
    %89 = vmatprep.subr.bf16.mxu0 0
    %90 = vmatpush1.bf16.msra.mxu0 0
    %91 = vmatprep.subr.bf16.mxu0 0
    %92 = vmatpush1.bf16.msra.mxu0 0
    %93 = vmatprep.subr.bf16.mxu0 0
    %94 = vmatpush1.bf16.msra.mxu0 0
    %95 = vmatprep.subr.bf16.mxu0 0
    %96 = vmatpush1.bf16.msra.mxu0 0
    %97 = vmatprep.subr.bf16.mxu0 0
    %98 = vmatpush1.bf16.msra.mxu0 0
    %99 = vmatprep.subr.bf16.mxu0 0
    %100 = vmatpush1.bf16.msra.mxu0 0
    %101 = vmatprep.subr.bf16.mxu0 0
    %102 = vmatpush1.bf16.msra.mxu0 0
    %103 = vmatprep.subr.bf16.mxu0 0
    %104 = vmatpush1.bf16.msra.mxu0 0
    %105 = vmatprep.subr.bf16.mxu0 0
    %106 = vmatpush1.bf16.msra.mxu0 0
    %107 = vmatprep.subr.bf16.mxu0 0
    %108 = vmatpush1.bf16.msra.mxu0 0
    %109 = vmatprep.subr.bf16.mxu0 0
    %110 = vmatpush1.bf16.msra.mxu0 0
    %111 = vmatprep.subr.bf16.mxu0 0
    %112 = vmatpush1.bf16.msra.mxu0 0
    %113 = vmatprep.mubr.bf16.mxu0 0
    %114 = vmatmul.mubr.bf16.gmra.mrb[0].mxu0 %v79
    %v115 = vpop.f32.mrb[0].mxu0
    %v116 = vadd.f32 %v64, %v115
    %v117 = vpop.f32.mrb[0].mxu0
    %v118 = vpop.f32.mrb[0].mxu0
    %v119 = vadd.f32 %v64, %v118
    %v120 = vpop.f32.mrb[0].mxu0
    %121 = vdwg.mxu0
    %v122 = vpack.c.bf16 %v119, %v116
    %v124 = vunpack.c.l.b16 %v122
    %v125 = vunpack.c.h.b16 %v122
    %v126 = vpack.c.b16 %v124, %v124
    %v127 = vpack.c.b16 %v125, %v125
    %vm130 = vcmask 781312
    %131 = vst.msk [vmem:[#allocation8] sm:$0xf] %vm130, %v126
    %132 = vst.msk [vmem:[#allocation8 + $0x4] sm:$0xf] %vm130, %v127
    // Predicated region
    $region26: #{cvae_forward.9} parent=1 // pred_check
      _
    $region27: #{cvae_forward.9} parent=1 // pred_check_branch
      %134 = sbr.rel (0) target = $region29
    $region28: #{cvae_forward.9} parent=1 // pred_region
      %s136 = ssub.s32 128, 128
      %137 = vsyncadd [#allocation4], %s136
      %s138 = sshll.u32 [#allocation8], 4
      %s139 = int_to_ptr.vmem [resolvable:$true] %s138
      %144 = dma.vmem_to_hbm [thread:$0]  %s139, 128, %s3, [#allocation4], 64, 64, 4
    $region29: #{cvae_forward.9} parent=1 // pred_fallthru
      _
    // Predicated region
    $region30: #{cvae_forward.9} parent=1 // pred_check
      _
    $region31: #{cvae_forward.9} parent=1 // pred_check_branch
      %146 = sbr.rel (0) target = $region33
    $region32: #{cvae_forward.9} parent=1 // pred_region
      %147 = dma.done [#allocation4], 128
    $region33: #{cvae_forward.9} parent=1 // pred_fallthru
      _
    %148 = vsyncpa [#allocation3], 1
    %149 = vsyncpa [#allocation6], 1
    %150 = vsyncpa [#allocation4], 1

// kernel: cvae_forward.10
$region0: #{cvae_forward.10}
  #allocation0 [shape = 'u32[]', space=smem, size = 0x4, offset = 0x4, fixed_abs, tag = 'smem constant byte address 0x4 - core index']
  #allocation1 [shape = 'u32[144,128]{1,0:T(1,128)}', space=vmem, size = 0x12000, scoped, tag = 'internal scratch']
  #allocation2 [shape = 'f32[2,32]{1,0:T(2,128)}', space=vmem, size = 0x400, scoped, tag = 'scratch operand']
  %s0 = inlined_call_operand.hbm [shape: bf16[8,2,96], index: 0, kind: input, shape index: {}]
  %s1 = inlined_call_operand.hbm [shape: f32[8,2,1], index: 1, kind: input, shape index: {}]
  %s2 = inlined_call_operand.hbm [shape: bf16[32,96], index: 2, kind: input, shape index: {}]
  %s3 = inlined_call_operand.hbm [shape: f32[1,96], index: 3, kind: input, shape index: {}]
  %s4 = inlined_call_operand.hbm [shape: f32[2,32], index: 4, kind: output, shape index: {}]
  %s5 = sld [smem:[#allocation0]]
  $region73: #{cvae_forward.10} parent=0
    _
  %s7 = ssub.s32 1, %s5
  %s8 = scalar_select 0, %s7, %s5
  $region1: #{cvae_forward.10} parent=0
    #allocation3 [shape = 'u8[1024]{0}', space=vmem, size = 0x400, scoped, tag = 'input window, operand 0']
    #allocation4 [shape = 's32[2]{0}', space=sflag, size = 0x8, scoped, tag = 'scoped memory for cvae_forward.10']
    #allocation5 [shape = 's32[2]{0}', space=sflag, size = 0x8, scoped, tag = 'scoped memory for cvae_forward.10']
    #allocation6 [shape = 'u8[2048]{0}', space=vmem, size = 0x800, scoped, tag = 'input window, operand 1']
    #allocation7 [shape = 's32[2]{0}', space=sflag, size = 0x8, scoped, tag = 'scoped memory for cvae_forward.10']
    #allocation8 [shape = 'u8[8192]{0}', space=vmem, size = 0x2000, scoped, tag = 'input window, operand 2, single buffered']
    #allocation9 [shape = 'u8[512]{0}', space=vmem, size = 0x400, scoped, tag = 'input window, operand 3, single buffered']
    #allocation10 [shape = 's32[1]{0}', space=sflag, size = 0x4, scoped, tag = 'scoped memory for cvae_forward.10']
    #allocation11 [shape = 'u8[1024]{0}', space=vmem, size = 0x400, scoped, tag = 'output window, operand 0, single buffered']
    %9 = vsyncpa [#allocation4], 0
    %s10 = scalar_lea.sflag [#allocation4], 1
    %11 = vsyncpa %s10, 0
    %12 = vsyncpa [#allocation7], 0
    %s13 = scalar_lea.sflag [#allocation7], 1
    %14 = vsyncpa %s13, 0
    %15 = vsyncpa [#allocation10], 0
    %16 = vsyncpa [#allocation5], 0
    loop: start=0, step=1, limit=10
    $region2: #{cvae_forward.10} parent=1 // loop_pre_header
      _
    $region3: #{cvae_forward.10} parent=1 // loop_header
      %s18 = sphi 0, %s22
      %p19 = scmp.ge.s32.totalorder %s18, 10
      %s28 = sphi 0, %s30
      %s31 = sphi 0, %s28
      %s32 = sphi 0, %s31
      %s48 = sphi 0, %s32
      %s54 = sphi 0, %s56
      %s57 = sphi 0, %s54
      %s58 = sphi 0, %s57
      %s74 = sphi 0, %s58
      %s78 = sphi 0, %s78
      %s80 = sphi 0, %s78
      %s81 = sphi 0, %s80
      %s95 = sphi 0, %s81
      %s99 = sphi 0, %s99
      %s101 = sphi 0, %s99
      %s102 = sphi 0, %s101
      %s116 = sphi 0, %s102
      %s120 = sphi 0, %s120
      %s122 = sphi 0, %s120
      %s123 = sphi 0, %s122
      %s137 = sphi 0, %s123
    $region4: #{cvae_forward.10} parent=1 // loop_header_branch
      %21 = sbr.rel (%p19) target = $region8
    $region5: #{cvae_forward.10} parent=1 // loop_body
      %s23 = ssub.s32 %s18, 1
      %s24 = ssub.s32 %s18, 2
      %s25 = sadd.s32 %s18, 1
      %s26 = ssub.s32 %s18, %s25
      %p27 = scmp.eq.s32.totalorder %s26, 0
      %s29 = sadd.s32 %s28, 1
      %s30 = scalar_select %p27, %s28, %s29
      %p33 = pneg %p27
      %p34 = scmp.eq.s32.totalorder %s18, 7
      %p35 = por %p33, %p34
      %p36 = scmp.ne.s32.totalorder %s28, %s31
      %p37 = scmp.eq.s32.totalorder %s18, 0
      %p38 = por %p36, %p37
      %p39 = scmp.ne.s32.totalorder %s28, %s31
      %p40 = scmp.eq.s32.totalorder %s23, 7
      %p41 = por %p39, %p40
      %p42 = scmp.ne.s32.totalorder %s31, %s32
      %p43 = scmp.eq.s32.totalorder %s23, 0
      %p44 = por %p42, %p43
      %p45 = scmp.ne.s32.totalorder %s31, %s32
      %p46 = scmp.eq.s32.totalorder %s24, 7
      %p47 = por %p45, %p46
      %p49 = scmp.ne.s32.totalorder %s32, %s48
      %p50 = scmp.eq.s32.totalorder %s24, 0
      %p51 = por %p49, %p50
      %s52 = ssub.s32 %s18, %s25
      %p53 = scmp.eq.s32.totalorder %s52, 0
      %s55 = sadd.s32 %s54, 1
      %s56 = scalar_select %p53, %s54, %s55
      %p59 = pneg %p53
      %p60 = scmp.eq.s32.totalorder %s18, 7
      %p61 = por %p59, %p60
      %p62 = scmp.ne.s32.totalorder %s54, %s57
      %p63 = scmp.eq.s32.totalorder %s18, 0
      %p64 = por %p62, %p63
      %p65 = scmp.ne.s32.totalorder %s54, %s57
      %p66 = scmp.eq.s32.totalorder %s23, 7
      %p67 = por %p65, %p66
      %p68 = scmp.ne.s32.totalorder %s57, %s58
      %p69 = scmp.eq.s32.totalorder %s23, 0
      %p70 = por %p68, %p69
      %p71 = scmp.ne.s32.totalorder %s57, %s58
      %p72 = scmp.eq.s32.totalorder %s24, 7
      %p73 = por %p71, %p72
      %p75 = scmp.ne.s32.totalorder %s58, %s74
      %p76 = scmp.eq.s32.totalorder %s24, 0
      %p77 = por %p75, %p76
      %s79 = sadd.s32 %s78, 1
      %p82 = scmp.eq.s32.totalorder %s18, 7
      %p83 = scmp.ne.s32.totalorder %s78, %s80
      %p84 = scmp.eq.s32.totalorder %s18, 0
      %p85 = por %p83, %p84
      %p86 = scmp.ne.s32.totalorder %s78, %s80
      %p87 = scmp.eq.s32.totalorder %s23, 7
      %p88 = por %p86, %p87
      %p89 = scmp.ne.s32.totalorder %s80, %s81
      %p90 = scmp.eq.s32.totalorder %s23, 0
      %p91 = por %p89, %p90
      %p92 = scmp.ne.s32.totalorder %s80, %s81
      %p93 = scmp.eq.s32.totalorder %s24, 7
      %p94 = por %p92, %p93
      %p96 = scmp.ne.s32.totalorder %s81, %s95
      %p97 = scmp.eq.s32.totalorder %s24, 0
      %p98 = por %p96, %p97
      %s100 = sadd.s32 %s99, 1
      %p103 = scmp.eq.s32.totalorder %s18, 7
      %p104 = scmp.ne.s32.totalorder %s99, %s101
      %p105 = scmp.eq.s32.totalorder %s18, 0
      %p106 = por %p104, %p105
      %p107 = scmp.ne.s32.totalorder %s99, %s101
      %p108 = scmp.eq.s32.totalorder %s23, 7
      %p109 = por %p107, %p108
      %p110 = scmp.ne.s32.totalorder %s101, %s102
      %p111 = scmp.eq.s32.totalorder %s23, 0
      %p112 = por %p110, %p111
      %p113 = scmp.ne.s32.totalorder %s101, %s102
      %p114 = scmp.eq.s32.totalorder %s24, 7
      %p115 = por %p113, %p114
      %p117 = scmp.ne.s32.totalorder %s102, %s116
      %p118 = scmp.eq.s32.totalorder %s24, 0
      %p119 = por %p117, %p118
      %s121 = sadd.s32 %s120, 1
      %p124 = scmp.eq.s32.totalorder %s18, 7
      %p125 = scmp.ne.s32.totalorder %s120, %s122
      %p126 = scmp.eq.s32.totalorder %s18, 0
      %p127 = por %p125, %p126
      %p128 = scmp.ne.s32.totalorder %s120, %s122
      %p129 = scmp.eq.s32.totalorder %s23, 7
      %p130 = por %p128, %p129
      %p131 = scmp.ne.s32.totalorder %s122, %s123
      %p132 = scmp.eq.s32.totalorder %s23, 0
      %p133 = por %p131, %p132
      %p134 = scmp.ne.s32.totalorder %s122, %s123
      %p135 = scmp.eq.s32.totalorder %s24, 7
      %p136 = por %p134, %p135
      %p138 = scmp.ne.s32.totalorder %s123, %s137
      %p139 = scmp.eq.s32.totalorder %s24, 0
      %p140 = por %p138, %p139
      %p141 = scmp.le.s32.totalorder 1, %s18
      %p142 = scmp.lt.s32.totalorder %s18, 9
      %p143 = pnand %p141, %p142
      %p144 = pneg %p143
      // Predicated region
      $region9: #{cvae_forward.10} parent=5 // pred_check
        _
      $region10: #{cvae_forward.10} parent=5 // pred_check_branch
        %146 = sbr.rel (%p143) target = $region12
      $region11: #{cvae_forward.10} parent=5 // pred_region
        %s147 = ssub.s32 %s18, 1
        // Predicated region
        $region13: #{cvae_forward.10} parent=11 // pred_check
          %p148 = pneg %p91
        $region14: #{cvae_forward.10} parent=11 // pred_check_branch
          %150 = sbr.rel (%p148) target = $region16
        $region15: #{cvae_forward.10} parent=11 // pred_region
          %s152 = ssub.s32 256, 256
          %153 = vsyncadd [#allocation7], %s152
          %s154 = sshll.u32 [#allocation8], 4
          %s155 = int_to_ptr.vmem [resolvable:$true] %s154
          %160 = dma.hbm_to_vmem [thread:$0]  %s2, 256, %s155, [#allocation7], 64, 64, 4
        $region16: #{cvae_forward.10} parent=11 // pred_fallthru
          _
        // Predicated region
        $region17: #{cvae_forward.10} parent=11 // pred_check
          %p161 = pneg %p112
        $region18: #{cvae_forward.10} parent=11 // pred_check_branch
          %163 = sbr.rel (%p161) target = $region20
        $region19: #{cvae_forward.10} parent=11 // pred_region
          %s165 = ssub.s32 16, 16
          %166 = vsyncadd [#allocation10], %s165
          %s168 = sshll.u32 [#allocation9], 4
          %s169 = int_to_ptr.vmem [resolvable:$true] %s168
          %171 = dma.hbm_to_vmem [thread:$0]  %s3, 16, %s169, [#allocation10]
        $region20: #{cvae_forward.10} parent=11 // pred_fallthru
          _
      $region12: #{cvae_forward.10} parent=5 // pred_fallthru
        _
      %p172 = scmp.lt.s32.totalorder %s18, 8
      // Predicated region
      $region21: #{cvae_forward.10} parent=5 // pred_check
        %p173 = pneg %p172
      $region22: #{cvae_forward.10} parent=5 // pred_check_branch
        %175 = sbr.rel (%p173) target = $region24
      $region23: #{cvae_forward.10} parent=5 // pred_region
        // Predicated region
        $region25: #{cvae_forward.10} parent=23 // pred_check
          %p176 = pneg %p38
        $region26: #{cvae_forward.10} parent=23 // pred_check_branch
          %178 = sbr.rel (%p176) target = $region28
        $region27: #{cvae_forward.10} parent=23 // pred_region
          %s179 = sand.u32 %s28, 1
          %s180 = scalar_lea.sflag [#allocation4], %s179
          %s181 = sand.u32 %s28, 1
          %s182 = scalar_lea.vmem [#allocation3], %s181
          %s184 = ssub.s32 16, 16
          %185 = vsyncadd %s180, %s184
          %s186 = smul.addr %s18, 16
          %s187 = scalar_lea.hbm %s0, %s186
          %s189 = sshll.u32 %s182, 4
          %s190 = int_to_ptr.vmem [resolvable:$true] %s189
          %192 = dma.hbm_to_vmem [thread:$0]  %s187, 16, %s190, %s180
        $region28: #{cvae_forward.10} parent=23 // pred_fallthru
          _
        // Predicated region
        $region29: #{cvae_forward.10} parent=23 // pred_check
          %p193 = pneg %p64
        $region30: #{cvae_forward.10} parent=23 // pred_check_branch
          %195 = sbr.rel (%p193) target = $region32
        $region31: #{cvae_forward.10} parent=23 // pred_region
          %s196 = sand.u32 %s18, 1
          %s197 = scalar_lea.sflag [#allocation7], %s196
          %s198 = sand.u32 %s54, 1
          %s199 = smul.addr %s198, 2
          %s200 = scalar_lea.vmem [#allocation6], %s199
          %s202 = ssub.s32 32, 32
          %203 = vsyncadd %s197, %s202
          %s204 = smul.addr %s18, 32
          %s205 = scalar_lea.hbm %s1, %s204
          %s207 = sshll.u32 %s200, 4
          %s208 = int_to_ptr.vmem [resolvable:$true] %s207
          %210 = dma.hbm_to_vmem [thread:$0]  %s205, 32, %s208, %s197
        $region32: #{cvae_forward.10} parent=23 // pred_fallthru
          _
      $region24: #{cvae_forward.10} parent=5 // pred_fallthru
        _
      %p211 = scmp.le.s32.totalorder 1, %s18
      %p212 = scmp.lt.s32.totalorder %s18, 9
      %p213 = pnand %p211, %p212
      %p214 = pneg %p213
      // Predicated region
      $region33: #{cvae_forward.10} parent=5 // pred_check
        _
      $region34: #{cvae_forward.10} parent=5 // pred_check_branch
        %216 = sbr.rel (%p213) target = $region36
      $region35: #{cvae_forward.10} parent=5 // pred_region
        %s217 = ssub.s32 %s18, 1
        %s218 = sand.u32 %s31, 1
        %s219 = scalar_lea.sflag [#allocation4], %s218
        %s220 = sand.u32 %s31, 1
        %s221 = scalar_lea.vmem [#allocation3], %s220
        // Predicated region
        $region37: #{cvae_forward.10} parent=35 // pred_check
          %p222 = pneg %p44
        $region38: #{cvae_forward.10} parent=35 // pred_check_branch
          %224 = sbr.rel (%p222) target = $region40
        $region39: #{cvae_forward.10} parent=35 // pred_region
          %225 = dma.done %s219, 16
        $region40: #{cvae_forward.10} parent=35 // pred_fallthru
          _
        %s226 = sand.u32 %s23, 1
        %s227 = scalar_lea.sflag [#allocation7], %s226
        %s228 = sand.u32 %s57, 1
        %s229 = smul.addr %s228, 2
        %s230 = scalar_lea.vmem [#allocation6], %s229
        // Predicated region
        $region41: #{cvae_forward.10} parent=35 // pred_check
          %p231 = pneg %p70
        $region42: #{cvae_forward.10} parent=35 // pred_check_branch
          %233 = sbr.rel (%p231) target = $region44
        $region43: #{cvae_forward.10} parent=35 // pred_region
          %234 = dma.done %s227, 32
        $region44: #{cvae_forward.10} parent=35 // pred_fallthru
          _
        // Predicated region
        $region45: #{cvae_forward.10} parent=35 // pred_check
          %p235 = pneg %p91
        $region46: #{cvae_forward.10} parent=35 // pred_check_branch
          %237 = sbr.rel (%p235) target = $region48
        $region47: #{cvae_forward.10} parent=35 // pred_region
          %238 = dma.done [#allocation7], 256
        $region48: #{cvae_forward.10} parent=35 // pred_fallthru
          _
        // Predicated region
        $region49: #{cvae_forward.10} parent=35 // pred_check
          %p239 = pneg %p112
        $region50: #{cvae_forward.10} parent=35 // pred_check_branch
          %241 = sbr.rel (%p239) target = $region52
        $region51: #{cvae_forward.10} parent=35 // pred_region
          %242 = dma.done [#allocation10], 16
        $region52: #{cvae_forward.10} parent=35 // pred_fallthru
          _
        %s243 = sand.u32 %s31, 1
        %s244 = scalar_lea.sflag [#allocation4], %s243
        %s245 = sand.u32 %s31, 1
        %s246 = scalar_lea.vmem [#allocation3], %s245
        %p247 = pneg %p44
        %p248 = pneg %p41
        %s249 = sand.u32 %s23, 1
        %s250 = scalar_lea.sflag [#allocation7], %s249
        %s251 = sand.u32 %s57, 1
        %s252 = smul.addr %s251, 2
        %s253 = scalar_lea.vmem [#allocation6], %s252
        %p254 = pneg %p70
        %p255 = pneg %p67
        %p256 = pneg %p91
        %p257 = pneg %p88
        %p258 = pneg %p112
        %p259 = pneg %p109
        %p260 = pneg %p133
        %p261 = pneg %p130
        %p263 = scmp.eq.s32.totalorder %s23, 0
        // Predicated region
        $region53: #{cvae_forward.10} parent=35 // pred_check
          %p264 = pneg %p263
        $region54: #{cvae_forward.10} parent=35 // pred_check_branch
          %266 = sbr.rel (%p264) target = $region56
        $region55: #{cvae_forward.10} parent=35 // pred_region
          %vm267 = vcmask 254976
          %268 = vst.msk [vmem:[#allocation2] sm:$0x3] %vm267, 0.0
        $region56: #{cvae_forward.10} parent=35 // pred_fallthru
          _
        %v269 = vld [vmem:[#allocation2] sm:$0x3]
        %v270 = vld [vmem:[%s221] sm:$0x1]
        %v271 = vunpack.c.l.bf16 %v270
        %v272 = vld [vmem:[#allocation8] sm:$0xf]
        %v273 = vld [vmem:[#allocation8 + $0x4] sm:$0xf]
        %v274 = vld [vmem:[#allocation8 + $0x8] sm:$0xf]
        %v275 = vld [vmem:[#allocation8 + $0xc] sm:$0xf]
        %v276 = vld [vmem:[#allocation9] sm:$0x1]
        %v277 = vpack.c.bf16 %v269, %v269
        %v279 = vlaneseq
        %v280 = vshrl.u32 %v279, 7
        %v281 = vsub.s32 0, %v280
        %v282 = vrot.slane %v276, %v281
        %v288 = vunpack.c.l.b16 %v272
        %v289 = vunpack.c.l.b16 %v273
        %v290 = vunpack.c.l.b16 %v274
        %v291 = vunpack.c.l.b16 %v275
        %v292 = vpack.c.b16 %v289, %v288
        %v293 = vpack.c.b16 %v291, %v290
        %vm296 = vcmask 261120
        %v298 = vsel %vm296, %v277, 0
        %300 = vmatprep.subr.bf16.mxu0 0
        %301 = vmatpush1.bf16.msra.mxu0 %v292
        %302 = vmatprep.subr.bf16.mxu0 0
        %303 = vmatpush1.bf16.msra.mxu0 %v293
        %304 = vmatprep.subr.bf16.mxu0 0
        %305 = vmatpush1.bf16.msra.mxu0 0
        %306 = vmatprep.subr.bf16.mxu0 0
        %307 = vmatpush1.bf16.msra.mxu0 0
        %308 = vmatprep.subr.bf16.mxu0 0
        %309 = vmatpush1.bf16.msra.mxu0 0
        %310 = vmatprep.subr.bf16.mxu0 0
        %311 = vmatpush1.bf16.msra.mxu0 0
        %312 = vmatprep.subr.bf16.mxu0 0
        %313 = vmatpush1.bf16.msra.mxu0 0
        %314 = vmatprep.subr.bf16.mxu0 0
        %315 = vmatpush1.bf16.msra.mxu0 0
        %316 = vmatprep.subr.bf16.mxu0 0
        %317 = vmatpush1.bf16.msra.mxu0 0
        %318 = vmatprep.subr.bf16.mxu0 0
        %319 = vmatpush1.bf16.msra.mxu0 0
        %320 = vmatprep.subr.bf16.mxu0 0
        %321 = vmatpush1.bf16.msra.mxu0 0
        %322 = vmatprep.subr.bf16.mxu0 0
        %323 = vmatpush1.bf16.msra.mxu0 0
        %324 = vmatprep.subr.bf16.mxu0 0
        %325 = vmatpush1.bf16.msra.mxu0 0
        %326 = vmatprep.subr.bf16.mxu0 0
        %327 = vmatpush1.bf16.msra.mxu0 0
        %328 = vmatprep.subr.bf16.mxu0 0
        %329 = vmatpush1.bf16.msra.mxu0 0
        %330 = vmatprep.subr.bf16.mxu0 0
        %331 = vmatpush1.bf16.msra.mxu0 0
        %332 = vmatprep.mubr.bf16.mxu0 0
        %333 = vmatmul.mubr.bf16.gmra.mrb[0].mxu0 %v298
        %v334 = vpop.f32.mrb[0].mxu0
        %v335 = vadd.f32 %v282, %v334
        %v336 = vpop.f32.mrb[0].mxu0
        %v337 = vpop.f32.mrb[0].mxu0
        %v338 = vpop.f32.mrb[0].mxu0
        %339 = vdwg.mxu0
        %v340 = vadd.f32 %v271, %v335
        %v341 = vxor.u32 %v340, 2147483648
        %v342 = vmul.f32 %v341, 1.442695
        %v343 = vpow.pop %v342
        %v344 = vadd.f32 %v343, 1.0
        %v345 = vrcp.pop %v344
        %v346 = vmul.f32 1.0, %v345
        %v349 = vunpack.c.l.s4 1983009808
        %v350 = vunpack.c.0.s8 %v349
        %v351 = vlaneseq
        %v352 = vshrl.u32 %v351, 7
        %v353 = vsub.s32 %v350, %v352
        %v354 = vrot.slane %v335, %v353
        %355 = vrot.lane.b32.xlu0 %v354, 64
        %v356 = vpop.permute.xlu0 %355
        %v358 = vmul.f32 %v346, %v356
        %360 = vrot.lane.b32.xlu0 %v358, 64
        %v361 = vpop.permute.xlu0 %360
        %v363 = vadd.f32 %v271, %v361
        %v364 = vtanh.pop %v363
        %v365 = vsub.f32 1.0, %v346
        %367 = vrot.lane.b32.xlu0 %v364, 96
        %v368 = vpop.permute.xlu0 %367
        %v370 = vmul.f32 %v365, %v368
        %v373 = vunpack.c.l.s4 1983009808
        %v374 = vunpack.c.0.s8 %v373
        %v375 = vlaneseq
        %v376 = vshrl.u32 %v375, 7
        %v377 = vsub.s32 %v374, %v376
        %v378 = vrot.slane %v269, %v377
        %379 = vrot.lane.b32.xlu0 %v378, 32
        %v380 = vpop.permute.xlu0 %379
        %v382 = vmul.f32 %v346, %v380
        %v383 = vadd.f32 %v370, %v382
        %v384 = vld [vmem:[%s230] sm:$0x3]
        %386 = vset.pattern.permute.xlu0 0
        %387 = vperm.xlu0 %386, %v384
        %v388 = vpop.permute.xlu0 %387
        %v392 = vunpack.c.l.s4 1983009808
        %v393 = vunpack.c.0.s8 %v392
        %v394 = vlaneseq
        %v395 = vshrl.u32 %v394, 7
        %v396 = vsub.s32 %v393, %v395
        %v397 = vrot.slane %v383, %v396
        %398 = vrot.lane.b32.xlu0 %v397, 96
        %v399 = vpop.permute.xlu0 %398
        %v401 = vmul.f32 %v388, %v399
        %v402 = vsub.f32 1.0, %v384
        %404 = vset.pattern.permute.xlu0 0
        %405 = vperm.xlu0 %404, %v402
        %v406 = vpop.permute.xlu0 %405
        %v408 = vmul.f32 %v406, %v269
        %v409 = vadd.f32 %v401, %v408
        %vm410 = vcmask 254976
        %411 = vst.msk [vmem:[#allocation2] sm:$0x3] %vm410, %v409
        %p412 = scmp.eq.s32.totalorder %s23, 7
        // Predicated region
        $region57: #{cvae_forward.10} parent=35 // pred_check
          %p413 = pneg %p412
        $region58: #{cvae_forward.10} parent=35 // pred_check_branch
          %415 = sbr.rel (%p413) target = $region60
        $region59: #{cvae_forward.10} parent=35 // pred_region
          %v416 = vld [vmem:[#allocation2] sm:$0x3]
          %417 = vst.msk [vmem:[#allocation11] sm:$0x3] %vm410, %v416
        $region60: #{cvae_forward.10} parent=35 // pred_fallthru
          _
        // Predicated region
        $region61: #{cvae_forward.10} parent=35 // pred_check
          %p418 = pneg %p130
        $region62: #{cvae_forward.10} parent=35 // pred_check_branch
          %420 = sbr.rel (%p418) target = $region64
        $region63: #{cvae_forward.10} parent=35 // pred_region
          %s422 = ssub.s32 32, 32
          %423 = vsyncadd [#allocation5], %s422
          %s425 = sshll.u32 [#allocation11], 4
          %s426 = int_to_ptr.vmem [resolvable:$true] %s425
          %428 = dma.vmem_to_hbm [thread:$0]  %s426, 32, %s4, [#allocation5]
        $region64: #{cvae_forward.10} parent=35 // pred_fallthru
          _
        // Predicated region
        $region65: #{cvae_forward.10} parent=35 // pred_check
          %p429 = pneg %p130
        $region66: #{cvae_forward.10} parent=35 // pred_check_branch
          %431 = sbr.rel (%p429) target = $region68
        $region67: #{cvae_forward.10} parent=35 // pred_region
          %432 = dma.done [#allocation5], 32
        $region68: #{cvae_forward.10} parent=35 // pred_fallthru
          _
      $region36: #{cvae_forward.10} parent=5 // pred_fallthru
        _
      %p433 = scmp.le.s32.totalorder 2, %s18
      // Predicated region
      $region69: #{cvae_forward.10} parent=5 // pred_check
        %p434 = pneg %p433
      $region70: #{cvae_forward.10} parent=5 // pred_check_branch
        %436 = sbr.rel (%p434) target = $region72
      $region71: #{cvae_forward.10} parent=5 // pred_region
        %s437 = ssub.s32 %s18, 2
      $region72: #{cvae_forward.10} parent=5 // pred_fallthru
        _
    $region6: #{cvae_forward.10} parent=1 // loop_footer
      %s22 = sadd.s32 1, %s18
    $region7: #{cvae_forward.10} parent=1 // loop_footer_branch
      %17 = sbr.rel target = $region3
    $region8: #{cvae_forward.10} parent=1 // loop_exit
      _
    %438 = vsyncpa [#allocation4], 1
    %s439 = scalar_lea.sflag [#allocation4], 1
    %440 = vsyncpa %s439, 1
    %441 = vsyncpa [#allocation7], 1
    %s442 = scalar_lea.sflag [#allocation7], 1
    %443 = vsyncpa %s442, 1
    %444 = vsyncpa [#allocation10], 1
    %445 = vsyncpa [#allocation5], 1
    %s446 = scalar_lea.sflag [#allocation5], 1
    %447 = vsyncpa %s446, 1

// kernel: cvae_forward.13
$region0: #{cvae_forward.13}
  #allocation0 [shape = 'u32[]', space=smem, size = 0x4, offset = 0x4, fixed_abs, tag = 'smem constant byte address 0x4 - core index']
  #allocation1 [shape = 'u32[144,128]{1,0:T(1,128)}', space=vmem, size = 0x12000, scoped, tag = 'internal scratch']
  %s0 = inlined_call_operand.hbm [shape: f32[2,32], index: 0, kind: input, shape index: {}]
  %s1 = inlined_call_operand.hbm [shape: f32[2,16], index: 1, kind: input, shape index: {}]
  %s2 = inlined_call_operand.hbm [shape: f32[2,8], index: 2, kind: input, shape index: {}]
  %s3 = inlined_call_operand.hbm [shape: f32[32,32], index: 3, kind: input, shape index: {}]
  %s4 = inlined_call_operand.hbm [shape: f32[16,32], index: 4, kind: input, shape index: {}]
  %s5 = inlined_call_operand.hbm [shape: f32[1,32], index: 5, kind: input, shape index: {}]
  %s6 = inlined_call_operand.hbm [shape: f32[32,16], index: 6, kind: input, shape index: {}]
  %s7 = inlined_call_operand.hbm [shape: f32[1,16], index: 7, kind: input, shape index: {}]
  %s8 = inlined_call_operand.hbm [shape: f32[16,32], index: 8, kind: input, shape index: {}]
  %s9 = inlined_call_operand.hbm [shape: f32[1,32], index: 9, kind: input, shape index: {}]
  %s10 = inlined_call_operand.hbm [shape: f32[32,16], index: 10, kind: input, shape index: {}]
  %s11 = inlined_call_operand.hbm [shape: f32[1,16], index: 11, kind: input, shape index: {}]
  %s12 = inlined_call_operand.hbm [shape: f32[8,32], index: 12, kind: input, shape index: {}]
  %s13 = inlined_call_operand.hbm [shape: f32[16,32], index: 13, kind: input, shape index: {}]
  %s14 = inlined_call_operand.hbm [shape: f32[1,32], index: 14, kind: input, shape index: {}]
  %s15 = inlined_call_operand.hbm [shape: f32[8,32], index: 15, kind: input, shape index: {}]
  %s16 = inlined_call_operand.hbm [shape: f32[16,32], index: 16, kind: input, shape index: {}]
  %s17 = inlined_call_operand.hbm [shape: f32[1,32], index: 17, kind: input, shape index: {}]
  %s18 = inlined_call_operand.hbm [shape: f32[2,16], index: 18, kind: output, shape index: {0}]
  %s19 = inlined_call_operand.hbm [shape: f32[2,16], index: 19, kind: output, shape index: {1}]
  %s20 = inlined_call_operand.hbm [shape: f32[2,32], index: 20, kind: output, shape index: {2}]
  %s21 = inlined_call_operand.hbm [shape: f32[2,32], index: 21, kind: output, shape index: {3}]
  %22 = xla_tuple %s18, %s19, %s20, %s21
  %s23 = sld [smem:[#allocation0]]
  $region178: #{cvae_forward.13} parent=0
    _
  %s25 = ssub.s32 1, %s23
  %s26 = scalar_select 0, %s25, %s23
  $region1: #{cvae_forward.13} parent=0
    #allocation2 [shape = 'u8[1024]{0}', space=vmem, size = 0x400, scoped, tag = 'input window, operand 0, single buffered']
    #allocation3 [shape = 's32[1]{0}', space=sflag, size = 0x4, scoped, tag = 'scoped memory for cvae_forward.13']
    #allocation4 [shape = 's32[1]{0}', space=sflag, size = 0x4, scoped, tag = 'scoped memory for cvae_forward.13']
    #allocation5 [shape = 'u8[1024]{0}', space=vmem, size = 0x400, scoped, tag = 'input window, operand 1, single buffered']
    #allocation6 [shape = 's32[1]{0}', space=sflag, size = 0x4, scoped, tag = 'scoped memory for cvae_forward.13']
    #allocation7 [shape = 'u8[1024]{0}', space=vmem, size = 0x400, scoped, tag = 'input window, operand 2, single buffered']
    #allocation8 [shape = 'u8[16384]{0}', space=vmem, size = 0x4000, scoped, tag = 'input window, operand 3, single buffered']
    #allocation9 [shape = 's32[1]{0}', space=sflag, size = 0x4, scoped, tag = 'scoped memory for cvae_forward.13']
    #allocation10 [shape = 'u8[8192]{0}', space=vmem, size = 0x2000, scoped, tag = 'input window, operand 4, single buffered']
    #allocation11 [shape = 'u8[512]{0}', space=vmem, size = 0x400, scoped, tag = 'input window, operand 5, single buffered']
    #allocation12 [shape = 's32[1]{0}', space=sflag, size = 0x4, scoped, tag = 'scoped memory for cvae_forward.13']
    #allocation13 [shape = 'u8[16384]{0}', space=vmem, size = 0x4000, scoped, tag = 'input window, operand 6, single buffered']
    #allocation14 [shape = 'u8[512]{0}', space=vmem, size = 0x400, scoped, tag = 'input window, operand 7, single buffered']
    #allocation15 [shape = 's32[1]{0}', space=sflag, size = 0x4, scoped, tag = 'scoped memory for cvae_forward.13']
    #allocation16 [shape = 'u8[8192]{0}', space=vmem, size = 0x2000, scoped, tag = 'input window, operand 8, single buffered']
    #allocation17 [shape = 'u8[512]{0}', space=vmem, size = 0x400, scoped, tag = 'input window, operand 9, single buffered']
    #allocation18 [shape = 's32[1]{0}', space=sflag, size = 0x4, scoped, tag = 'scoped memory for cvae_forward.13']
    #allocation19 [shape = 'u8[16384]{0}', space=vmem, size = 0x4000, scoped, tag = 'input window, operand 10, single buffered']
    #allocation20 [shape = 'u8[512]{0}', space=vmem, size = 0x400, scoped, tag = 'input window, operand 11, single buffered']
    #allocation21 [shape = 's32[1]{0}', space=sflag, size = 0x4, scoped, tag = 'scoped memory for cvae_forward.13']
    #allocation22 [shape = 'u8[4096]{0}', space=vmem, size = 0x1000, scoped, tag = 'input window, operand 12, single buffered']
    #allocation23 [shape = 'u8[8192]{0}', space=vmem, size = 0x2000, scoped, tag = 'input window, operand 13, single buffered']
    #allocation24 [shape = 's32[1]{0}', space=sflag, size = 0x4, scoped, tag = 'scoped memory for cvae_forward.13']
    #allocation25 [shape = 'u8[512]{0}', space=vmem, size = 0x400, scoped, tag = 'input window, operand 14, single buffered']
    #allocation26 [shape = 'u8[4096]{0}', space=vmem, size = 0x1000, scoped, tag = 'input window, operand 15, single buffered']
    #allocation27 [shape = 's32[1]{0}', space=sflag, size = 0x4, scoped, tag = 'scoped memory for cvae_forward.13']
    #allocation28 [shape = 'u8[8192]{0}', space=vmem, size = 0x2000, scoped, tag = 'input window, operand 16, single buffered']
    #allocation29 [shape = 'u8[512]{0}', space=vmem, size = 0x400, scoped, tag = 'input window, operand 17, single buffered']
    #allocation30 [shape = 's32[1]{0}', space=sflag, size = 0x4, scoped, tag = 'scoped memory for cvae_forward.13']
    #allocation31 [shape = 'u8[1024]{0}', space=vmem, size = 0x400, scoped, tag = 'output window, operand 0, single buffered']
    #allocation32 [shape = 'u8[1024]{0}', space=vmem, size = 0x400, scoped, tag = 'output window, operand 1, single buffered']
    #allocation33 [shape = 's32[1]{0}', space=sflag, size = 0x4, scoped, tag = 'scoped memory for cvae_forward.13']
    #allocation34 [shape = 'u8[1024]{0}', space=vmem, size = 0x400, scoped, tag = 'output window, operand 2, single buffered']
    #allocation35 [shape = 'u8[1024]{0}', space=vmem, size = 0x400, scoped, tag = 'output window, operand 3, single buffered']
    #allocation36 [shape = 's32[1]{0}', space=sflag, size = 0x4, scoped, tag = 'scoped memory for cvae_forward.13']
    %27 = vsyncpa [#allocation3], 0
    %28 = vsyncpa [#allocation6], 0
    %29 = vsyncpa [#allocation9], 0
    %30 = vsyncpa [#allocation12], 0
    %31 = vsyncpa [#allocation15], 0
    %32 = vsyncpa [#allocation18], 0
    %33 = vsyncpa [#allocation21], 0
    %34 = vsyncpa [#allocation24], 0
    %35 = vsyncpa [#allocation27], 0
    %36 = vsyncpa [#allocation30], 0
    %37 = vsyncpa [#allocation4], 0
    %38 = vsyncpa [#allocation33], 0
    %39 = vsyncpa [#allocation36], 0
    // Predicated region
    $region2: #{cvae_forward.13} parent=1 // pred_check
      _
    $region3: #{cvae_forward.13} parent=1 // pred_check_branch
      %41 = sbr.rel (0) target = $region5
    $region4: #{cvae_forward.13} parent=1 // pred_region
      %s43 = ssub.s32 32, 32
      %44 = vsyncadd [#allocation3], %s43
      %s46 = sshll.u32 [#allocation2], 4
      %s47 = int_to_ptr.vmem [resolvable:$true] %s46
      %49 = dma.hbm_to_vmem [thread:$0]  %s0, 32, %s47, [#allocation3]
    $region5: #{cvae_forward.13} parent=1 // pred_fallthru
      _
    // Predicated region
    $region6: #{cvae_forward.13} parent=1 // pred_check
      _
    $region7: #{cvae_forward.13} parent=1 // pred_check_branch
      %51 = sbr.rel (0) target = $region9
    $region8: #{cvae_forward.13} parent=1 // pred_region
      %s53 = ssub.s32 32, 32
      %54 = vsyncadd [#allocation6], %s53
      %s56 = sshll.u32 [#allocation5], 4
      %s57 = int_to_ptr.vmem [resolvable:$true] %s56
      %59 = dma.hbm_to_vmem [thread:$0]  %s1, 32, %s57, [#allocation6]
    $region9: #{cvae_forward.13} parent=1 // pred_fallthru
      _
    // Predicated region
    $region10: #{cvae_forward.13} parent=1 // pred_check
      _
    $region11: #{cvae_forward.13} parent=1 // pred_check_branch
      %61 = sbr.rel (0) target = $region13
    $region12: #{cvae_forward.13} parent=1 // pred_region
      %s63 = ssub.s32 32, 32
      %64 = vsyncadd [#allocation6], %s63
      %s66 = sshll.u32 [#allocation7], 4
      %s67 = int_to_ptr.vmem [resolvable:$true] %s66
      %69 = dma.hbm_to_vmem [thread:$0]  %s2, 32, %s67, [#allocation6]
    $region13: #{cvae_forward.13} parent=1 // pred_fallthru
      _
    // Predicated region
    $region14: #{cvae_forward.13} parent=1 // pred_check
      _
    $region15: #{cvae_forward.13} parent=1 // pred_check_branch
      %71 = sbr.rel (0) target = $region17
    $region16: #{cvae_forward.13} parent=1 // pred_region
      %s73 = ssub.s32 512, 512
      %74 = vsyncadd [#allocation9], %s73
      %s75 = sshll.u32 [#allocation8], 4
      %s76 = int_to_ptr.vmem [resolvable:$true] %s75
      %81 = dma.hbm_to_vmem [thread:$0]  %s3, 512, %s76, [#allocation9], 128, 128, 8
    $region17: #{cvae_forward.13} parent=1 // pred_fallthru
      _
    // Predicated region
    $region18: #{cvae_forward.13} parent=1 // pred_check
      _
    $region19: #{cvae_forward.13} parent=1 // pred_check_branch
      %83 = sbr.rel (0) target = $region21
    $region20: #{cvae_forward.13} parent=1 // pred_region
      %s85 = ssub.s32 256, 256
      %86 = vsyncadd [#allocation9], %s85
      %s87 = sshll.u32 [#allocation10], 4
      %s88 = int_to_ptr.vmem [resolvable:$true] %s87
      %93 = dma.hbm_to_vmem [thread:$0]  %s4, 256, %s88, [#allocation9], 128, 128, 8
    $region21: #{cvae_forward.13} parent=1 // pred_fallthru
      _
    // Predicated region
    $region22: #{cvae_forward.13} parent=1 // pred_check
      _
    $region23: #{cvae_forward.13} parent=1 // pred_check_branch
      %95 = sbr.rel (0) target = $region25
    $region24: #{cvae_forward.13} parent=1 // pred_region
      %s97 = ssub.s32 16, 16
      %98 = vsyncadd [#allocation12], %s97
      %s100 = sshll.u32 [#allocation11], 4
      %s101 = int_to_ptr.vmem [resolvable:$true] %s100
      %103 = dma.hbm_to_vmem [thread:$0]  %s5, 16, %s101, [#allocation12]
    $region25: #{cvae_forward.13} parent=1 // pred_fallthru
      _
    // Predicated region
    $region26: #{cvae_forward.13} parent=1 // pred_check
      _
    $region27: #{cvae_forward.13} parent=1 // pred_check_branch
      %105 = sbr.rel (0) target = $region29
    $region28: #{cvae_forward.13} parent=1 // pred_region
      %s107 = ssub.s32 512, 512
      %108 = vsyncadd [#allocation12], %s107
      %s109 = sshll.u32 [#allocation13], 4
      %s110 = int_to_ptr.vmem [resolvable:$true] %s109
      %115 = dma.hbm_to_vmem [thread:$0]  %s6, 512, %s110, [#allocation12], 128, 128, 8
    $region29: #{cvae_forward.13} parent=1 // pred_fallthru
      _
    // Predicated region
    $region30: #{cvae_forward.13} parent=1 // pred_check
      _
    $region31: #{cvae_forward.13} parent=1 // pred_check_branch
      %117 = sbr.rel (0) target = $region33
    $region32: #{cvae_forward.13} parent=1 // pred_region
      %s119 = ssub.s32 16, 16
      %120 = vsyncadd [#allocation15], %s119
      %s122 = sshll.u32 [#allocation14], 4
      %s123 = int_to_ptr.vmem [resolvable:$true] %s122
      %125 = dma.hbm_to_vmem [thread:$0]  %s7, 16, %s123, [#allocation15]
    $region33: #{cvae_forward.13} parent=1 // pred_fallthru
      _
    // Predicated region
    $region34: #{cvae_forward.13} parent=1 // pred_check
      _
    $region35: #{cvae_forward.13} parent=1 // pred_check_branch
      %127 = sbr.rel (0) target = $region37
    $region36: #{cvae_forward.13} parent=1 // pred_region
      %s129 = ssub.s32 256, 256
      %130 = vsyncadd [#allocation15], %s129
      %s131 = sshll.u32 [#allocation16], 4
      %s132 = int_to_ptr.vmem [resolvable:$true] %s131
      %137 = dma.hbm_to_vmem [thread:$0]  %s8, 256, %s132, [#allocation15], 128, 128, 8
    $region37: #{cvae_forward.13} parent=1 // pred_fallthru
      _
    // Predicated region
    $region38: #{cvae_forward.13} parent=1 // pred_check
      _
    $region39: #{cvae_forward.13} parent=1 // pred_check_branch
      %139 = sbr.rel (0) target = $region41
    $region40: #{cvae_forward.13} parent=1 // pred_region
      %s141 = ssub.s32 16, 16
      %142 = vsyncadd [#allocation18], %s141
      %s144 = sshll.u32 [#allocation17], 4
      %s145 = int_to_ptr.vmem [resolvable:$true] %s144
      %147 = dma.hbm_to_vmem [thread:$0]  %s9, 16, %s145, [#allocation18]
    $region41: #{cvae_forward.13} parent=1 // pred_fallthru
      _
    // Predicated region
    $region42: #{cvae_forward.13} parent=1 // pred_check
      _
    $region43: #{cvae_forward.13} parent=1 // pred_check_branch
      %149 = sbr.rel (0) target = $region45
    $region44: #{cvae_forward.13} parent=1 // pred_region
      %s151 = ssub.s32 512, 512
      %152 = vsyncadd [#allocation18], %s151
      %s153 = sshll.u32 [#allocation19], 4
      %s154 = int_to_ptr.vmem [resolvable:$true] %s153
      %159 = dma.hbm_to_vmem [thread:$0]  %s10, 512, %s154, [#allocation18], 128, 128, 8
    $region45: #{cvae_forward.13} parent=1 // pred_fallthru
      _
    // Predicated region
    $region46: #{cvae_forward.13} parent=1 // pred_check
      _
    $region47: #{cvae_forward.13} parent=1 // pred_check_branch
      %161 = sbr.rel (0) target = $region49
    $region48: #{cvae_forward.13} parent=1 // pred_region
      %s163 = ssub.s32 16, 16
      %164 = vsyncadd [#allocation21], %s163
      %s166 = sshll.u32 [#allocation20], 4
      %s167 = int_to_ptr.vmem [resolvable:$true] %s166
      %169 = dma.hbm_to_vmem [thread:$0]  %s11, 16, %s167, [#allocation21]
    $region49: #{cvae_forward.13} parent=1 // pred_fallthru
      _
    // Predicated region
    $region50: #{cvae_forward.13} parent=1 // pred_check
      _
    $region51: #{cvae_forward.13} parent=1 // pred_check_branch
      %171 = sbr.rel (0) target = $region53
    $region52: #{cvae_forward.13} parent=1 // pred_region
      %s173 = ssub.s32 128, 128
      %174 = vsyncadd [#allocation21], %s173
      %s176 = sshll.u32 [#allocation22], 4
      %s177 = int_to_ptr.vmem [resolvable:$true] %s176
      %179 = dma.hbm_to_vmem [thread:$0]  %s12, 128, %s177, [#allocation21]
    $region53: #{cvae_forward.13} parent=1 // pred_fallthru
      _
    // Predicated region
    $region54: #{cvae_forward.13} parent=1 // pred_check
      _
    $region55: #{cvae_forward.13} parent=1 // pred_check_branch
      %181 = sbr.rel (0) target = $region57
    $region56: #{cvae_forward.13} parent=1 // pred_region
      %s183 = ssub.s32 256, 256
      %184 = vsyncadd [#allocation24], %s183
      %s185 = sshll.u32 [#allocation23], 4
      %s186 = int_to_ptr.vmem [resolvable:$true] %s185
      %191 = dma.hbm_to_vmem [thread:$0]  %s13, 256, %s186, [#allocation24], 128, 128, 8
    $region57: #{cvae_forward.13} parent=1 // pred_fallthru
      _
    // Predicated region
    $region58: #{cvae_forward.13} parent=1 // pred_check
      _
    $region59: #{cvae_forward.13} parent=1 // pred_check_branch
      %193 = sbr.rel (0) target = $region61
    $region60: #{cvae_forward.13} parent=1 // pred_region
      %s195 = ssub.s32 16, 16
      %196 = vsyncadd [#allocation24], %s195
      %s198 = sshll.u32 [#allocation25], 4
      %s199 = int_to_ptr.vmem [resolvable:$true] %s198
      %201 = dma.hbm_to_vmem [thread:$0]  %s14, 16, %s199, [#allocation24]
    $region61: #{cvae_forward.13} parent=1 // pred_fallthru
      _
    // Predicated region
    $region62: #{cvae_forward.13} parent=1 // pred_check
      _
    $region63: #{cvae_forward.13} parent=1 // pred_check_branch
      %203 = sbr.rel (0) target = $region65
    $region64: #{cvae_forward.13} parent=1 // pred_region
      %s205 = ssub.s32 128, 128
      %206 = vsyncadd [#allocation27], %s205
      %s208 = sshll.u32 [#allocation26], 4
      %s209 = int_to_ptr.vmem [resolvable:$true] %s208
      %211 = dma.hbm_to_vmem [thread:$0]  %s15, 128, %s209, [#allocation27]
    $region65: #{cvae_forward.13} parent=1 // pred_fallthru
      _
    // Predicated region
    $region66: #{cvae_forward.13} parent=1 // pred_check
      _
    $region67: #{cvae_forward.13} parent=1 // pred_check_branch
      %213 = sbr.rel (0) target = $region69
    $region68: #{cvae_forward.13} parent=1 // pred_region
      %s215 = ssub.s32 256, 256
      %216 = vsyncadd [#allocation27], %s215
      %s217 = sshll.u32 [#allocation28], 4
      %s218 = int_to_ptr.vmem [resolvable:$true] %s217
      %223 = dma.hbm_to_vmem [thread:$0]  %s16, 256, %s218, [#allocation27], 128, 128, 8
    $region69: #{cvae_forward.13} parent=1 // pred_fallthru
      _
    // Predicated region
    $region70: #{cvae_forward.13} parent=1 // pred_check
      _
    $region71: #{cvae_forward.13} parent=1 // pred_check_branch
      %225 = sbr.rel (0) target = $region73
    $region72: #{cvae_forward.13} parent=1 // pred_region
      %s227 = ssub.s32 16, 16
      %228 = vsyncadd [#allocation30], %s227
      %s230 = sshll.u32 [#allocation29], 4
      %s231 = int_to_ptr.vmem [resolvable:$true] %s230
      %233 = dma.hbm_to_vmem [thread:$0]  %s17, 16, %s231, [#allocation30]
    $region73: #{cvae_forward.13} parent=1 // pred_fallthru
      _
    // Predicated region
    $region74: #{cvae_forward.13} parent=1 // pred_check
      _
    $region75: #{cvae_forward.13} parent=1 // pred_check_branch
      %235 = sbr.rel (0) target = $region77
    $region76: #{cvae_forward.13} parent=1 // pred_region
      %236 = dma.done [#allocation3], 32
    $region77: #{cvae_forward.13} parent=1 // pred_fallthru
      _
    // Predicated region
    $region78: #{cvae_forward.13} parent=1 // pred_check
      _
    $region79: #{cvae_forward.13} parent=1 // pred_check_branch
      %238 = sbr.rel (0) target = $region81
    $region80: #{cvae_forward.13} parent=1 // pred_region
      %239 = dma.done [#allocation6], 32
    $region81: #{cvae_forward.13} parent=1 // pred_fallthru
      _
    // Predicated region
    $region82: #{cvae_forward.13} parent=1 // pred_check
      _
    $region83: #{cvae_forward.13} parent=1 // pred_check_branch
      %241 = sbr.rel (0) target = $region85
    $region84: #{cvae_forward.13} parent=1 // pred_region
      %242 = dma.done [#allocation6], 32
    $region85: #{cvae_forward.13} parent=1 // pred_fallthru
      _
    // Predicated region
    $region86: #{cvae_forward.13} parent=1 // pred_check
      _
    $region87: #{cvae_forward.13} parent=1 // pred_check_branch
      %244 = sbr.rel (0) target = $region89
    $region88: #{cvae_forward.13} parent=1 // pred_region
      %245 = dma.done [#allocation9], 512
    $region89: #{cvae_forward.13} parent=1 // pred_fallthru
      _
    // Predicated region
    $region90: #{cvae_forward.13} parent=1 // pred_check
      _
    $region91: #{cvae_forward.13} parent=1 // pred_check_branch
      %247 = sbr.rel (0) target = $region93
    $region92: #{cvae_forward.13} parent=1 // pred_region
      %248 = dma.done [#allocation9], 256
    $region93: #{cvae_forward.13} parent=1 // pred_fallthru
      _
    // Predicated region
    $region94: #{cvae_forward.13} parent=1 // pred_check
      _
    $region95: #{cvae_forward.13} parent=1 // pred_check_branch
      %250 = sbr.rel (0) target = $region97
    $region96: #{cvae_forward.13} parent=1 // pred_region
      %251 = dma.done [#allocation12], 16
    $region97: #{cvae_forward.13} parent=1 // pred_fallthru
      _
    // Predicated region
    $region98: #{cvae_forward.13} parent=1 // pred_check
      _
    $region99: #{cvae_forward.13} parent=1 // pred_check_branch
      %253 = sbr.rel (0) target = $region101
    $region100: #{cvae_forward.13} parent=1 // pred_region
      %254 = dma.done [#allocation12], 512
    $region101: #{cvae_forward.13} parent=1 // pred_fallthru
      _
    // Predicated region
    $region102: #{cvae_forward.13} parent=1 // pred_check
      _
    $region103: #{cvae_forward.13} parent=1 // pred_check_branch
      %256 = sbr.rel (0) target = $region105
    $region104: #{cvae_forward.13} parent=1 // pred_region
      %257 = dma.done [#allocation15], 16
    $region105: #{cvae_forward.13} parent=1 // pred_fallthru
      _
    // Predicated region
    $region106: #{cvae_forward.13} parent=1 // pred_check
      _
    $region107: #{cvae_forward.13} parent=1 // pred_check_branch
      %259 = sbr.rel (0) target = $region109
    $region108: #{cvae_forward.13} parent=1 // pred_region
      %260 = dma.done [#allocation15], 256
    $region109: #{cvae_forward.13} parent=1 // pred_fallthru
      _
    // Predicated region
    $region110: #{cvae_forward.13} parent=1 // pred_check
      _
    $region111: #{cvae_forward.13} parent=1 // pred_check_branch
      %262 = sbr.rel (0) target = $region113
    $region112: #{cvae_forward.13} parent=1 // pred_region
      %263 = dma.done [#allocation18], 16
    $region113: #{cvae_forward.13} parent=1 // pred_fallthru
      _
    // Predicated region
    $region114: #{cvae_forward.13} parent=1 // pred_check
      _
    $region115: #{cvae_forward.13} parent=1 // pred_check_branch
      %265 = sbr.rel (0) target = $region117
    $region116: #{cvae_forward.13} parent=1 // pred_region
      %266 = dma.done [#allocation18], 512
    $region117: #{cvae_forward.13} parent=1 // pred_fallthru
      _
    // Predicated region
    $region118: #{cvae_forward.13} parent=1 // pred_check
      _
    $region119: #{cvae_forward.13} parent=1 // pred_check_branch
      %268 = sbr.rel (0) target = $region121
    $region120: #{cvae_forward.13} parent=1 // pred_region
      %269 = dma.done [#allocation21], 16
    $region121: #{cvae_forward.13} parent=1 // pred_fallthru
      _
    // Predicated region
    $region122: #{cvae_forward.13} parent=1 // pred_check
      _
    $region123: #{cvae_forward.13} parent=1 // pred_check_branch
      %271 = sbr.rel (0) target = $region125
    $region124: #{cvae_forward.13} parent=1 // pred_region
      %272 = dma.done [#allocation21], 128
    $region125: #{cvae_forward.13} parent=1 // pred_fallthru
      _
    // Predicated region
    $region126: #{cvae_forward.13} parent=1 // pred_check
      _
    $region127: #{cvae_forward.13} parent=1 // pred_check_branch
      %274 = sbr.rel (0) target = $region129
    $region128: #{cvae_forward.13} parent=1 // pred_region
      %275 = dma.done [#allocation24], 256
    $region129: #{cvae_forward.13} parent=1 // pred_fallthru
      _
    // Predicated region
    $region130: #{cvae_forward.13} parent=1 // pred_check
      _
    $region131: #{cvae_forward.13} parent=1 // pred_check_branch
      %277 = sbr.rel (0) target = $region133
    $region132: #{cvae_forward.13} parent=1 // pred_region
      %278 = dma.done [#allocation24], 16
    $region133: #{cvae_forward.13} parent=1 // pred_fallthru
      _
    // Predicated region
    $region134: #{cvae_forward.13} parent=1 // pred_check
      _
    $region135: #{cvae_forward.13} parent=1 // pred_check_branch
      %280 = sbr.rel (0) target = $region137
    $region136: #{cvae_forward.13} parent=1 // pred_region
      %281 = dma.done [#allocation27], 128
    $region137: #{cvae_forward.13} parent=1 // pred_fallthru
      _
    // Predicated region
    $region138: #{cvae_forward.13} parent=1 // pred_check
      _
    $region139: #{cvae_forward.13} parent=1 // pred_check_branch
      %283 = sbr.rel (0) target = $region141
    $region140: #{cvae_forward.13} parent=1 // pred_region
      %284 = dma.done [#allocation27], 256
    $region141: #{cvae_forward.13} parent=1 // pred_fallthru
      _
    // Predicated region
    $region142: #{cvae_forward.13} parent=1 // pred_check
      _
    $region143: #{cvae_forward.13} parent=1 // pred_check_branch
      %286 = sbr.rel (0) target = $region145
    $region144: #{cvae_forward.13} parent=1 // pred_region
      %287 = dma.done [#allocation30], 16
    $region145: #{cvae_forward.13} parent=1 // pred_fallthru
      _
    %v288 = vld [vmem:[#allocation2] sm:$0x3]
    %v289 = vld [vmem:[#allocation5] sm:$0x3]
    %v290 = vld [vmem:[#allocation8] sm:$0xff]
    %v291 = vld [vmem:[#allocation8 + $0x8] sm:$0xff]
    %v292 = vld [vmem:[#allocation8 + $0x10] sm:$0xff]
    %v293 = vld [vmem:[#allocation8 + $0x18] sm:$0xff]
    %v294 = vld [vmem:[#allocation10] sm:$0xff]
    %v295 = vld [vmem:[#allocation10 + $0x8] sm:$0xff]
    %vm296 = vcmask 130048
    %v298 = vsel %vm296, %v289, 0
    %300 = vmatprep.subr.mxu0 0.0
    %301 = vmatpush1.msra.mxu0 %v294
    %302 = vmatprep.subr.mxu0 0.0
    %303 = vmatpush1.msra.mxu0 %v295
    %304 = vmatprep.subr.mxu0 0.0
    %305 = vmatpush1.msra.mxu0 0.0
    %306 = vmatprep.subr.mxu0 0.0
    %307 = vmatpush1.msra.mxu0 0.0
    %308 = vmatprep.subr.mxu0 0.0
    %309 = vmatpush1.msra.mxu0 0.0
    %310 = vmatprep.subr.mxu0 0.0
    %311 = vmatpush1.msra.mxu0 0.0
    %312 = vmatprep.subr.mxu0 0.0
    %313 = vmatpush1.msra.mxu0 0.0
    %314 = vmatprep.subr.mxu0 0.0
    %315 = vmatpush1.msra.mxu0 0.0
    %316 = vmatprep.subr.mxu0 0.0
    %317 = vmatpush1.msra.mxu0 0.0
    %318 = vmatprep.subr.mxu0 0.0
    %319 = vmatpush1.msra.mxu0 0.0
    %320 = vmatprep.subr.mxu0 0.0
    %321 = vmatpush1.msra.mxu0 0.0
    %322 = vmatprep.subr.mxu0 0.0
    %323 = vmatpush1.msra.mxu0 0.0
    %324 = vmatprep.subr.mxu0 0.0
    %325 = vmatpush1.msra.mxu0 0.0
    %326 = vmatprep.subr.mxu0 0.0
    %327 = vmatpush1.msra.mxu0 0.0
    %328 = vmatprep.subr.mxu0 0.0
    %329 = vmatpush1.msra.mxu0 0.0
    %330 = vmatprep.subr.mxu0 0.0
    %331 = vmatpush1.msra.mxu0 0.0
    %332 = vmatprep.subr.mxu0 0.0
    %333 = vmatpush1.msra.mxu0 0.0
    %334 = vmatprep.subr.mxu0 0.0
    %335 = vmatpush1.msra.mxu0 0.0
    %336 = vmatprep.subr.mxu0 0.0
    %337 = vmatpush1.msra.mxu0 0.0
    %338 = vmatprep.subr.mxu0 0.0
    %339 = vmatpush1.msra.mxu0 0.0
    %340 = vmatprep.subr.mxu0 0.0
    %341 = vmatpush1.msra.mxu0 0.0
    %342 = vmatprep.subr.mxu0 0.0
    %343 = vmatpush1.msra.mxu0 0.0
    %344 = vmatprep.subr.mxu0 0.0
    %345 = vmatpush1.msra.mxu0 0.0
    %346 = vmatprep.subr.mxu0 0.0
    %347 = vmatpush1.msra.mxu0 0.0
    %348 = vmatprep.subr.mxu0 0.0
    %349 = vmatpush1.msra.mxu0 0.0
    %350 = vmatprep.subr.mxu0 0.0
    %351 = vmatpush1.msra.mxu0 0.0
    %352 = vmatprep.subr.mxu0 0.0
    %353 = vmatpush1.msra.mxu0 0.0
    %354 = vmatprep.subr.mxu0 0.0
    %355 = vmatpush1.msra.mxu0 0.0
    %356 = vmatprep.subr.mxu0 0.0
    %357 = vmatpush1.msra.mxu0 0.0
    %358 = vmatprep.subr.mxu0 0.0
    %359 = vmatpush1.msra.mxu0 0.0
    %360 = vmatprep.subr.mxu0 0.0
    %361 = vmatpush1.msra.mxu0 0.0
    %362 = vmatprep.subr.mxu0 0.0
    %363 = vmatpush1.msra.mxu0 0.0
    %364 = vmatprep.mubr.f32.mxu0 0.0
    %365 = vmatmul.mubr.f32.gmra.mrb[0].mxu0 %v298
    %v366 = vpop.f32.mrb[0].mxu0
    %v367 = vadd.f32 0.0, %v366
    %v368 = vpop.f32.mrb[0].mxu0
    %369 = vdwg.mxu0
    %vm370 = vcmask 261120
    %v372 = vsel %vm370, %v288, 0
    %374 = vmatprep.subr.mxu0 0.0
    %375 = vmatpush1.msra.mxu0 %v290
    %376 = vmatprep.subr.mxu0 0.0
    %377 = vmatpush1.msra.mxu0 %v291
    %378 = vmatprep.subr.mxu0 0.0
    %379 = vmatpush1.msra.mxu0 %v292
    %380 = vmatprep.subr.mxu0 0.0
    %381 = vmatpush1.msra.mxu0 %v293
    %382 = vmatprep.subr.mxu0 0.0
    %383 = vmatpush1.msra.mxu0 0.0
    %384 = vmatprep.subr.mxu0 0.0
    %385 = vmatpush1.msra.mxu0 0.0
    %386 = vmatprep.subr.mxu0 0.0
    %387 = vmatpush1.msra.mxu0 0.0
    %388 = vmatprep.subr.mxu0 0.0
    %389 = vmatpush1.msra.mxu0 0.0
    %390 = vmatprep.subr.mxu0 0.0
    %391 = vmatpush1.msra.mxu0 0.0
    %392 = vmatprep.subr.mxu0 0.0
    %393 = vmatpush1.msra.mxu0 0.0
    %394 = vmatprep.subr.mxu0 0.0
    %395 = vmatpush1.msra.mxu0 0.0
    %396 = vmatprep.subr.mxu0 0.0
    %397 = vmatpush1.msra.mxu0 0.0
    %398 = vmatprep.subr.mxu0 0.0
    %399 = vmatpush1.msra.mxu0 0.0
    %400 = vmatprep.subr.mxu0 0.0
    %401 = vmatpush1.msra.mxu0 0.0
    %402 = vmatprep.subr.mxu0 0.0
    %403 = vmatpush1.msra.mxu0 0.0
    %404 = vmatprep.subr.mxu0 0.0
    %405 = vmatpush1.msra.mxu0 0.0
    %406 = vmatprep.subr.mxu0 0.0
    %407 = vmatpush1.msra.mxu0 0.0
    %408 = vmatprep.subr.mxu0 0.0
    %409 = vmatpush1.msra.mxu0 0.0
    %410 = vmatprep.subr.mxu0 0.0
    %411 = vmatpush1.msra.mxu0 0.0
    %412 = vmatprep.subr.mxu0 0.0
    %413 = vmatpush1.msra.mxu0 0.0
    %414 = vmatprep.subr.mxu0 0.0
    %415 = vmatpush1.msra.mxu0 0.0
    %416 = vmatprep.subr.mxu0 0.0
    %417 = vmatpush1.msra.mxu0 0.0
    %418 = vmatprep.subr.mxu0 0.0
    %419 = vmatpush1.msra.mxu0 0.0
    %420 = vmatprep.subr.mxu0 0.0
    %421 = vmatpush1.msra.mxu0 0.0
    %422 = vmatprep.subr.mxu0 0.0
    %423 = vmatpush1.msra.mxu0 0.0
    %424 = vmatprep.subr.mxu0 0.0
    %425 = vmatpush1.msra.mxu0 0.0
    %426 = vmatprep.subr.mxu0 0.0
    %427 = vmatpush1.msra.mxu0 0.0
    %428 = vmatprep.subr.mxu0 0.0
    %429 = vmatpush1.msra.mxu0 0.0
    %430 = vmatprep.subr.mxu0 0.0
    %431 = vmatpush1.msra.mxu0 0.0
    %432 = vmatprep.subr.mxu0 0.0
    %433 = vmatpush1.msra.mxu0 0.0
    %434 = vmatprep.subr.mxu0 0.0
    %435 = vmatpush1.msra.mxu0 0.0
    %436 = vmatprep.subr.mxu0 0.0
    %437 = vmatpush1.msra.mxu0 0.0
    %438 = vmatprep.mubr.f32.mxu0 0.0
    %439 = vmatmul.mubr.f32.gmra.mrb[0].mxu0 %v372
    %v440 = vpop.f32.mrb[0].mxu0
    %v441 = vadd.f32 %v367, %v440
    %v442 = vpop.f32.mrb[0].mxu0
    %443 = vdwg.mxu0
    %v444 = vld [vmem:[#allocation11] sm:$0x1]
    %v446 = vlaneseq
    %v447 = vshrl.u32 %v446, 7
    %v448 = vsub.s32 0, %v447
    %v449 = vrot.slane %v444, %v448
    %v451 = vadd.f32 %v441, %v449
    %vm452 = vcmp.ge.f32.partialorder %v451, 0.0
    %v453 = vmul.f32 %v451, 0.01
    %v454 = vsel %vm452, %v451, %v453
    %v455 = vld [vmem:[#allocation13] sm:$0xff]
    %v456 = vld [vmem:[#allocation13 + $0x8] sm:$0xff]
    %v457 = vld [vmem:[#allocation13 + $0x10] sm:$0xff]
    %v458 = vld [vmem:[#allocation13 + $0x18] sm:$0xff]
    %v459 = vld [vmem:[#allocation14] sm:$0x1]
    %v461 = vlaneseq
    %v462 = vshrl.u32 %v461, 7
    %v463 = vsub.s32 0, %v462
    %v464 = vrot.slane %v459, %v463
    %v467 = vsel %vm370, %v454, 0
    %469 = vmatprep.subr.mxu0 0.0
    %470 = vmatpush1.msra.mxu0 %v455
    %471 = vmatprep.subr.mxu0 0.0
    %472 = vmatpush1.msra.mxu0 %v456
    %473 = vmatprep.subr.mxu0 0.0
    %474 = vmatpush1.msra.mxu0 %v457
    %475 = vmatprep.subr.mxu0 0.0
    %476 = vmatpush1.msra.mxu0 %v458
    %477 = vmatprep.subr.mxu0 0.0
    %478 = vmatpush1.msra.mxu0 0.0
    %479 = vmatprep.subr.mxu0 0.0
    %480 = vmatpush1.msra.mxu0 0.0
    %481 = vmatprep.subr.mxu0 0.0
    %482 = vmatpush1.msra.mxu0 0.0
    %483 = vmatprep.subr.mxu0 0.0
    %484 = vmatpush1.msra.mxu0 0.0
    %485 = vmatprep.subr.mxu0 0.0
    %486 = vmatpush1.msra.mxu0 0.0
    %487 = vmatprep.subr.mxu0 0.0
    %488 = vmatpush1.msra.mxu0 0.0
    %489 = vmatprep.subr.mxu0 0.0
    %490 = vmatpush1.msra.mxu0 0.0
    %491 = vmatprep.subr.mxu0 0.0
    %492 = vmatpush1.msra.mxu0 0.0
    %493 = vmatprep.subr.mxu0 0.0
    %494 = vmatpush1.msra.mxu0 0.0
    %495 = vmatprep.subr.mxu0 0.0
    %496 = vmatpush1.msra.mxu0 0.0
    %497 = vmatprep.subr.mxu0 0.0
    %498 = vmatpush1.msra.mxu0 0.0
    %499 = vmatprep.subr.mxu0 0.0
    %500 = vmatpush1.msra.mxu0 0.0
    %501 = vmatprep.subr.mxu0 0.0
    %502 = vmatpush1.msra.mxu0 0.0
    %503 = vmatprep.subr.mxu0 0.0
    %504 = vmatpush1.msra.mxu0 0.0
    %505 = vmatprep.subr.mxu0 0.0
    %506 = vmatpush1.msra.mxu0 0.0
    %507 = vmatprep.subr.mxu0 0.0
    %508 = vmatpush1.msra.mxu0 0.0
    %509 = vmatprep.subr.mxu0 0.0
    %510 = vmatpush1.msra.mxu0 0.0
    %511 = vmatprep.subr.mxu0 0.0
    %512 = vmatpush1.msra.mxu0 0.0
    %513 = vmatprep.subr.mxu0 0.0
    %514 = vmatpush1.msra.mxu0 0.0
    %515 = vmatprep.subr.mxu0 0.0
    %516 = vmatpush1.msra.mxu0 0.0
    %517 = vmatprep.subr.mxu0 0.0
    %518 = vmatpush1.msra.mxu0 0.0
    %519 = vmatprep.subr.mxu0 0.0
    %520 = vmatpush1.msra.mxu0 0.0
    %521 = vmatprep.subr.mxu0 0.0
    %522 = vmatpush1.msra.mxu0 0.0
    %523 = vmatprep.subr.mxu0 0.0
    %524 = vmatpush1.msra.mxu0 0.0
    %525 = vmatprep.subr.mxu0 0.0
    %526 = vmatpush1.msra.mxu0 0.0
    %527 = vmatprep.subr.mxu0 0.0
    %528 = vmatpush1.msra.mxu0 0.0
    %529 = vmatprep.subr.mxu0 0.0
    %530 = vmatpush1.msra.mxu0 0.0
    %531 = vmatprep.subr.mxu0 0.0
    %532 = vmatpush1.msra.mxu0 0.0
    %533 = vmatprep.mubr.f32.mxu0 0.0
    %534 = vmatmul.mubr.f32.gmra.mrb[0].mxu0 %v467
    %v535 = vpop.f32.mrb[0].mxu0
    %v536 = vadd.f32 %v464, %v535
    %v537 = vpop.f32.mrb[0].mxu0
    %538 = vdwg.mxu0
    %vm539 = vcmask 123904
    %540 = vst.msk [vmem:[#allocation31] sm:$0x3] %vm539, %v536
    %v541 = vld [vmem:[#allocation16] sm:$0xff]
    %v542 = vld [vmem:[#allocation16 + $0x8] sm:$0xff]
    %v543 = vld [vmem:[#allocation17] sm:$0x1]
    %v545 = vlaneseq
    %v546 = vshrl.u32 %v545, 7
    %v547 = vsub.s32 0, %v546
    %v548 = vrot.slane %v543, %v547
    %550 = vmatprep.subr.mxu0 0.0
    %551 = vmatpush1.msra.mxu0 %v541
    %552 = vmatprep.subr.mxu0 0.0
    %553 = vmatpush1.msra.mxu0 %v542
    %554 = vmatprep.subr.mxu0 0.0
    %555 = vmatpush1.msra.mxu0 0.0
    %556 = vmatprep.subr.mxu0 0.0
    %557 = vmatpush1.msra.mxu0 0.0
    %558 = vmatprep.subr.mxu0 0.0
    %559 = vmatpush1.msra.mxu0 0.0
    %560 = vmatprep.subr.mxu0 0.0
    %561 = vmatpush1.msra.mxu0 0.0
    %562 = vmatprep.subr.mxu0 0.0
    %563 = vmatpush1.msra.mxu0 0.0
    %564 = vmatprep.subr.mxu0 0.0
    %565 = vmatpush1.msra.mxu0 0.0
    %566 = vmatprep.subr.mxu0 0.0
    %567 = vmatpush1.msra.mxu0 0.0
    %568 = vmatprep.subr.mxu0 0.0
    %569 = vmatpush1.msra.mxu0 0.0
    %570 = vmatprep.subr.mxu0 0.0
    %571 = vmatpush1.msra.mxu0 0.0
    %572 = vmatprep.subr.mxu0 0.0
    %573 = vmatpush1.msra.mxu0 0.0
    %574 = vmatprep.subr.mxu0 0.0
    %575 = vmatpush1.msra.mxu0 0.0
    %576 = vmatprep.subr.mxu0 0.0
    %577 = vmatpush1.msra.mxu0 0.0
    %578 = vmatprep.subr.mxu0 0.0
    %579 = vmatpush1.msra.mxu0 0.0
    %580 = vmatprep.subr.mxu0 0.0
    %581 = vmatpush1.msra.mxu0 0.0
    %582 = vmatprep.subr.mxu0 0.0
    %583 = vmatpush1.msra.mxu0 0.0
    %584 = vmatprep.subr.mxu0 0.0
    %585 = vmatpush1.msra.mxu0 0.0
    %586 = vmatprep.subr.mxu0 0.0
    %587 = vmatpush1.msra.mxu0 0.0
    %588 = vmatprep.subr.mxu0 0.0
    %589 = vmatpush1.msra.mxu0 0.0
    %590 = vmatprep.subr.mxu0 0.0
    %591 = vmatpush1.msra.mxu0 0.0
    %592 = vmatprep.subr.mxu0 0.0
    %593 = vmatpush1.msra.mxu0 0.0
    %594 = vmatprep.subr.mxu0 0.0
    %595 = vmatpush1.msra.mxu0 0.0
    %596 = vmatprep.subr.mxu0 0.0
    %597 = vmatpush1.msra.mxu0 0.0
    %598 = vmatprep.subr.mxu0 0.0
    %599 = vmatpush1.msra.mxu0 0.0
    %600 = vmatprep.subr.mxu0 0.0
    %601 = vmatpush1.msra.mxu0 0.0
    %602 = vmatprep.subr.mxu0 0.0
    %603 = vmatpush1.msra.mxu0 0.0
    %604 = vmatprep.subr.mxu0 0.0
    %605 = vmatpush1.msra.mxu0 0.0
    %606 = vmatprep.subr.mxu0 0.0
    %607 = vmatpush1.msra.mxu0 0.0
    %608 = vmatprep.subr.mxu0 0.0
    %609 = vmatpush1.msra.mxu0 0.0
    %610 = vmatprep.subr.mxu0 0.0
    %611 = vmatpush1.msra.mxu0 0.0
    %612 = vmatprep.subr.mxu0 0.0
    %613 = vmatpush1.msra.mxu0 0.0
    %614 = vmatprep.mubr.f32.mxu0 0.0
    %615 = vmatmul.mubr.f32.gmra.mrb[0].mxu0 %v298
    %v616 = vpop.f32.mrb[0].mxu0
    %v617 = vadd.f32 %v548, %v616
    %v618 = vpop.f32.mrb[0].mxu0
    %619 = vdwg.mxu0
    %vm620 = vcmp.ge.f32.partialorder %v617, 0.0
    %v621 = vmul.f32 %v617, 0.01
    %v622 = vsel %vm620, %v617, %v621
    %v623 = vld [vmem:[#allocation19] sm:$0xff]
    %v624 = vld [vmem:[#allocation19 + $0x8] sm:$0xff]
    %v625 = vld [vmem:[#allocation19 + $0x10] sm:$0xff]
    %v626 = vld [vmem:[#allocation19 + $0x18] sm:$0xff]
    %v627 = vld [vmem:[#allocation20] sm:$0x1]
    %v629 = vlaneseq
    %v630 = vshrl.u32 %v629, 7
    %v631 = vsub.s32 0, %v630
    %v632 = vrot.slane %v627, %v631
    %v635 = vsel %vm370, %v622, 0
    %637 = vmatprep.subr.mxu0 0.0
    %638 = vmatpush1.msra.mxu0 %v623
    %639 = vmatprep.subr.mxu0 0.0
    %640 = vmatpush1.msra.mxu0 %v624
    %641 = vmatprep.subr.mxu0 0.0
    %642 = vmatpush1.msra.mxu0 %v625
    %643 = vmatprep.subr.mxu0 0.0
    %644 = vmatpush1.msra.mxu0 %v626
    %645 = vmatprep.subr.mxu0 0.0
    %646 = vmatpush1.msra.mxu0 0.0
    %647 = vmatprep.subr.mxu0 0.0
    %648 = vmatpush1.msra.mxu0 0.0
    %649 = vmatprep.subr.mxu0 0.0
    %650 = vmatpush1.msra.mxu0 0.0
    %651 = vmatprep.subr.mxu0 0.0
    %652 = vmatpush1.msra.mxu0 0.0
    %653 = vmatprep.subr.mxu0 0.0
    %654 = vmatpush1.msra.mxu0 0.0
    %655 = vmatprep.subr.mxu0 0.0
    %656 = vmatpush1.msra.mxu0 0.0
    %657 = vmatprep.subr.mxu0 0.0
    %658 = vmatpush1.msra.mxu0 0.0
    %659 = vmatprep.subr.mxu0 0.0
    %660 = vmatpush1.msra.mxu0 0.0
    %661 = vmatprep.subr.mxu0 0.0
    %662 = vmatpush1.msra.mxu0 0.0
    %663 = vmatprep.subr.mxu0 0.0
    %664 = vmatpush1.msra.mxu0 0.0
    %665 = vmatprep.subr.mxu0 0.0
    %666 = vmatpush1.msra.mxu0 0.0
    %667 = vmatprep.subr.mxu0 0.0
    %668 = vmatpush1.msra.mxu0 0.0
    %669 = vmatprep.subr.mxu0 0.0
    %670 = vmatpush1.msra.mxu0 0.0
    %671 = vmatprep.subr.mxu0 0.0
    %672 = vmatpush1.msra.mxu0 0.0
    %673 = vmatprep.subr.mxu0 0.0
    %674 = vmatpush1.msra.mxu0 0.0
    %675 = vmatprep.subr.mxu0 0.0
    %676 = vmatpush1.msra.mxu0 0.0
    %677 = vmatprep.subr.mxu0 0.0
    %678 = vmatpush1.msra.mxu0 0.0
    %679 = vmatprep.subr.mxu0 0.0
    %680 = vmatpush1.msra.mxu0 0.0
    %681 = vmatprep.subr.mxu0 0.0
    %682 = vmatpush1.msra.mxu0 0.0
    %683 = vmatprep.subr.mxu0 0.0
    %684 = vmatpush1.msra.mxu0 0.0
    %685 = vmatprep.subr.mxu0 0.0
    %686 = vmatpush1.msra.mxu0 0.0
    %687 = vmatprep.subr.mxu0 0.0
    %688 = vmatpush1.msra.mxu0 0.0
    %689 = vmatprep.subr.mxu0 0.0
    %690 = vmatpush1.msra.mxu0 0.0
    %691 = vmatprep.subr.mxu0 0.0
    %692 = vmatpush1.msra.mxu0 0.0
    %693 = vmatprep.subr.mxu0 0.0
    %694 = vmatpush1.msra.mxu0 0.0
    %695 = vmatprep.subr.mxu0 0.0
    %696 = vmatpush1.msra.mxu0 0.0
    %697 = vmatprep.subr.mxu0 0.0
    %698 = vmatpush1.msra.mxu0 0.0
    %699 = vmatprep.subr.mxu0 0.0
    %700 = vmatpush1.msra.mxu0 0.0
    %701 = vmatprep.mubr.f32.mxu0 0.0
    %702 = vmatmul.mubr.f32.gmra.mrb[0].mxu0 %v635
    %v703 = vpop.f32.mrb[0].mxu0
    %v704 = vadd.f32 %v632, %v703
    %v705 = vpop.f32.mrb[0].mxu0
    %706 = vdwg.mxu0
    %707 = vst.msk [vmem:[#allocation32] sm:$0x3] %vm539, %v704
    %v708 = vld [vmem:[#allocation7] sm:$0x3]
    %v709 = vmul.f32 %v536, 0.5
    %v710 = vmul.f32 %v709, 1.442695
    %v711 = vpow.pop %v710
    %713 = vrot.lane.b32.xlu0 %v711, 120
    %v714 = vpop.permute.xlu0 %713
    %v716 = vmul.f32 %v708, %v714
    %v717 = vadd.f32 %v536, %v716
    %v718 = vld [vmem:[#allocation22] sm:$0xff]
    %v719 = vld [vmem:[#allocation23] sm:$0xff]
    %v720 = vld [vmem:[#allocation23 + $0x8] sm:$0xff]
    %721 = vmatprep.subr.mxu0 0.0
    %722 = vmatpush1.msra.mxu0 %v719
    %723 = vmatprep.subr.mxu0 0.0
    %724 = vmatpush1.msra.mxu0 %v720
    %725 = vmatprep.subr.mxu0 0.0
    %726 = vmatpush1.msra.mxu0 0.0
    %727 = vmatprep.subr.mxu0 0.0
    %728 = vmatpush1.msra.mxu0 0.0
    %729 = vmatprep.subr.mxu0 0.0
    %730 = vmatpush1.msra.mxu0 0.0
    %731 = vmatprep.subr.mxu0 0.0
    %732 = vmatpush1.msra.mxu0 0.0
    %733 = vmatprep.subr.mxu0 0.0
    %734 = vmatpush1.msra.mxu0 0.0
    %735 = vmatprep.subr.mxu0 0.0
    %736 = vmatpush1.msra.mxu0 0.0
    %737 = vmatprep.subr.mxu0 0.0
    %738 = vmatpush1.msra.mxu0 0.0
    %739 = vmatprep.subr.mxu0 0.0
    %740 = vmatpush1.msra.mxu0 0.0
    %741 = vmatprep.subr.mxu0 0.0
    %742 = vmatpush1.msra.mxu0 0.0
    %743 = vmatprep.subr.mxu0 0.0
    %744 = vmatpush1.msra.mxu0 0.0
    %745 = vmatprep.subr.mxu0 0.0
    %746 = vmatpush1.msra.mxu0 0.0
    %747 = vmatprep.subr.mxu0 0.0
    %748 = vmatpush1.msra.mxu0 0.0
    %749 = vmatprep.subr.mxu0 0.0
    %750 = vmatpush1.msra.mxu0 0.0
    %751 = vmatprep.subr.mxu0 0.0
    %752 = vmatpush1.msra.mxu0 0.0
    %753 = vmatprep.subr.mxu0 0.0
    %754 = vmatpush1.msra.mxu0 0.0
    %755 = vmatprep.subr.mxu0 0.0
    %756 = vmatpush1.msra.mxu0 0.0
    %757 = vmatprep.subr.mxu0 0.0
    %758 = vmatpush1.msra.mxu0 0.0
    %759 = vmatprep.subr.mxu0 0.0
    %760 = vmatpush1.msra.mxu0 0.0
    %761 = vmatprep.subr.mxu0 0.0
    %762 = vmatpush1.msra.mxu0 0.0
    %763 = vmatprep.subr.mxu0 0.0
    %764 = vmatpush1.msra.mxu0 0.0
    %765 = vmatprep.subr.mxu0 0.0
    %766 = vmatpush1.msra.mxu0 0.0
    %767 = vmatprep.subr.mxu0 0.0
    %768 = vmatpush1.msra.mxu0 0.0
    %769 = vmatprep.subr.mxu0 0.0
    %770 = vmatpush1.msra.mxu0 0.0
    %771 = vmatprep.subr.mxu0 0.0
    %772 = vmatpush1.msra.mxu0 0.0
    %773 = vmatprep.subr.mxu0 0.0
    %774 = vmatpush1.msra.mxu0 0.0
    %775 = vmatprep.subr.mxu0 0.0
    %776 = vmatpush1.msra.mxu0 0.0
    %777 = vmatprep.subr.mxu0 0.0
    %778 = vmatpush1.msra.mxu0 0.0
    %779 = vmatprep.subr.mxu0 0.0
    %780 = vmatpush1.msra.mxu0 0.0
    %781 = vmatprep.subr.mxu0 0.0
    %782 = vmatpush1.msra.mxu0 0.0
    %783 = vmatprep.subr.mxu0 0.0
    %784 = vmatpush1.msra.mxu0 0.0
    %785 = vmatprep.mubr.f32.mxu0 0.0
    %786 = vmatmul.mubr.f32.gmra.mrb[0].mxu0 %v298
    %v787 = vpop.f32.mrb[0].mxu0
    %v788 = vadd.f32 0.0, %v787
    %v789 = vpop.f32.mrb[0].mxu0
    %790 = vdwg.mxu0
    %vm791 = vcmask 64512
    %v793 = vsel %vm791, %v717, 0
    %795 = vmatprep.subr.mxu0 0.0
    %796 = vmatpush1.msra.mxu0 %v718
    %797 = vmatprep.subr.mxu0 0.0
    %798 = vmatpush1.msra.mxu0 0.0
    %799 = vmatprep.subr.mxu0 0.0
    %800 = vmatpush1.msra.mxu0 0.0
    %801 = vmatprep.subr.mxu0 0.0
    %802 = vmatpush1.msra.mxu0 0.0
    %803 = vmatprep.subr.mxu0 0.0
    %804 = vmatpush1.msra.mxu0 0.0
    %805 = vmatprep.subr.mxu0 0.0
    %806 = vmatpush1.msra.mxu0 0.0
    %807 = vmatprep.subr.mxu0 0.0
    %808 = vmatpush1.msra.mxu0 0.0
    %809 = vmatprep.subr.mxu0 0.0
    %810 = vmatpush1.msra.mxu0 0.0
    %811 = vmatprep.subr.mxu0 0.0
    %812 = vmatpush1.msra.mxu0 0.0
    %813 = vmatprep.subr.mxu0 0.0
    %814 = vmatpush1.msra.mxu0 0.0
    %815 = vmatprep.subr.mxu0 0.0
    %816 = vmatpush1.msra.mxu0 0.0
    %817 = vmatprep.subr.mxu0 0.0
    %818 = vmatpush1.msra.mxu0 0.0
    %819 = vmatprep.subr.mxu0 0.0
    %820 = vmatpush1.msra.mxu0 0.0
    %821 = vmatprep.subr.mxu0 0.0
    %822 = vmatpush1.msra.mxu0 0.0
    %823 = vmatprep.subr.mxu0 0.0
    %824 = vmatpush1.msra.mxu0 0.0
    %825 = vmatprep.subr.mxu0 0.0
    %826 = vmatpush1.msra.mxu0 0.0
    %827 = vmatprep.subr.mxu0 0.0
    %828 = vmatpush1.msra.mxu0 0.0
    %829 = vmatprep.subr.mxu0 0.0
    %830 = vmatpush1.msra.mxu0 0.0
    %831 = vmatprep.subr.mxu0 0.0
    %832 = vmatpush1.msra.mxu0 0.0
    %833 = vmatprep.subr.mxu0 0.0
    %834 = vmatpush1.msra.mxu0 0.0
    %835 = vmatprep.subr.mxu0 0.0
    %836 = vmatpush1.msra.mxu0 0.0
    %837 = vmatprep.subr.mxu0 0.0
    %838 = vmatpush1.msra.mxu0 0.0
    %839 = vmatprep.subr.mxu0 0.0
    %840 = vmatpush1.msra.mxu0 0.0
    %841 = vmatprep.subr.mxu0 0.0
    %842 = vmatpush1.msra.mxu0 0.0
    %843 = vmatprep.subr.mxu0 0.0
    %844 = vmatpush1.msra.mxu0 0.0
    %845 = vmatprep.subr.mxu0 0.0
    %846 = vmatpush1.msra.mxu0 0.0
    %847 = vmatprep.subr.mxu0 0.0
    %848 = vmatpush1.msra.mxu0 0.0
    %849 = vmatprep.subr.mxu0 0.0
    %850 = vmatpush1.msra.mxu0 0.0
    %851 = vmatprep.subr.mxu0 0.0
    %852 = vmatpush1.msra.mxu0 0.0
    %853 = vmatprep.subr.mxu0 0.0
    %854 = vmatpush1.msra.mxu0 0.0
    %855 = vmatprep.subr.mxu0 0.0
    %856 = vmatpush1.msra.mxu0 0.0
    %857 = vmatprep.subr.mxu0 0.0
    %858 = vmatpush1.msra.mxu0 0.0
    %859 = vmatprep.mubr.f32.mxu0 0.0
    %860 = vmatmul.mubr.f32.gmra.mrb[0].mxu0 %v793
    %v861 = vpop.f32.mrb[0].mxu0
    %v862 = vadd.f32 %v788, %v861
    %v863 = vpop.f32.mrb[0].mxu0
    %864 = vdwg.mxu0
    %v865 = vld [vmem:[#allocation25] sm:$0x1]
    %v867 = vlaneseq
    %v868 = vshrl.u32 %v867, 7
    %v869 = vsub.s32 0, %v868
    %v870 = vrot.slane %v865, %v869
    %v872 = vadd.f32 %v862, %v870
    %vm873 = vcmask 254976
    %874 = vst.msk [vmem:[#allocation35] sm:$0x3] %vm873, %v872
    %v875 = vld [vmem:[#allocation26] sm:$0xff]
    %v876 = vld [vmem:[#allocation28] sm:$0xff]
    %v877 = vld [vmem:[#allocation28 + $0x8] sm:$0xff]
    %878 = vmatprep.subr.mxu0 0.0
    %879 = vmatpush1.msra.mxu0 %v876
    %880 = vmatprep.subr.mxu0 0.0
    %881 = vmatpush1.msra.mxu0 %v877
    %882 = vmatprep.subr.mxu0 0.0
    %883 = vmatpush1.msra.mxu0 0.0
    %884 = vmatprep.subr.mxu0 0.0
    %885 = vmatpush1.msra.mxu0 0.0
    %886 = vmatprep.subr.mxu0 0.0
    %887 = vmatpush1.msra.mxu0 0.0
    %888 = vmatprep.subr.mxu0 0.0
    %889 = vmatpush1.msra.mxu0 0.0
    %890 = vmatprep.subr.mxu0 0.0
    %891 = vmatpush1.msra.mxu0 0.0
    %892 = vmatprep.subr.mxu0 0.0
    %893 = vmatpush1.msra.mxu0 0.0
    %894 = vmatprep.subr.mxu0 0.0
    %895 = vmatpush1.msra.mxu0 0.0
    %896 = vmatprep.subr.mxu0 0.0
    %897 = vmatpush1.msra.mxu0 0.0
    %898 = vmatprep.subr.mxu0 0.0
    %899 = vmatpush1.msra.mxu0 0.0
    %900 = vmatprep.subr.mxu0 0.0
    %901 = vmatpush1.msra.mxu0 0.0
    %902 = vmatprep.subr.mxu0 0.0
    %903 = vmatpush1.msra.mxu0 0.0
    %904 = vmatprep.subr.mxu0 0.0
    %905 = vmatpush1.msra.mxu0 0.0
    %906 = vmatprep.subr.mxu0 0.0
    %907 = vmatpush1.msra.mxu0 0.0
    %908 = vmatprep.subr.mxu0 0.0
    %909 = vmatpush1.msra.mxu0 0.0
    %910 = vmatprep.subr.mxu0 0.0
    %911 = vmatpush1.msra.mxu0 0.0
    %912 = vmatprep.subr.mxu0 0.0
    %913 = vmatpush1.msra.mxu0 0.0
    %914 = vmatprep.subr.mxu0 0.0
    %915 = vmatpush1.msra.mxu0 0.0
    %916 = vmatprep.subr.mxu0 0.0
    %917 = vmatpush1.msra.mxu0 0.0
    %918 = vmatprep.subr.mxu0 0.0
    %919 = vmatpush1.msra.mxu0 0.0
    %920 = vmatprep.subr.mxu0 0.0
    %921 = vmatpush1.msra.mxu0 0.0
    %922 = vmatprep.subr.mxu0 0.0
    %923 = vmatpush1.msra.mxu0 0.0
    %924 = vmatprep.subr.mxu0 0.0
    %925 = vmatpush1.msra.mxu0 0.0
    %926 = vmatprep.subr.mxu0 0.0
    %927 = vmatpush1.msra.mxu0 0.0
    %928 = vmatprep.subr.mxu0 0.0
    %929 = vmatpush1.msra.mxu0 0.0
    %930 = vmatprep.subr.mxu0 0.0
    %931 = vmatpush1.msra.mxu0 0.0
    %932 = vmatprep.subr.mxu0 0.0
    %933 = vmatpush1.msra.mxu0 0.0
    %934 = vmatprep.subr.mxu0 0.0
    %935 = vmatpush1.msra.mxu0 0.0
    %936 = vmatprep.subr.mxu0 0.0
    %937 = vmatpush1.msra.mxu0 0.0
    %938 = vmatprep.subr.mxu0 0.0
    %939 = vmatpush1.msra.mxu0 0.0
    %940 = vmatprep.subr.mxu0 0.0
    %941 = vmatpush1.msra.mxu0 0.0
    %942 = vmatprep.mubr.f32.mxu0 0.0
    %943 = vmatmul.mubr.f32.gmra.mrb[0].mxu0 %v298
    %v944 = vpop.f32.mrb[0].mxu0
    %v945 = vadd.f32 0.0, %v944
    %v946 = vpop.f32.mrb[0].mxu0
    %947 = vdwg.mxu0
    %948 = vmatprep.subr.mxu0 0.0
    %949 = vmatpush1.msra.mxu0 %v875
    %950 = vmatprep.subr.mxu0 0.0
    %951 = vmatpush1.msra.mxu0 0.0
    %952 = vmatprep.subr.mxu0 0.0
    %953 = vmatpush1.msra.mxu0 0.0
    %954 = vmatprep.subr.mxu0 0.0
    %955 = vmatpush1.msra.mxu0 0.0
    %956 = vmatprep.subr.mxu0 0.0
    %957 = vmatpush1.msra.mxu0 0.0
    %958 = vmatprep.subr.mxu0 0.0
    %959 = vmatpush1.msra.mxu0 0.0
    %960 = vmatprep.subr.mxu0 0.0
    %961 = vmatpush1.msra.mxu0 0.0
    %962 = vmatprep.subr.mxu0 0.0
    %963 = vmatpush1.msra.mxu0 0.0
    %964 = vmatprep.subr.mxu0 0.0
    %965 = vmatpush1.msra.mxu0 0.0
    %966 = vmatprep.subr.mxu0 0.0
    %967 = vmatpush1.msra.mxu0 0.0
    %968 = vmatprep.subr.mxu0 0.0
    %969 = vmatpush1.msra.mxu0 0.0
    %970 = vmatprep.subr.mxu0 0.0
    %971 = vmatpush1.msra.mxu0 0.0
    %972 = vmatprep.subr.mxu0 0.0
    %973 = vmatpush1.msra.mxu0 0.0
    %974 = vmatprep.subr.mxu0 0.0
    %975 = vmatpush1.msra.mxu0 0.0
    %976 = vmatprep.subr.mxu0 0.0
    %977 = vmatpush1.msra.mxu0 0.0
    %978 = vmatprep.subr.mxu0 0.0
    %979 = vmatpush1.msra.mxu0 0.0
    %980 = vmatprep.subr.mxu0 0.0
    %981 = vmatpush1.msra.mxu0 0.0
    %982 = vmatprep.subr.mxu0 0.0
    %983 = vmatpush1.msra.mxu0 0.0
    %984 = vmatprep.subr.mxu0 0.0
    %985 = vmatpush1.msra.mxu0 0.0
    %986 = vmatprep.subr.mxu0 0.0
    %987 = vmatpush1.msra.mxu0 0.0
    %988 = vmatprep.subr.mxu0 0.0
    %989 = vmatpush1.msra.mxu0 0.0
    %990 = vmatprep.subr.mxu0 0.0
    %991 = vmatpush1.msra.mxu0 0.0
    %992 = vmatprep.subr.mxu0 0.0
    %993 = vmatpush1.msra.mxu0 0.0
    %994 = vmatprep.subr.mxu0 0.0
    %995 = vmatpush1.msra.mxu0 0.0
    %996 = vmatprep.subr.mxu0 0.0
    %997 = vmatpush1.msra.mxu0 0.0
    %998 = vmatprep.subr.mxu0 0.0
    %999 = vmatpush1.msra.mxu0 0.0
    %1000 = vmatprep.subr.mxu0 0.0
    %1001 = vmatpush1.msra.mxu0 0.0
    %1002 = vmatprep.subr.mxu0 0.0
    %1003 = vmatpush1.msra.mxu0 0.0
    %1004 = vmatprep.subr.mxu0 0.0
    %1005 = vmatpush1.msra.mxu0 0.0
    %1006 = vmatprep.subr.mxu0 0.0
    %1007 = vmatpush1.msra.mxu0 0.0
    %1008 = vmatprep.subr.mxu0 0.0
    %1009 = vmatpush1.msra.mxu0 0.0
    %1010 = vmatprep.subr.mxu0 0.0
    %1011 = vmatpush1.msra.mxu0 0.0
    %1012 = vmatprep.mubr.f32.mxu0 0.0
    %1013 = vmatmul.mubr.f32.gmra.mrb[0].mxu0 %v793
    %v1014 = vpop.f32.mrb[0].mxu0
    %v1015 = vadd.f32 %v945, %v1014
    %v1016 = vpop.f32.mrb[0].mxu0
    %1017 = vdwg.mxu0
    %v1018 = vld [vmem:[#allocation29] sm:$0x1]
    %v1020 = vlaneseq
    %v1021 = vshrl.u32 %v1020, 7
    %v1022 = vsub.s32 0, %v1021
    %v1023 = vrot.slane %v1018, %v1022
    %v1025 = vadd.f32 %v1015, %v1023
    %vm1026 = vcmp.ge.f32.partialorder %v1025, 0.0
    %v1027 = vmul.f32 %v1025, 0.01
    %v1028 = vsel %vm1026, %v1025, %v1027
    %1029 = vst.msk [vmem:[#allocation34] sm:$0x3] %vm873, %v1028
    // Predicated region
    $region146: #{cvae_forward.13} parent=1 // pred_check
      _
    $region147: #{cvae_forward.13} parent=1 // pred_check_branch
      %1031 = sbr.rel (0) target = $region149
    $region148: #{cvae_forward.13} parent=1 // pred_region
      %s1033 = ssub.s32 32, 32
      %1034 = vsyncadd [#allocation4], %s1033
      %s1036 = sshll.u32 [#allocation31], 4
      %s1037 = int_to_ptr.vmem [resolvable:$true] %s1036
      %1039 = dma.vmem_to_hbm [thread:$0]  %s1037, 32, %s18, [#allocation4]
    $region149: #{cvae_forward.13} parent=1 // pred_fallthru
      _
    // Predicated region
    $region150: #{cvae_forward.13} parent=1 // pred_check
      _
    $region151: #{cvae_forward.13} parent=1 // pred_check_branch
      %1041 = sbr.rel (0) target = $region153
    $region152: #{cvae_forward.13} parent=1 // pred_region
      %s1043 = ssub.s32 32, 32
      %1044 = vsyncadd [#allocation33], %s1043
      %s1046 = sshll.u32 [#allocation32], 4
      %s1047 = int_to_ptr.vmem [resolvable:$true] %s1046
      %1049 = dma.vmem_to_hbm [thread:$0]  %s1047, 32, %s19, [#allocation33]
    $region153: #{cvae_forward.13} parent=1 // pred_fallthru
      _
    // Predicated region
    $region154: #{cvae_forward.13} parent=1 // pred_check
      _
    $region155: #{cvae_forward.13} parent=1 // pred_check_branch
      %1051 = sbr.rel (0) target = $region157
    $region156: #{cvae_forward.13} parent=1 // pred_region
      %s1053 = ssub.s32 32, 32
      %1054 = vsyncadd [#allocation33], %s1053
      %s1056 = sshll.u32 [#allocation34], 4
      %s1057 = int_to_ptr.vmem [resolvable:$true] %s1056
      %1059 = dma.vmem_to_hbm [thread:$0]  %s1057, 32, %s20, [#allocation33]
    $region157: #{cvae_forward.13} parent=1 // pred_fallthru
      _
    // Predicated region
    $region158: #{cvae_forward.13} parent=1 // pred_check
      _
    $region159: #{cvae_forward.13} parent=1 // pred_check_branch
      %1061 = sbr.rel (0) target = $region161
    $region160: #{cvae_forward.13} parent=1 // pred_region
      %s1063 = ssub.s32 32, 32
      %1064 = vsyncadd [#allocation36], %s1063
      %s1066 = sshll.u32 [#allocation35], 4
      %s1067 = int_to_ptr.vmem [resolvable:$true] %s1066
      %1069 = dma.vmem_to_hbm [thread:$0]  %s1067, 32, %s21, [#allocation36]
    $region161: #{cvae_forward.13} parent=1 // pred_fallthru
      _
    // Predicated region
    $region162: #{cvae_forward.13} parent=1 // pred_check
      _
    $region163: #{cvae_forward.13} parent=1 // pred_check_branch
      %1071 = sbr.rel (0) target = $region165
    $region164: #{cvae_forward.13} parent=1 // pred_region
      %1072 = dma.done [#allocation4], 32
    $region165: #{cvae_forward.13} parent=1 // pred_fallthru
      _
    // Predicated region
    $region166: #{cvae_forward.13} parent=1 // pred_check
      _
    $region167: #{cvae_forward.13} parent=1 // pred_check_branch
      %1074 = sbr.rel (0) target = $region169
    $region168: #{cvae_forward.13} parent=1 // pred_region
      %1075 = dma.done [#allocation33], 32
    $region169: #{cvae_forward.13} parent=1 // pred_fallthru
      _
    // Predicated region
    $region170: #{cvae_forward.13} parent=1 // pred_check
      _
    $region171: #{cvae_forward.13} parent=1 // pred_check_branch
      %1077 = sbr.rel (0) target = $region173
    $region172: #{cvae_forward.13} parent=1 // pred_region
      %1078 = dma.done [#allocation33], 32
    $region173: #{cvae_forward.13} parent=1 // pred_fallthru
      _
    // Predicated region
    $region174: #{cvae_forward.13} parent=1 // pred_check
      _
    $region175: #{cvae_forward.13} parent=1 // pred_check_branch
      %1080 = sbr.rel (0) target = $region177
    $region176: #{cvae_forward.13} parent=1 // pred_region
      %1081 = dma.done [#allocation36], 32
    $region177: #{cvae_forward.13} parent=1 // pred_fallthru
      _
    %1082 = vsyncpa [#allocation3], 1
    %1083 = vsyncpa [#allocation6], 1
    %1084 = vsyncpa [#allocation9], 1
    %1085 = vsyncpa [#allocation12], 1
    %1086 = vsyncpa [#allocation15], 1
    %1087 = vsyncpa [#allocation18], 1
    %1088 = vsyncpa [#allocation21], 1
    %1089 = vsyncpa [#allocation24], 1
    %1090 = vsyncpa [#allocation27], 1
    %1091 = vsyncpa [#allocation30], 1
    %1092 = vsyncpa [#allocation4], 1
    %1093 = vsyncpa [#allocation33], 1
    %1094 = vsyncpa [#allocation36], 1

// kernel: cvae_forward.15
$region0: #{cvae_forward.15}
  #allocation0 [shape = 'u32[]', space=smem, size = 0x4, offset = 0x4, fixed_abs, tag = 'smem constant byte address 0x4 - core index']
  #allocation1 [shape = 'u32[144,128]{1,0:T(1,128)}', space=vmem, size = 0x12000, scoped, tag = 'internal scratch']
  %s0 = inlined_call_operand.hbm [shape: bf16[14,16], index: 0, kind: input, shape index: {}]
  %s1 = inlined_call_operand.hbm [shape: bf16[16,96], index: 1, kind: input, shape index: {}]
  %s2 = inlined_call_operand.hbm [shape: f32[1,96], index: 2, kind: input, shape index: {}]
  %s3 = inlined_call_operand.hbm [shape: bf16[14,96], index: 3, kind: output, shape index: {}]
  %s4 = sld [smem:[#allocation0]]
  $region34: #{cvae_forward.15} parent=0
    _
  %s6 = ssub.s32 1, %s4
  %s7 = scalar_select 0, %s6, %s4
  $region1: #{cvae_forward.15} parent=0
    #allocation2 [shape = 'u8[4096]{0}', space=vmem, size = 0x1000, scoped, tag = 'input window, operand 0, single buffered']
    #allocation3 [shape = 's32[1]{0}', space=sflag, size = 0x4, scoped, tag = 'scoped memory for cvae_forward.15']
    #allocation4 [shape = 's32[1]{0}', space=sflag, size = 0x4, scoped, tag = 'scoped memory for cvae_forward.15']
    #allocation5 [shape = 'u8[4096]{0}', space=vmem, size = 0x1000, scoped, tag = 'input window, operand 1, single buffered']
    #allocation6 [shape = 's32[1]{0}', space=sflag, size = 0x4, scoped, tag = 'scoped memory for cvae_forward.15']
    #allocation7 [shape = 'u8[512]{0}', space=vmem, size = 0x400, scoped, tag = 'input window, operand 2, single buffered']
    #allocation8 [shape = 'u8[4096]{0}', space=vmem, size = 0x1000, scoped, tag = 'output window, operand 0, single buffered']
    %8 = vsyncpa [#allocation3], 0
    %9 = vsyncpa [#allocation6], 0
    %10 = vsyncpa [#allocation4], 0
    // Predicated region
    $region2: #{cvae_forward.15} parent=1 // pred_check
      _
    $region3: #{cvae_forward.15} parent=1 // pred_check_branch
      %12 = sbr.rel (0) target = $region5
    $region4: #{cvae_forward.15} parent=1 // pred_region
      %s14 = ssub.s32 128, 128
      %15 = vsyncadd [#allocation3], %s14
      %s16 = sshll.u32 [#allocation2], 4
      %s17 = int_to_ptr.vmem [resolvable:$true] %s16
      %22 = dma.hbm_to_vmem [thread:$0]  %s0, 128, %s17, [#allocation3], 64, 64, 4
    $region5: #{cvae_forward.15} parent=1 // pred_fallthru
      _
    // Predicated region
    $region6: #{cvae_forward.15} parent=1 // pred_check
      _
    $region7: #{cvae_forward.15} parent=1 // pred_check_branch
      %24 = sbr.rel (0) target = $region9
    $region8: #{cvae_forward.15} parent=1 // pred_region
      %s26 = ssub.s32 128, 128
      %27 = vsyncadd [#allocation6], %s26
      %s28 = sshll.u32 [#allocation5], 4
      %s29 = int_to_ptr.vmem [resolvable:$true] %s28
      %34 = dma.hbm_to_vmem [thread:$0]  %s1, 128, %s29, [#allocation6], 64, 64, 4
    $region9: #{cvae_forward.15} parent=1 // pred_fallthru
      _
    // Predicated region
    $region10: #{cvae_forward.15} parent=1 // pred_check
      _
    $region11: #{cvae_forward.15} parent=1 // pred_check_branch
      %36 = sbr.rel (0) target = $region13
    $region12: #{cvae_forward.15} parent=1 // pred_region
      %s38 = ssub.s32 16, 16
      %39 = vsyncadd [#allocation6], %s38
      %s41 = sshll.u32 [#allocation7], 4
      %s42 = int_to_ptr.vmem [resolvable:$true] %s41
      %44 = dma.hbm_to_vmem [thread:$0]  %s2, 16, %s42, [#allocation6]
    $region13: #{cvae_forward.15} parent=1 // pred_fallthru
      _
    // Predicated region
    $region14: #{cvae_forward.15} parent=1 // pred_check
      _
    $region15: #{cvae_forward.15} parent=1 // pred_check_branch
      %46 = sbr.rel (0) target = $region17
    $region16: #{cvae_forward.15} parent=1 // pred_region
      %47 = dma.done [#allocation3], 128
    $region17: #{cvae_forward.15} parent=1 // pred_fallthru
      _
    // Predicated region
    $region18: #{cvae_forward.15} parent=1 // pred_check
      _
    $region19: #{cvae_forward.15} parent=1 // pred_check_branch
      %49 = sbr.rel (0) target = $region21
    $region20: #{cvae_forward.15} parent=1 // pred_region
      %50 = dma.done [#allocation6], 128
    $region21: #{cvae_forward.15} parent=1 // pred_fallthru
      _
    // Predicated region
    $region22: #{cvae_forward.15} parent=1 // pred_check
      _
    $region23: #{cvae_forward.15} parent=1 // pred_check_branch
      %52 = sbr.rel (0) target = $region25
    $region24: #{cvae_forward.15} parent=1 // pred_region
      %53 = dma.done [#allocation6], 16
    $region25: #{cvae_forward.15} parent=1 // pred_fallthru
      _
    %v55 = vld [vmem:[#allocation2] sm:$0xf]
    %v56 = vld [vmem:[#allocation2 + $0x4] sm:$0x7]
    %v57 = vld [vmem:[#allocation5] sm:$0xf]
    %v58 = vld [vmem:[#allocation5 + $0x4] sm:$0xf]
    %v59 = vld [vmem:[#allocation7] sm:$0x1]
    %v61 = vlaneseq
    %v62 = vshrl.u32 %v61, 7
    %v63 = vsub.s32 0, %v62
    %v64 = vrot.slane %v59, %v63
    %v68 = vunpack.c.l.b16 %v55
    %v69 = vunpack.c.l.b16 %v56
    %v70 = vpack.c.b16 %v69, %v68
    %v73 = vunpack.c.l.b16 %v57
    %v74 = vunpack.c.l.b16 %v58
    %v75 = vpack.c.b16 %v74, %v73
    %vm77 = vcmask 130048
    %v79 = vsel %vm77, %v70, 0
    %81 = vmatprep.subr.bf16.mxu0 0
    %82 = vmatpush1.bf16.msra.mxu0 %v75
    %83 = vmatprep.subr.bf16.mxu0 0
    %84 = vmatpush1.bf16.msra.mxu0 0
    %85 = vmatprep.subr.bf16.mxu0 0
    %86 = vmatpush1.bf16.msra.mxu0 0
    %87 = vmatprep.subr.bf16.mxu0 0
    %88 = vmatpush1.bf16.msra.mxu0 0
    %89 = vmatprep.subr.bf16.mxu0 0
    %90 = vmatpush1.bf16.msra.mxu0 0
    %91 = vmatprep.subr.bf16.mxu0 0
    %92 = vmatpush1.bf16.msra.mxu0 0
    %93 = vmatprep.subr.bf16.mxu0 0
    %94 = vmatpush1.bf16.msra.mxu0 0
    %95 = vmatprep.subr.bf16.mxu0 0
    %96 = vmatpush1.bf16.msra.mxu0 0
    %97 = vmatprep.subr.bf16.mxu0 0
    %98 = vmatpush1.bf16.msra.mxu0 0
    %99 = vmatprep.subr.bf16.mxu0 0
    %100 = vmatpush1.bf16.msra.mxu0 0
    %101 = vmatprep.subr.bf16.mxu0 0
    %102 = vmatpush1.bf16.msra.mxu0 0
    %103 = vmatprep.subr.bf16.mxu0 0
    %104 = vmatpush1.bf16.msra.mxu0 0
    %105 = vmatprep.subr.bf16.mxu0 0
    %106 = vmatpush1.bf16.msra.mxu0 0
    %107 = vmatprep.subr.bf16.mxu0 0
    %108 = vmatpush1.bf16.msra.mxu0 0
    %109 = vmatprep.subr.bf16.mxu0 0
    %110 = vmatpush1.bf16.msra.mxu0 0
    %111 = vmatprep.subr.bf16.mxu0 0
    %112 = vmatpush1.bf16.msra.mxu0 0
    %113 = vmatprep.mubr.bf16.mxu0 0
    %114 = vmatmul.mubr.bf16.gmra.mrb[0].mxu0 %v79
    %v115 = vpop.f32.mrb[0].mxu0
    %v116 = vadd.f32 %v64, %v115
    %v117 = vpop.f32.mrb[0].mxu0
    %v118 = vpop.f32.mrb[0].mxu0
    %v119 = vadd.f32 %v64, %v118
    %v120 = vpop.f32.mrb[0].mxu0
    %121 = vdwg.mxu0
    %v122 = vpack.c.bf16 %v119, %v116
    %v124 = vunpack.c.l.b16 %v122
    %v125 = vunpack.c.h.b16 %v122
    %v126 = vpack.c.b16 %v124, %v124
    %v127 = vpack.c.b16 %v125, %v125
    %vm130 = vcmask 781312
    %131 = vst.msk [vmem:[#allocation8] sm:$0xf] %vm130, %v126
    %vm132 = vcmask 780288
    %133 = vst.msk [vmem:[#allocation8 + $0x4] sm:$0x7] %vm132, %v127
    // Predicated region
    $region26: #{cvae_forward.15} parent=1 // pred_check
      _
    $region27: #{cvae_forward.15} parent=1 // pred_check_branch
      %135 = sbr.rel (0) target = $region29
    $region28: #{cvae_forward.15} parent=1 // pred_region
      %s137 = ssub.s32 128, 128
      %138 = vsyncadd [#allocation4], %s137
      %s139 = sshll.u32 [#allocation8], 4
      %s140 = int_to_ptr.vmem [resolvable:$true] %s139
      %145 = dma.vmem_to_hbm [thread:$0]  %s140, 128, %s3, [#allocation4], 64, 64, 4
    $region29: #{cvae_forward.15} parent=1 // pred_fallthru
      _
    // Predicated region
    $region30: #{cvae_forward.15} parent=1 // pred_check
      _
    $region31: #{cvae_forward.15} parent=1 // pred_check_branch
      %147 = sbr.rel (0) target = $region33
    $region32: #{cvae_forward.15} parent=1 // pred_region
      %148 = dma.done [#allocation4], 128
    $region33: #{cvae_forward.15} parent=1 // pred_fallthru
      _
    %149 = vsyncpa [#allocation3], 1
    %150 = vsyncpa [#allocation6], 1
    %151 = vsyncpa [#allocation4], 1

// kernel: cvae_forward.16
$region0: #{cvae_forward.16}
  #allocation0 [shape = 'u32[]', space=smem, size = 0x4, offset = 0x4, fixed_abs, tag = 'smem constant byte address 0x4 - core index']
  #allocation1 [shape = 'u32[144,128]{1,0:T(1,128)}', space=vmem, size = 0x12000, scoped, tag = 'internal scratch']
  #allocation2 [shape = 'f32[2,32]{1,0:T(2,128)}', space=vmem, size = 0x400, scoped, tag = 'scratch operand']
  %s0 = inlined_call_operand.hbm [shape: bf16[7,2,96], index: 0, kind: input, shape index: {}]
  %s1 = inlined_call_operand.hbm [shape: f32[2,32], index: 1, kind: input, shape index: {}]
  %s2 = inlined_call_operand.hbm [shape: bf16[32,96], index: 2, kind: input, shape index: {}]
  %s3 = inlined_call_operand.hbm [shape: f32[1,96], index: 3, kind: input, shape index: {}]
  %s4 = inlined_call_operand.hbm [shape: bf16[7,2,32], index: 4, kind: output, shape index: {}]
  %s5 = sld [smem:[#allocation0]]
  $region69: #{cvae_forward.16} parent=0
    _
  %s7 = ssub.s32 1, %s5
  %s8 = scalar_select 0, %s7, %s5
  $region1: #{cvae_forward.16} parent=0
    #allocation3 [shape = 'u8[1024]{0}', space=vmem, size = 0x400, scoped, tag = 'input window, operand 0']
    #allocation4 [shape = 's32[2]{0}', space=sflag, size = 0x8, scoped, tag = 'scoped memory for cvae_forward.16']
    #allocation5 [shape = 's32[2]{0}', space=sflag, size = 0x8, scoped, tag = 'scoped memory for cvae_forward.16']
    #allocation6 [shape = 'u8[1024]{0}', space=vmem, size = 0x400, scoped, tag = 'input window, operand 1, single buffered']
    #allocation7 [shape = 's32[1]{0}', space=sflag, size = 0x4, scoped, tag = 'scoped memory for cvae_forward.16']
    #allocation8 [shape = 'u8[8192]{0}', space=vmem, size = 0x2000, scoped, tag = 'input window, operand 2, single buffered']
    #allocation9 [shape = 'u8[512]{0}', space=vmem, size = 0x400, scoped, tag = 'input window, operand 3, single buffered']
    #allocation10 [shape = 's32[1]{0}', space=sflag, size = 0x4, scoped, tag = 'scoped memory for cvae_forward.16']
    #allocation11 [shape = 'u8[1024]{0}', space=vmem, size = 0x400, scoped, tag = 'output window, operand 0']
    %9 = vsyncpa [#allocation4], 0
    %s10 = scalar_lea.sflag [#allocation4], 1
    %11 = vsyncpa %s10, 0
    %12 = vsyncpa [#allocation7], 0
    %13 = vsyncpa [#allocation10], 0
    %14 = vsyncpa [#allocation5], 0
    %s15 = scalar_lea.sflag [#allocation5], 1
    %16 = vsyncpa %s15, 0
    loop: start=0, step=1, limit=9
    $region2: #{cvae_forward.16} parent=1 // loop_pre_header
      _
    $region3: #{cvae_forward.16} parent=1 // loop_header
      %s18 = sphi 0, %s22
      %p19 = scmp.ge.s32.totalorder %s18, 9
      %s28 = sphi 0, %s30
      %s31 = sphi 0, %s28
      %s32 = sphi 0, %s31
      %s48 = sphi 0, %s32
      %s52 = sphi 0, %s52
      %s54 = sphi 0, %s52
      %s55 = sphi 0, %s54
      %s69 = sphi 0, %s55
      %s73 = sphi 0, %s73
      %s75 = sphi 0, %s73
      %s76 = sphi 0, %s75
      %s90 = sphi 0, %s76
      %s94 = sphi 0, %s94
      %s96 = sphi 0, %s94
      %s97 = sphi 0, %s96
      %s111 = sphi 0, %s97
      %s117 = sphi 0, %s119
      %s120 = sphi 0, %s117
      %s121 = sphi 0, %s120
      %s137 = sphi 0, %s121
    $region4: #{cvae_forward.16} parent=1 // loop_header_branch
      %21 = sbr.rel (%p19) target = $region8
    $region5: #{cvae_forward.16} parent=1 // loop_body
      %s23 = ssub.s32 %s18, 1
      %s24 = ssub.s32 %s18, 2
      %s25 = sadd.s32 %s18, 1
      %s26 = ssub.s32 %s18, %s25
      %p27 = scmp.eq.s32.totalorder %s26, 0
      %s29 = sadd.s32 %s28, 1
      %s30 = scalar_select %p27, %s28, %s29
      %p33 = pneg %p27
      %p34 = scmp.eq.s32.totalorder %s18, 6
      %p35 = por %p33, %p34
      %p36 = scmp.ne.s32.totalorder %s28, %s31
      %p37 = scmp.eq.s32.totalorder %s18, 0
      %p38 = por %p36, %p37
      %p39 = scmp.ne.s32.totalorder %s28, %s31
      %p40 = scmp.eq.s32.totalorder %s23, 6
      %p41 = por %p39, %p40
      %p42 = scmp.ne.s32.totalorder %s31, %s32
      %p43 = scmp.eq.s32.totalorder %s23, 0
      %p44 = por %p42, %p43
      %p45 = scmp.ne.s32.totalorder %s31, %s32
      %p46 = scmp.eq.s32.totalorder %s24, 6
      %p47 = por %p45, %p46
      %p49 = scmp.ne.s32.totalorder %s32, %s48
      %p50 = scmp.eq.s32.totalorder %s24, 0
      %p51 = por %p49, %p50
      %s53 = sadd.s32 %s52, 1
      %p56 = scmp.eq.s32.totalorder %s18, 6
      %p57 = scmp.ne.s32.totalorder %s52, %s54
      %p58 = scmp.eq.s32.totalorder %s18, 0
      %p59 = por %p57, %p58
      %p60 = scmp.ne.s32.totalorder %s52, %s54
      %p61 = scmp.eq.s32.totalorder %s23, 6
      %p62 = por %p60, %p61
      %p63 = scmp.ne.s32.totalorder %s54, %s55
      %p64 = scmp.eq.s32.totalorder %s23, 0
      %p65 = por %p63, %p64
      %p66 = scmp.ne.s32.totalorder %s54, %s55
      %p67 = scmp.eq.s32.totalorder %s24, 6
      %p68 = por %p66, %p67
      %p70 = scmp.ne.s32.totalorder %s55, %s69
      %p71 = scmp.eq.s32.totalorder %s24, 0
      %p72 = por %p70, %p71
      %s74 = sadd.s32 %s73, 1
      %p77 = scmp.eq.s32.totalorder %s18, 6
      %p78 = scmp.ne.s32.totalorder %s73, %s75
      %p79 = scmp.eq.s32.totalorder %s18, 0
      %p80 = por %p78, %p79
      %p81 = scmp.ne.s32.totalorder %s73, %s75
      %p82 = scmp.eq.s32.totalorder %s23, 6
      %p83 = por %p81, %p82
      %p84 = scmp.ne.s32.totalorder %s75, %s76
      %p85 = scmp.eq.s32.totalorder %s23, 0
      %p86 = por %p84, %p85
      %p87 = scmp.ne.s32.totalorder %s75, %s76
      %p88 = scmp.eq.s32.totalorder %s24, 6
      %p89 = por %p87, %p88
      %p91 = scmp.ne.s32.totalorder %s76, %s90
      %p92 = scmp.eq.s32.totalorder %s24, 0
      %p93 = por %p91, %p92
      %s95 = sadd.s32 %s94, 1
      %p98 = scmp.eq.s32.totalorder %s18, 6
      %p99 = scmp.ne.s32.totalorder %s94, %s96
      %p100 = scmp.eq.s32.totalorder %s18, 0
      %p101 = por %p99, %p100
      %p102 = scmp.ne.s32.totalorder %s94, %s96
      %p103 = scmp.eq.s32.totalorder %s23, 6
      %p104 = por %p102, %p103
      %p105 = scmp.ne.s32.totalorder %s96, %s97
      %p106 = scmp.eq.s32.totalorder %s23, 0
      %p107 = por %p105, %p106
      %p108 = scmp.ne.s32.totalorder %s96, %s97
      %p109 = scmp.eq.s32.totalorder %s24, 6
      %p110 = por %p108, %p109
      %p112 = scmp.ne.s32.totalorder %s97, %s111
      %p113 = scmp.eq.s32.totalorder %s24, 0
      %p114 = por %p112, %p113
      %s115 = ssub.s32 %s18, %s25
      %p116 = scmp.eq.s32.totalorder %s115, 0
      %s118 = sadd.s32 %s117, 1
      %s119 = scalar_select %p116, %s117, %s118
      %p122 = pneg %p116
      %p123 = scmp.eq.s32.totalorder %s18, 6
      %p124 = por %p122, %p123
      %p125 = scmp.ne.s32.totalorder %s117, %s120
      %p126 = scmp.eq.s32.totalorder %s18, 0
      %p127 = por %p125, %p126
      %p128 = scmp.ne.s32.totalorder %s117, %s120
      %p129 = scmp.eq.s32.totalorder %s23, 6
      %p130 = por %p128, %p129
      %p131 = scmp.ne.s32.totalorder %s120, %s121
      %p132 = scmp.eq.s32.totalorder %s23, 0
      %p133 = por %p131, %p132
      %p134 = scmp.ne.s32.totalorder %s120, %s121
      %p135 = scmp.eq.s32.totalorder %s24, 6
      %p136 = por %p134, %p135
      %p138 = scmp.ne.s32.totalorder %s121, %s137
      %p139 = scmp.eq.s32.totalorder %s24, 0
      %p140 = por %p138, %p139
      %p141 = scmp.le.s32.totalorder 1, %s18
      %p142 = scmp.lt.s32.totalorder %s18, 8
      %p143 = pnand %p141, %p142
      %p144 = pneg %p143
      // Predicated region
      $region9: #{cvae_forward.16} parent=5 // pred_check
        _
      $region10: #{cvae_forward.16} parent=5 // pred_check_branch
        %146 = sbr.rel (%p143) target = $region12
      $region11: #{cvae_forward.16} parent=5 // pred_region
        %s147 = ssub.s32 %s18, 1
        // Predicated region
        $region13: #{cvae_forward.16} parent=11 // pred_check
          %p148 = pneg %p65
        $region14: #{cvae_forward.16} parent=11 // pred_check_branch
          %150 = sbr.rel (%p148) target = $region16
        $region15: #{cvae_forward.16} parent=11 // pred_region
          %s152 = ssub.s32 32, 32
          %153 = vsyncadd [#allocation7], %s152
          %s155 = sshll.u32 [#allocation6], 4
          %s156 = int_to_ptr.vmem [resolvable:$true] %s155
          %158 = dma.hbm_to_vmem [thread:$0]  %s1, 32, %s156, [#allocation7]
        $region16: #{cvae_forward.16} parent=11 // pred_fallthru
          _
        // Predicated region
        $region17: #{cvae_forward.16} parent=11 // pred_check
          %p159 = pneg %p86
        $region18: #{cvae_forward.16} parent=11 // pred_check_branch
          %161 = sbr.rel (%p159) target = $region20
        $region19: #{cvae_forward.16} parent=11 // pred_region
          %s163 = ssub.s32 256, 256
          %164 = vsyncadd [#allocation7], %s163
          %s165 = sshll.u32 [#allocation8], 4
          %s166 = int_to_ptr.vmem [resolvable:$true] %s165
          %171 = dma.hbm_to_vmem [thread:$0]  %s2, 256, %s166, [#allocation7], 64, 64, 4
        $region20: #{cvae_forward.16} parent=11 // pred_fallthru
          _
        // Predicated region
        $region21: #{cvae_forward.16} parent=11 // pred_check
          %p172 = pneg %p107
        $region22: #{cvae_forward.16} parent=11 // pred_check_branch
          %174 = sbr.rel (%p172) target = $region24
        $region23: #{cvae_forward.16} parent=11 // pred_region
          %s176 = ssub.s32 16, 16
          %177 = vsyncadd [#allocation10], %s176
          %s179 = sshll.u32 [#allocation9], 4
          %s180 = int_to_ptr.vmem [resolvable:$true] %s179
          %182 = dma.hbm_to_vmem [thread:$0]  %s3, 16, %s180, [#allocation10]
        $region24: #{cvae_forward.16} parent=11 // pred_fallthru
          _
      $region12: #{cvae_forward.16} parent=5 // pred_fallthru
        _
      %p183 = scmp.lt.s32.totalorder %s18, 7
      // Predicated region
      $region25: #{cvae_forward.16} parent=5 // pred_check
        %p184 = pneg %p183
      $region26: #{cvae_forward.16} parent=5 // pred_check_branch
        %186 = sbr.rel (%p184) target = $region28
      $region27: #{cvae_forward.16} parent=5 // pred_region
        // Predicated region
        $region29: #{cvae_forward.16} parent=27 // pred_check
          %p187 = pneg %p38
        $region30: #{cvae_forward.16} parent=27 // pred_check_branch
          %189 = sbr.rel (%p187) target = $region32
        $region31: #{cvae_forward.16} parent=27 // pred_region
          %s190 = sand.u32 %s28, 1
          %s191 = scalar_lea.sflag [#allocation4], %s190
          %s192 = sand.u32 %s28, 1
          %s193 = scalar_lea.vmem [#allocation3], %s192
          %s195 = ssub.s32 16, 16
          %196 = vsyncadd %s191, %s195
          %s197 = smul.addr %s18, 16
          %s198 = scalar_lea.hbm %s0, %s197
          %s200 = sshll.u32 %s193, 4
          %s201 = int_to_ptr.vmem [resolvable:$true] %s200
          %203 = dma.hbm_to_vmem [thread:$0]  %s198, 16, %s201, %s191
        $region32: #{cvae_forward.16} parent=27 // pred_fallthru
          _
      $region28: #{cvae_forward.16} parent=5 // pred_fallthru
        _
      %p204 = scmp.le.s32.totalorder 1, %s18
      %p205 = scmp.lt.s32.totalorder %s18, 8
      %p206 = pnand %p204, %p205
      %p207 = pneg %p206
      // Predicated region
      $region33: #{cvae_forward.16} parent=5 // pred_check
        _
      $region34: #{cvae_forward.16} parent=5 // pred_check_branch
        %209 = sbr.rel (%p206) target = $region36
      $region35: #{cvae_forward.16} parent=5 // pred_region
        %s210 = ssub.s32 %s18, 1
        %s211 = sand.u32 %s31, 1
        %s212 = scalar_lea.sflag [#allocation4], %s211
        %s213 = sand.u32 %s31, 1
        %s214 = scalar_lea.vmem [#allocation3], %s213
        // Predicated region
        $region37: #{cvae_forward.16} parent=35 // pred_check
          %p215 = pneg %p44
        $region38: #{cvae_forward.16} parent=35 // pred_check_branch
          %217 = sbr.rel (%p215) target = $region40
        $region39: #{cvae_forward.16} parent=35 // pred_region
          %218 = dma.done %s212, 16
        $region40: #{cvae_forward.16} parent=35 // pred_fallthru
          _
        // Predicated region
        $region41: #{cvae_forward.16} parent=35 // pred_check
          %p219 = pneg %p65
        $region42: #{cvae_forward.16} parent=35 // pred_check_branch
          %221 = sbr.rel (%p219) target = $region44
        $region43: #{cvae_forward.16} parent=35 // pred_region
          %222 = dma.done [#allocation7], 32
        $region44: #{cvae_forward.16} parent=35 // pred_fallthru
          _
        // Predicated region
        $region45: #{cvae_forward.16} parent=35 // pred_check
          %p223 = pneg %p86
        $region46: #{cvae_forward.16} parent=35 // pred_check_branch
          %225 = sbr.rel (%p223) target = $region48
        $region47: #{cvae_forward.16} parent=35 // pred_region
          %226 = dma.done [#allocation7], 256
        $region48: #{cvae_forward.16} parent=35 // pred_fallthru
          _
        // Predicated region
        $region49: #{cvae_forward.16} parent=35 // pred_check
          %p227 = pneg %p107
        $region50: #{cvae_forward.16} parent=35 // pred_check_branch
          %229 = sbr.rel (%p227) target = $region52
        $region51: #{cvae_forward.16} parent=35 // pred_region
          %230 = dma.done [#allocation10], 16
        $region52: #{cvae_forward.16} parent=35 // pred_fallthru
          _
        %s231 = sand.u32 %s31, 1
        %s232 = scalar_lea.sflag [#allocation4], %s231
        %s233 = sand.u32 %s31, 1
        %s234 = scalar_lea.vmem [#allocation3], %s233
        %p235 = pneg %p44
        %p236 = pneg %p41
        %p237 = pneg %p65
        %p238 = pneg %p62
        %p239 = pneg %p86
        %p240 = pneg %p83
        %p241 = pneg %p107
        %p242 = pneg %p104
        %p243 = pneg %p133
        %p244 = pneg %p130
        %s245 = sand.u32 %s120, 1
        %s246 = scalar_lea.sflag [#allocation5], %s245
        %s247 = sand.u32 %s120, 1
        %s248 = scalar_lea.vmem [#allocation11], %s247
        %p250 = scmp.eq.s32.totalorder %s23, 0
        // Predicated region
        $region53: #{cvae_forward.16} parent=35 // pred_check
          %p251 = pneg %p250
        $region54: #{cvae_forward.16} parent=35 // pred_check_branch
          %253 = sbr.rel (%p251) target = $region56
        $region55: #{cvae_forward.16} parent=35 // pred_region
          %v254 = vld [vmem:[#allocation6] sm:$0x3]
          %vm255 = vcmask 254976
          %256 = vst.msk [vmem:[#allocation2] sm:$0x3] %vm255, %v254
        $region56: #{cvae_forward.16} parent=35 // pred_fallthru
          _
        %v257 = vld [vmem:[#allocation2] sm:$0x3]
        %v258 = vld [vmem:[%s214] sm:$0x1]
        %v259 = vunpack.c.l.bf16 %v258
        %v260 = vld [vmem:[#allocation8] sm:$0xf]
        %v261 = vld [vmem:[#allocation8 + $0x4] sm:$0xf]
        %v262 = vld [vmem:[#allocation8 + $0x8] sm:$0xf]
        %v263 = vld [vmem:[#allocation8 + $0xc] sm:$0xf]
        %v264 = vld [vmem:[#allocation9] sm:$0x1]
        %v265 = vpack.c.bf16 %v257, %v257
        %v267 = vlaneseq
        %v268 = vshrl.u32 %v267, 7
        %v269 = vsub.s32 0, %v268
        %v270 = vrot.slane %v264, %v269
        %v276 = vunpack.c.l.b16 %v260
        %v277 = vunpack.c.l.b16 %v261
        %v278 = vunpack.c.l.b16 %v262
        %v279 = vunpack.c.l.b16 %v263
        %v280 = vpack.c.b16 %v277, %v276
        %v281 = vpack.c.b16 %v279, %v278
        %vm284 = vcmask 261120
        %v286 = vsel %vm284, %v265, 0
        %288 = vmatprep.subr.bf16.mxu0 0
        %289 = vmatpush1.bf16.msra.mxu0 %v280
        %290 = vmatprep.subr.bf16.mxu0 0
        %291 = vmatpush1.bf16.msra.mxu0 %v281
        %292 = vmatprep.subr.bf16.mxu0 0
        %293 = vmatpush1.bf16.msra.mxu0 0
        %294 = vmatprep.subr.bf16.mxu0 0
        %295 = vmatpush1.bf16.msra.mxu0 0
        %296 = vmatprep.subr.bf16.mxu0 0
        %297 = vmatpush1.bf16.msra.mxu0 0
        %298 = vmatprep.subr.bf16.mxu0 0
        %299 = vmatpush1.bf16.msra.mxu0 0
        %300 = vmatprep.subr.bf16.mxu0 0
        %301 = vmatpush1.bf16.msra.mxu0 0
        %302 = vmatprep.subr.bf16.mxu0 0
        %303 = vmatpush1.bf16.msra.mxu0 0
        %304 = vmatprep.subr.bf16.mxu0 0
        %305 = vmatpush1.bf16.msra.mxu0 0
        %306 = vmatprep.subr.bf16.mxu0 0
        %307 = vmatpush1.bf16.msra.mxu0 0
        %308 = vmatprep.subr.bf16.mxu0 0
        %309 = vmatpush1.bf16.msra.mxu0 0
        %310 = vmatprep.subr.bf16.mxu0 0
        %311 = vmatpush1.bf16.msra.mxu0 0
        %312 = vmatprep.subr.bf16.mxu0 0
        %313 = vmatpush1.bf16.msra.mxu0 0
        %314 = vmatprep.subr.bf16.mxu0 0
        %315 = vmatpush1.bf16.msra.mxu0 0
        %316 = vmatprep.subr.bf16.mxu0 0
        %317 = vmatpush1.bf16.msra.mxu0 0
        %318 = vmatprep.subr.bf16.mxu0 0
        %319 = vmatpush1.bf16.msra.mxu0 0
        %320 = vmatprep.mubr.bf16.mxu0 0
        %321 = vmatmul.mubr.bf16.gmra.mrb[0].mxu0 %v286
        %v322 = vpop.f32.mrb[0].mxu0
        %v323 = vadd.f32 %v270, %v322
        %v324 = vpop.f32.mrb[0].mxu0
        %v325 = vpop.f32.mrb[0].mxu0
        %v326 = vpop.f32.mrb[0].mxu0
        %327 = vdwg.mxu0
        %v328 = vadd.f32 %v259, %v323
        %v329 = vxor.u32 %v328, 2147483648
        %v330 = vmul.f32 %v329, 1.442695
        %v331 = vpow.pop %v330
        %v332 = vadd.f32 %v331, 1.0
        %v333 = vrcp.pop %v332
        %v334 = vmul.f32 1.0, %v333
        %v337 = vunpack.c.l.s4 1983009808
        %v338 = vunpack.c.0.s8 %v337
        %v339 = vlaneseq
        %v340 = vshrl.u32 %v339, 7
        %v341 = vsub.s32 %v338, %v340
        %v342 = vrot.slane %v323, %v341
        %343 = vrot.lane.b32.xlu0 %v342, 64
        %v344 = vpop.permute.xlu0 %343
        %v346 = vmul.f32 %v334, %v344
        %348 = vrot.lane.b32.xlu0 %v346, 64
        %v349 = vpop.permute.xlu0 %348
        %v351 = vadd.f32 %v259, %v349
        %v352 = vtanh.pop %v351
        %v353 = vsub.f32 1.0, %v334
        %355 = vrot.lane.b32.xlu0 %v352, 96
        %v356 = vpop.permute.xlu0 %355
        %v358 = vmul.f32 %v353, %v356
        %v361 = vunpack.c.l.s4 1983009808
        %v362 = vunpack.c.0.s8 %v361
        %v363 = vlaneseq
        %v364 = vshrl.u32 %v363, 7
        %v365 = vsub.s32 %v362, %v364
        %v366 = vrot.slane %v257, %v365
        %367 = vrot.lane.b32.xlu0 %v366, 32
        %v368 = vpop.permute.xlu0 %367
        %v370 = vmul.f32 %v334, %v368
        %v371 = vadd.f32 %v358, %v370
        %v374 = vunpack.c.l.s4 1983009808
        %v375 = vunpack.c.0.s8 %v374
        %v376 = vlaneseq
        %v377 = vshrl.u32 %v376, 7
        %v378 = vsub.s32 %v375, %v377
        %v379 = vrot.slane %v371, %v378
        %380 = vrot.lane.b32.xlu0 %v379, 96
        %v381 = vpop.permute.xlu0 %380
        %vm383 = vcmask 254976
        %384 = vst.msk [vmem:[#allocation2] sm:$0x3] %vm383, %v381
        %v385 = vpack.c.bf16 %v371, %v371
        %v388 = vunpack.c.l.s4 1966171168
        %v389 = vunpack.c.0.s8 %v388
        %v390 = vlaneseq
        %v391 = vshrl.u32 %v390, 7
        %v392 = vsub.s32 %v389, %v391
        %v393 = vrot.slane %v385, %v392
        %v395 = vunpack.c.l.s4 1966171168
        %v396 = vunpack.c.0.s8 %v395
        %v397 = vlaneseq
        %v398 = vshrl.u32 %v397, 7
        %v399 = vsub.s32 %v396, %v398
        %v400 = vrot.slane %v393, %v399
        %401 = vrot.lane.b32.xlu0 %v400, 96
        %v402 = vpop.permute.xlu0 %401
        %vm404 = vcmask 253952
        %405 = vst.msk [vmem:[%s248] sm:$0x1] %vm404, %v402
        %s406 = sand.u32 %s120, 1
        %s407 = scalar_lea.sflag [#allocation5], %s406
        %s408 = sand.u32 %s120, 1
        %s409 = scalar_lea.vmem [#allocation11], %s408
        // Predicated region
        $region57: #{cvae_forward.16} parent=35 // pred_check
          %p410 = pneg %p130
        $region58: #{cvae_forward.16} parent=35 // pred_check_branch
          %412 = sbr.rel (%p410) target = $region60
        $region59: #{cvae_forward.16} parent=35 // pred_region
          %s414 = ssub.s32 16, 16
          %415 = vsyncadd %s407, %s414
          %s416 = smul.addr %s23, 16
          %s417 = scalar_lea.hbm %s4, %s416
          %s419 = sshll.u32 %s409, 4
          %s420 = int_to_ptr.vmem [resolvable:$true] %s419
          %422 = dma.vmem_to_hbm [thread:$0]  %s420, 16, %s417, %s407
        $region60: #{cvae_forward.16} parent=35 // pred_fallthru
          _
      $region36: #{cvae_forward.16} parent=5 // pred_fallthru
        _
      %p423 = scmp.le.s32.totalorder 2, %s18
      // Predicated region
      $region61: #{cvae_forward.16} parent=5 // pred_check
        %p424 = pneg %p423
      $region62: #{cvae_forward.16} parent=5 // pred_check_branch
        %426 = sbr.rel (%p424) target = $region64
      $region63: #{cvae_forward.16} parent=5 // pred_region
        %s427 = ssub.s32 %s18, 2
        // Predicated region
        $region65: #{cvae_forward.16} parent=63 // pred_check
          %p428 = pneg %p136
        $region66: #{cvae_forward.16} parent=63 // pred_check_branch
          %430 = sbr.rel (%p428) target = $region68
        $region67: #{cvae_forward.16} parent=63 // pred_region
          %s431 = sand.u32 %s121, 1
          %s432 = scalar_lea.sflag [#allocation5], %s431
          %s433 = sand.u32 %s121, 1
          %s434 = scalar_lea.vmem [#allocation11], %s433
          %435 = dma.done %s432, 16
        $region68: #{cvae_forward.16} parent=63 // pred_fallthru
          _
      $region64: #{cvae_forward.16} parent=5 // pred_fallthru
        _
    $region6: #{cvae_forward.16} parent=1 // loop_footer
      %s22 = sadd.s32 1, %s18
    $region7: #{cvae_forward.16} parent=1 // loop_footer_branch
      %17 = sbr.rel target = $region3
    $region8: #{cvae_forward.16} parent=1 // loop_exit
      _
    %436 = vsyncpa [#allocation4], 1
    %s437 = scalar_lea.sflag [#allocation4], 1
    %438 = vsyncpa %s437, 1
    %439 = vsyncpa [#allocation7], 1
    %440 = vsyncpa [#allocation10], 1
    %441 = vsyncpa [#allocation5], 1
    %s442 = scalar_lea.sflag [#allocation5], 1
    %443 = vsyncpa %s442, 1

// kernel: cvae_forward.17
$region0: #{cvae_forward.17}
  #allocation0 [shape = 'u32[]', space=smem, size = 0x4, offset = 0x4, fixed_abs, tag = 'smem constant byte address 0x4 - core index']
  #allocation1 [shape = 'u32[144,128]{1,0:T(1,128)}', space=vmem, size = 0x12000, scoped, tag = 'internal scratch']
  %s0 = inlined_call_operand.hbm [shape: bf16[14,32], index: 0, kind: input, shape index: {}]
  %s1 = inlined_call_operand.hbm [shape: bf16[32,32], index: 1, kind: input, shape index: {}]
  %s2 = inlined_call_operand.hbm [shape: f32[1,32], index: 2, kind: input, shape index: {}]
  %s3 = inlined_call_operand.hbm [shape: f32[14,32], index: 3, kind: output, shape index: {}]
  %s4 = sld [smem:[#allocation0]]
  $region34: #{cvae_forward.17} parent=0
    _
  %s6 = ssub.s32 1, %s4
  %s7 = scalar_select 0, %s6, %s4
  $region1: #{cvae_forward.17} parent=0
    #allocation2 [shape = 'u8[4096]{0}', space=vmem, size = 0x1000, scoped, tag = 'input window, operand 0, single buffered']
    #allocation3 [shape = 's32[1]{0}', space=sflag, size = 0x4, scoped, tag = 'scoped memory for cvae_forward.17']
    #allocation4 [shape = 's32[1]{0}', space=sflag, size = 0x4, scoped, tag = 'scoped memory for cvae_forward.17']
    #allocation5 [shape = 'u8[8192]{0}', space=vmem, size = 0x2000, scoped, tag = 'input window, operand 1, single buffered']
    #allocation6 [shape = 's32[1]{0}', space=sflag, size = 0x4, scoped, tag = 'scoped memory for cvae_forward.17']
    #allocation7 [shape = 'u8[512]{0}', space=vmem, size = 0x400, scoped, tag = 'input window, operand 2, single buffered']
    #allocation8 [shape = 'u8[8192]{0}', space=vmem, size = 0x2000, scoped, tag = 'output window, operand 0, single buffered']
    %8 = vsyncpa [#allocation3], 0
    %9 = vsyncpa [#allocation6], 0
    %10 = vsyncpa [#allocation4], 0
    // Predicated region
    $region2: #{cvae_forward.17} parent=1 // pred_check
      _
    $region3: #{cvae_forward.17} parent=1 // pred_check_branch
      %12 = sbr.rel (0) target = $region5
    $region4: #{cvae_forward.17} parent=1 // pred_region
      %s14 = ssub.s32 128, 128
      %15 = vsyncadd [#allocation3], %s14
      %s16 = sshll.u32 [#allocation2], 4
      %s17 = int_to_ptr.vmem [resolvable:$true] %s16
      %22 = dma.hbm_to_vmem [thread:$0]  %s0, 128, %s17, [#allocation3], 64, 64, 4
    $region5: #{cvae_forward.17} parent=1 // pred_fallthru
      _
    // Predicated region
    $region6: #{cvae_forward.17} parent=1 // pred_check
      _
    $region7: #{cvae_forward.17} parent=1 // pred_check_branch
      %24 = sbr.rel (0) target = $region9
    $region8: #{cvae_forward.17} parent=1 // pred_region
      %s26 = ssub.s32 256, 256
      %27 = vsyncadd [#allocation6], %s26
      %s28 = sshll.u32 [#allocation5], 4
      %s29 = int_to_ptr.vmem [resolvable:$true] %s28
      %34 = dma.hbm_to_vmem [thread:$0]  %s1, 256, %s29, [#allocation6], 64, 64, 4
    $region9: #{cvae_forward.17} parent=1 // pred_fallthru
      _
    // Predicated region
    $region10: #{cvae_forward.17} parent=1 // pred_check
      _
    $region11: #{cvae_forward.17} parent=1 // pred_check_branch
      %36 = sbr.rel (0) target = $region13
    $region12: #{cvae_forward.17} parent=1 // pred_region
      %s38 = ssub.s32 16, 16
      %39 = vsyncadd [#allocation6], %s38
      %s41 = sshll.u32 [#allocation7], 4
      %s42 = int_to_ptr.vmem [resolvable:$true] %s41
      %44 = dma.hbm_to_vmem [thread:$0]  %s2, 16, %s42, [#allocation6]
    $region13: #{cvae_forward.17} parent=1 // pred_fallthru
      _
    // Predicated region
    $region14: #{cvae_forward.17} parent=1 // pred_check
      _
    $region15: #{cvae_forward.17} parent=1 // pred_check_branch
      %46 = sbr.rel (0) target = $region17
    $region16: #{cvae_forward.17} parent=1 // pred_region
      %47 = dma.done [#allocation3], 128
    $region17: #{cvae_forward.17} parent=1 // pred_fallthru
      _
    // Predicated region
    $region18: #{cvae_forward.17} parent=1 // pred_check
      _
    $region19: #{cvae_forward.17} parent=1 // pred_check_branch
      %49 = sbr.rel (0) target = $region21
    $region20: #{cvae_forward.17} parent=1 // pred_region
      %50 = dma.done [#allocation6], 256
    $region21: #{cvae_forward.17} parent=1 // pred_fallthru
      _
    // Predicated region
    $region22: #{cvae_forward.17} parent=1 // pred_check
      _
    $region23: #{cvae_forward.17} parent=1 // pred_check_branch
      %52 = sbr.rel (0) target = $region25
    $region24: #{cvae_forward.17} parent=1 // pred_region
      %53 = dma.done [#allocation6], 16
    $region25: #{cvae_forward.17} parent=1 // pred_fallthru
      _
    %v55 = vld [vmem:[#allocation2] sm:$0xf]
    %v56 = vld [vmem:[#allocation2 + $0x4] sm:$0x7]
    %v57 = vld [vmem:[#allocation5] sm:$0xf]
    %v58 = vld [vmem:[#allocation5 + $0x4] sm:$0xf]
    %v59 = vld [vmem:[#allocation5 + $0x8] sm:$0xf]
    %v60 = vld [vmem:[#allocation5 + $0xc] sm:$0xf]
    %v61 = vld [vmem:[#allocation7] sm:$0x1]
    %v63 = vlaneseq
    %v64 = vshrl.u32 %v63, 7
    %v65 = vsub.s32 0, %v64
    %v66 = vrot.slane %v61, %v65
    %v70 = vunpack.c.l.b16 %v55
    %v71 = vunpack.c.l.b16 %v56
    %v72 = vpack.c.b16 %v71, %v70
    %v77 = vunpack.c.l.b16 %v57
    %v78 = vunpack.c.l.b16 %v58
    %v79 = vunpack.c.l.b16 %v59
    %v80 = vunpack.c.l.b16 %v60
    %v81 = vpack.c.b16 %v78, %v77
    %v82 = vpack.c.b16 %v80, %v79
    %vm85 = vcmask 261120
    %v87 = vsel %vm85, %v72, 0
    %89 = vmatprep.subr.bf16.mxu0 0
    %90 = vmatpush1.bf16.msra.mxu0 %v81
    %91 = vmatprep.subr.bf16.mxu0 0
    %92 = vmatpush1.bf16.msra.mxu0 %v82
    %93 = vmatprep.subr.bf16.mxu0 0
    %94 = vmatpush1.bf16.msra.mxu0 0
    %95 = vmatprep.subr.bf16.mxu0 0
    %96 = vmatpush1.bf16.msra.mxu0 0
    %97 = vmatprep.subr.bf16.mxu0 0
    %98 = vmatpush1.bf16.msra.mxu0 0
    %99 = vmatprep.subr.bf16.mxu0 0
    %100 = vmatpush1.bf16.msra.mxu0 0
    %101 = vmatprep.subr.bf16.mxu0 0
    %102 = vmatpush1.bf16.msra.mxu0 0
    %103 = vmatprep.subr.bf16.mxu0 0
    %104 = vmatpush1.bf16.msra.mxu0 0
    %105 = vmatprep.subr.bf16.mxu0 0
    %106 = vmatpush1.bf16.msra.mxu0 0
    %107 = vmatprep.subr.bf16.mxu0 0
    %108 = vmatpush1.bf16.msra.mxu0 0
    %109 = vmatprep.subr.bf16.mxu0 0
    %110 = vmatpush1.bf16.msra.mxu0 0
    %111 = vmatprep.subr.bf16.mxu0 0
    %112 = vmatpush1.bf16.msra.mxu0 0
    %113 = vmatprep.subr.bf16.mxu0 0
    %114 = vmatpush1.bf16.msra.mxu0 0
    %115 = vmatprep.subr.bf16.mxu0 0
    %116 = vmatpush1.bf16.msra.mxu0 0
    %117 = vmatprep.subr.bf16.mxu0 0
    %118 = vmatpush1.bf16.msra.mxu0 0
    %119 = vmatprep.subr.bf16.mxu0 0
    %120 = vmatpush1.bf16.msra.mxu0 0
    %121 = vmatprep.mubr.bf16.mxu0 0
    %122 = vmatmul.mubr.bf16.gmra.mrb[0].mxu0 %v87
    %v123 = vpop.f32.mrb[0].mxu0
    %v124 = vadd.f32 %v66, %v123
    %v125 = vpop.f32.mrb[0].mxu0
    %v126 = vpop.f32.mrb[0].mxu0
    %v127 = vadd.f32 %v66, %v126
    %v128 = vpop.f32.mrb[0].mxu0
    %129 = vdwg.mxu0
    %130 = vst.msk [vmem:[#allocation8] sm:$0xff] %vm85, %v124
    %vm131 = vcmask 259072
    %132 = vst.msk [vmem:[#allocation8 + $0x8] sm:$0x3f] %vm131, %v127
    // Predicated region
    $region26: #{cvae_forward.17} parent=1 // pred_check
      _
    $region27: #{cvae_forward.17} parent=1 // pred_check_branch
      %134 = sbr.rel (0) target = $region29
    $region28: #{cvae_forward.17} parent=1 // pred_region
      %s136 = ssub.s32 256, 256
      %137 = vsyncadd [#allocation4], %s136
      %s138 = sshll.u32 [#allocation8], 4
      %s139 = int_to_ptr.vmem [resolvable:$true] %s138
      %144 = dma.vmem_to_hbm [thread:$0]  %s139, 256, %s3, [#allocation4], 128, 128, 8
    $region29: #{cvae_forward.17} parent=1 // pred_fallthru
      _
    // Predicated region
    $region30: #{cvae_forward.17} parent=1 // pred_check
      _
    $region31: #{cvae_forward.17} parent=1 // pred_check_branch
      %146 = sbr.rel (0) target = $region33
    $region32: #{cvae_forward.17} parent=1 // pred_region
      %147 = dma.done [#allocation4], 256
    $region33: #{cvae_forward.17} parent=1 // pred_fallthru
      _
    %148 = vsyncpa [#allocation3], 1
    %149 = vsyncpa [#allocation6], 1
    %150 = vsyncpa [#allocation4], 1

// kernel: cvae_forward.14
$region0: #{cvae_forward.14}
  #allocation0 [shape = 'u32[]', space=smem, size = 0x4, offset = 0x4, fixed_abs, tag = 'smem constant byte address 0x4 - core index']
  #allocation1 [shape = 'u32[144,128]{1,0:T(1,128)}', space=vmem, size = 0x12000, scoped, tag = 'internal scratch']
  %s0 = inlined_call_operand.hbm [shape: bf16[2,32], index: 0, kind: input, shape index: {}]
  %s1 = inlined_call_operand.hbm [shape: bf16[32,32], index: 1, kind: input, shape index: {}]
  %s2 = inlined_call_operand.hbm [shape: f32[1,32], index: 2, kind: input, shape index: {}]
  %s3 = inlined_call_operand.hbm [shape: f32[2,32], index: 3, kind: output, shape index: {}]
  %s4 = sld [smem:[#allocation0]]
  $region34: #{cvae_forward.14} parent=0
    _
  %s6 = ssub.s32 1, %s4
  %s7 = scalar_select 0, %s6, %s4
  $region1: #{cvae_forward.14} parent=0
    #allocation2 [shape = 'u8[512]{0}', space=vmem, size = 0x400, scoped, tag = 'input window, operand 0, single buffered']
    #allocation3 [shape = 's32[1]{0}', space=sflag, size = 0x4, scoped, tag = 'scoped memory for cvae_forward.14']
    #allocation4 [shape = 's32[1]{0}', space=sflag, size = 0x4, scoped, tag = 'scoped memory for cvae_forward.14']
    #allocation5 [shape = 'u8[8192]{0}', space=vmem, size = 0x2000, scoped, tag = 'input window, operand 1, single buffered']
    #allocation6 [shape = 's32[1]{0}', space=sflag, size = 0x4, scoped, tag = 'scoped memory for cvae_forward.14']
    #allocation7 [shape = 'u8[512]{0}', space=vmem, size = 0x400, scoped, tag = 'input window, operand 2, single buffered']
    #allocation8 [shape = 'u8[1024]{0}', space=vmem, size = 0x400, scoped, tag = 'output window, operand 0, single buffered']
    %8 = vsyncpa [#allocation3], 0
    %9 = vsyncpa [#allocation6], 0
    %10 = vsyncpa [#allocation4], 0
    // Predicated region
    $region2: #{cvae_forward.14} parent=1 // pred_check
      _
    $region3: #{cvae_forward.14} parent=1 // pred_check_branch
      %12 = sbr.rel (0) target = $region5
    $region4: #{cvae_forward.14} parent=1 // pred_region
      %s14 = ssub.s32 16, 16
      %15 = vsyncadd [#allocation3], %s14
      %s17 = sshll.u32 [#allocation2], 4
      %s18 = int_to_ptr.vmem [resolvable:$true] %s17
      %20 = dma.hbm_to_vmem [thread:$0]  %s0, 16, %s18, [#allocation3]
    $region5: #{cvae_forward.14} parent=1 // pred_fallthru
      _
    // Predicated region
    $region6: #{cvae_forward.14} parent=1 // pred_check
      _
    $region7: #{cvae_forward.14} parent=1 // pred_check_branch
      %22 = sbr.rel (0) target = $region9
    $region8: #{cvae_forward.14} parent=1 // pred_region
      %s24 = ssub.s32 256, 256
      %25 = vsyncadd [#allocation6], %s24
      %s26 = sshll.u32 [#allocation5], 4
      %s27 = int_to_ptr.vmem [resolvable:$true] %s26
      %32 = dma.hbm_to_vmem [thread:$0]  %s1, 256, %s27, [#allocation6], 64, 64, 4
    $region9: #{cvae_forward.14} parent=1 // pred_fallthru
      _
    // Predicated region
    $region10: #{cvae_forward.14} parent=1 // pred_check
      _
    $region11: #{cvae_forward.14} parent=1 // pred_check_branch
      %34 = sbr.rel (0) target = $region13
    $region12: #{cvae_forward.14} parent=1 // pred_region
      %s36 = ssub.s32 16, 16
      %37 = vsyncadd [#allocation6], %s36
      %s39 = sshll.u32 [#allocation7], 4
      %s40 = int_to_ptr.vmem [resolvable:$true] %s39
      %42 = dma.hbm_to_vmem [thread:$0]  %s2, 16, %s40, [#allocation6]
    $region13: #{cvae_forward.14} parent=1 // pred_fallthru
      _
    // Predicated region
    $region14: #{cvae_forward.14} parent=1 // pred_check
      _
    $region15: #{cvae_forward.14} parent=1 // pred_check_branch
      %44 = sbr.rel (0) target = $region17
    $region16: #{cvae_forward.14} parent=1 // pred_region
      %45 = dma.done [#allocation3], 16
    $region17: #{cvae_forward.14} parent=1 // pred_fallthru
      _
    // Predicated region
    $region18: #{cvae_forward.14} parent=1 // pred_check
      _
    $region19: #{cvae_forward.14} parent=1 // pred_check_branch
      %47 = sbr.rel (0) target = $region21
    $region20: #{cvae_forward.14} parent=1 // pred_region
      %48 = dma.done [#allocation6], 256
    $region21: #{cvae_forward.14} parent=1 // pred_fallthru
      _
    // Predicated region
    $region22: #{cvae_forward.14} parent=1 // pred_check
      _
    $region23: #{cvae_forward.14} parent=1 // pred_check_branch
      %50 = sbr.rel (0) target = $region25
    $region24: #{cvae_forward.14} parent=1 // pred_region
      %51 = dma.done [#allocation6], 16
    $region25: #{cvae_forward.14} parent=1 // pred_fallthru
      _
    %v53 = vld [vmem:[#allocation2] sm:$0x1]
    %v54 = vld [vmem:[#allocation5] sm:$0xf]
    %v55 = vld [vmem:[#allocation5 + $0x4] sm:$0xf]
    %v56 = vld [vmem:[#allocation5 + $0x8] sm:$0xf]
    %v57 = vld [vmem:[#allocation5 + $0xc] sm:$0xf]
    %v58 = vld [vmem:[#allocation7] sm:$0x1]
    %v60 = vlaneseq
    %v61 = vshrl.u32 %v60, 7
    %v62 = vsub.s32 0, %v61
    %v63 = vrot.slane %v58, %v62
    %v69 = vunpack.c.l.b16 %v54
    %v70 = vunpack.c.l.b16 %v55
    %v71 = vunpack.c.l.b16 %v56
    %v72 = vunpack.c.l.b16 %v57
    %v73 = vpack.c.b16 %v70, %v69
    %v74 = vpack.c.b16 %v72, %v71
    %vm77 = vcmask 261120
    %v79 = vsel %vm77, %v53, 0
    %81 = vmatprep.subr.bf16.mxu0 0
    %82 = vmatpush1.bf16.msra.mxu0 %v73
    %83 = vmatprep.subr.bf16.mxu0 0
    %84 = vmatpush1.bf16.msra.mxu0 %v74
    %85 = vmatprep.subr.bf16.mxu0 0
    %86 = vmatpush1.bf16.msra.mxu0 0
    %87 = vmatprep.subr.bf16.mxu0 0
    %88 = vmatpush1.bf16.msra.mxu0 0
    %89 = vmatprep.subr.bf16.mxu0 0
    %90 = vmatpush1.bf16.msra.mxu0 0
    %91 = vmatprep.subr.bf16.mxu0 0
    %92 = vmatpush1.bf16.msra.mxu0 0
    %93 = vmatprep.subr.bf16.mxu0 0
    %94 = vmatpush1.bf16.msra.mxu0 0
    %95 = vmatprep.subr.bf16.mxu0 0
    %96 = vmatpush1.bf16.msra.mxu0 0
    %97 = vmatprep.subr.bf16.mxu0 0
    %98 = vmatpush1.bf16.msra.mxu0 0
    %99 = vmatprep.subr.bf16.mxu0 0
    %100 = vmatpush1.bf16.msra.mxu0 0
    %101 = vmatprep.subr.bf16.mxu0 0
    %102 = vmatpush1.bf16.msra.mxu0 0
    %103 = vmatprep.subr.bf16.mxu0 0
    %104 = vmatpush1.bf16.msra.mxu0 0
    %105 = vmatprep.subr.bf16.mxu0 0
    %106 = vmatpush1.bf16.msra.mxu0 0
    %107 = vmatprep.subr.bf16.mxu0 0
    %108 = vmatpush1.bf16.msra.mxu0 0
    %109 = vmatprep.subr.bf16.mxu0 0
    %110 = vmatpush1.bf16.msra.mxu0 0
    %111 = vmatprep.subr.bf16.mxu0 0
    %112 = vmatpush1.bf16.msra.mxu0 0
    %113 = vmatprep.mubr.bf16.mxu0 0
    %114 = vmatmul.mubr.bf16.gmra.mrb[0].mxu0 %v79
    %v115 = vpop.f32.mrb[0].mxu0
    %v116 = vadd.f32 %v63, %v115
    %v117 = vpop.f32.mrb[0].mxu0
    %v118 = vpop.f32.mrb[0].mxu0
    %v119 = vpop.f32.mrb[0].mxu0
    %120 = vdwg.mxu0
    %vm121 = vcmask 254976
    %122 = vst.msk [vmem:[#allocation8] sm:$0x3] %vm121, %v116
    // Predicated region
    $region26: #{cvae_forward.14} parent=1 // pred_check
      _
    $region27: #{cvae_forward.14} parent=1 // pred_check_branch
      %124 = sbr.rel (0) target = $region29
    $region28: #{cvae_forward.14} parent=1 // pred_region
      %s126 = ssub.s32 32, 32
      %127 = vsyncadd [#allocation4], %s126
      %s129 = sshll.u32 [#allocation8], 4
      %s130 = int_to_ptr.vmem [resolvable:$true] %s129
      %132 = dma.vmem_to_hbm [thread:$0]  %s130, 32, %s3, [#allocation4]
    $region29: #{cvae_forward.14} parent=1 // pred_fallthru
      _
    // Predicated region
    $region30: #{cvae_forward.14} parent=1 // pred_check
      _
    $region31: #{cvae_forward.14} parent=1 // pred_check_branch
      %134 = sbr.rel (0) target = $region33
    $region32: #{cvae_forward.14} parent=1 // pred_region
      %135 = dma.done [#allocation4], 32
    $region33: #{cvae_forward.14} parent=1 // pred_fallthru
      _
    %136 = vsyncpa [#allocation3], 1
    %137 = vsyncpa [#allocation6], 1
    %138 = vsyncpa [#allocation4], 1

</llo_original>
